<compile_context>
chip_gen: v7x
topology: tpu7x:2x2x1
jax: 0.10.0
libtpu: 0.0.40
codegen_flags: <defaults>
</compile_context>

<pallas_src>
import functools

import jax
import jax.numpy as jnp
from jax.experimental import pallas as pl
from jax.experimental.pallas import tpu as pltpu


LANE = 128  # TPU lane width: pad output/hidden feature dims to multiples of this.


def _round_up(n, m):
    return ((n + m - 1) // m) * m


def _mlp_kernel(x_ref, w1_ref, b1_ref, w2_ref, b2_ref, o_ref):
    # Cast activations to the weight dtype (bf16) in-VMEM: no extra HBM traffic,
    # feeds the bf16 MXU path in a single pass.
    x = x_ref[...].astype(w1_ref.dtype)
    # hidden = tanh(x @ W1 + b1)   (f32 accumulation on the MXU, f32 bias/tanh)
    h = jnp.dot(x, w1_ref[...], preferred_element_type=jnp.float32)
    h = jnp.tanh(h + b1_ref[...])          # b1 is (1, nh_p) f32, broadcasts over batch
    # out = hidden @ W2 + b2
    y = jnp.dot(h.astype(w2_ref.dtype), w2_ref[...],
                preferred_element_type=jnp.float32)
    o_ref[...] = (y + b2_ref[...]).astype(o_ref.dtype)


def prepare_params(w1, b1, w2, b2, weight_dtype=jnp.bfloat16):
    """One-time (off the hot path) transpose + pad of torch.nn.Linear params.

    Inputs (torch layout):  w1: (nh, nx), b1: (nh,), w2: (ny, nh), b2: (ny,)
    Returns kernel-ready params:
      w1_t: (nx, nh_p) bf16, b1_r: (1, nh_p) f32, w2_t: (nh_p, ny_p) bf16,
      b2_r: (1, ny_p) f32.
    The K dim (nx) is left unpadded (784 % 8 == 0 satisfies the sublane rule);
    only hidden/output lane dims are padded to 128. Zero padding is exact:
    padded b1 entries are 0 (tanh(0)=0) and padded W2 rows are 0, so valid
    output columns match the unpadded math.
    """
    nh, nx = w1.shape
    ny = w2.shape[0]
    nh_p = _round_up(nh, LANE)
    ny_p = _round_up(ny, LANE)

    w1_t = jnp.zeros((nx, nh_p), weight_dtype).at[:, :nh].set(w1.T.astype(weight_dtype))
    b1_r = jnp.zeros((1, nh_p), jnp.float32).at[:, :nh].set(b1.astype(jnp.float32))
    w2_t = jnp.zeros((nh_p, ny_p), weight_dtype).at[:nh, :ny].set(w2.T.astype(weight_dtype))
    b2_r = jnp.zeros((1, ny_p), jnp.float32).at[:, :ny].set(b2.astype(jnp.float32))
    return w1_t, b1_r, w2_t, b2_r


def _pick_tile_b(batch):
    """Per-generation batch tile: fill the 256-wide MXU on v6e/v7x, but keep
    >= 2 grid steps on v7x so both TensorCores get a share of the batch."""
    try:
        kind = jax.devices()[0].device_kind.lower()
    except Exception:  # pragma: no cover - e.g. no devices in interpret tests
        kind = ""
    is_v7 = ("v7" in kind) or ("7x" in kind)
    is_v6 = "v6" in kind
    n_cores = 2 if is_v7 else 1
    wide_mxu = is_v6 or is_v7
    tile_b = 256 if (wide_mxu and batch >= 256 * n_cores) else 128
    return min(tile_b, _round_up(max(batch, 1), 8))


@functools.partial(jax.jit,
                   static_argnames=("ny", "tile_b", "single_buffer_weights"))
def mnist_model_forward(x, w1_t, b1_r, w2_t, b2_r, *, ny, tile_b=128,
                        single_buffer_weights=True):
    """Forward pass: y = tanh(x @ W1 + b1) @ W2 + b2 (torch.nn.Linear semantics).

    x: (B, nx) float32. Params must come from prepare_params. ny is the true
    (unpadded) output width; tile_b is the per-grid-step batch tile.
    """
    B, nx = x.shape
    nx_w, nh_p = w1_t.shape
    assert nx == nx_w, "x feature width must match prepared W1"
    ny_p = w2_t.shape[1]

    # Pad the batch only if needed (static Python guard -> no op on the hot
    # path when B is already a tile multiple). Feature dim is NOT padded.
    B_p = _round_up(B, tile_b)
    x_p = x
    if B_p != B:
        x_p = jnp.zeros((B_p, nx), x.dtype).at[:B].set(x)

    if single_buffer_weights:
        # Grid-invariant operands: fetched once, keep a single VMEM copy.
        def w_spec(shape):
            return pl.BlockSpec(shape, lambda i: (0, 0),
                                pipeline_mode=pl.Buffered(1))
    else:
        def w_spec(shape):
            return pl.BlockSpec(shape, lambda i: (0, 0))

    out = pl.pallas_call(
        _mlp_kernel,
        out_shape=jax.ShapeDtypeStruct((B_p, ny_p), x.dtype),
        grid=(B_p // tile_b,),
        in_specs=[
            # Activations stream (double-buffered) across the batch grid.
            pl.BlockSpec((tile_b, nx), lambda i: (i, 0)),
            # Weights / biases pinned resident in VMEM across all grid steps.
            w_spec((nx, nh_p)),
            w_spec((1, nh_p)),
            w_spec((nh_p, ny_p)),
            w_spec((1, ny_p)),
        ],
        # Lane-dense (128-wide) output block -> unmasked full-width stores.
        out_specs=pl.BlockSpec((tile_b, ny_p), lambda i: (i, 0)),
        compiler_params=pltpu.CompilerParams(
            dimension_semantics=("parallel",),  # batch tiles are independent
        ),
    )(x_p, w1_t, b1_r, w2_t, b2_r)

    # Drop batch + lane padding.
    return out[:B, :ny]


def init_params(key, nx, nh, ny, dtype=jnp.float32):
    """Deterministic init mimicking torch.nn.Linear default:
    U(-1/sqrt(fan_in), 1/sqrt(fan_in)) for both weight and bias."""
    k1, k2, k3, k4 = jax.random.split(key, 4)
    bound1 = 1.0 / (nx ** 0.5)
    bound2 = 1.0 / (nh ** 0.5)
    w1 = jax.random.uniform(k1, (nh, nx), dtype, -bound1, bound1)
    b1 = jax.random.uniform(k2, (nh,), dtype, -bound1, bound1)
    w2 = jax.random.uniform(k3, (ny, nh), dtype, -bound2, bound2)
    b2 = jax.random.uniform(k4, (ny,), dtype, -bound2, bound2)
    return w1, b1, w2, b2


if __name__ == "__main__":
    # MNIST-shaped problem: batch=256, nx=784, nh=256, ny=10.
    B, nx, nh, ny = 256, 784, 256, 10

    key = jax.random.PRNGKey(0)
    kx, kp = jax.random.split(key)
    x = jax.random.normal(kx, (B, nx), jnp.float32)
    w1, b1, w2, b2 = init_params(kp, nx, nh, ny)

    # One-time param prep (transpose + lane padding + bf16 cast), off hot path.
    w1_t, b1_r, w2_t, b2_r = prepare_params(w1, b1, w2, b2)

    tile_b = _pick_tile_b(B)

    try:
        out = mnist_model_forward(x, w1_t, b1_r, w2_t, b2_r,
                                  ny=ny, tile_b=tile_b,
                                  single_buffer_weights=True)
        out = jax.block_until_ready(out)
    except Exception:
        # Fallback: default double-buffered weight blocks (VMEM is tiny anyway).
        out = mnist_model_forward(x, w1_t, b1_r, w2_t, b2_r,
                                  ny=ny, tile_b=tile_b,
                                  single_buffer_weights=False)
        out = jax.block_until_ready(out)

    assert out.shape == (B, ny)

    # Reference 1: same bf16-quantized weights/activations, f32 accumulation
    # (matches the kernel's numerics) -> tight tolerance.
    hi = jax.lax.Precision.HIGHEST
    xq = x.astype(jnp.bfloat16).astype(jnp.float32)
    w1q = w1.astype(jnp.bfloat16).astype(jnp.float32)
    w2q = w2.astype(jnp.bfloat16).astype(jnp.float32)
    hq = jnp.tanh(jnp.dot(xq, w1q.T, precision=hi) + b1)
    hq = hq.astype(jnp.bfloat16).astype(jnp.float32)
    ref_q = jnp.dot(hq, w2q.T, precision=hi) + b2
    assert jnp.allclose(out, ref_q, atol=2e-3, rtol=2e-3), \
        "mismatch vs bf16-quantized reference"

    # Reference 2: full-f32 forward semantics of the PyTorch module
    # (loose tolerance covers the bf16 weight quantization).
    ref = jnp.tanh(jnp.dot(x, w1.T, precision=hi) + b1)
    ref = jnp.dot(ref, w2.T, precision=hi) + b2
    assert jnp.allclose(out, ref, atol=2e-2, rtol=2e-2), \
        "mismatch vs f32 reference"

    print("KERNEL_OK")
</pallas_src>

<mosaic_0001>
module attributes {stable_mosaic.version = 11 : i64} {
  func.func @_mlp_kernel(%arg0: i32, %arg1: memref<128x784xf32, #tpu.memory_space<vmem>>, %arg2: memref<784x256xbf16, #tpu.memory_space<vmem>>, %arg3: memref<1x256xf32, #tpu.memory_space<vmem>>, %arg4: memref<256x128xbf16, #tpu.memory_space<vmem>>, %arg5: memref<1x128xf32, #tpu.memory_space<vmem>>, %arg6: memref<128x128xf32, #tpu.memory_space<vmem>>) attributes {dimension_semantics = [#tpu.dimension_semantics<parallel>], iteration_bounds = array<i64: 2>, scalar_prefetch = 0 : i64, scratch_operands = 0 : i64, tpu.core_type = #tpu.core_type<tc>, window_params = [{transform_indices = @transform_0, window_bounds = array<i64: 128, 784>}, {pipeline_mode = #tpu.pipeline_mode<synchronous>, transform_indices = @transform_1, window_bounds = array<i64: 784, 256>}, {pipeline_mode = #tpu.pipeline_mode<synchronous>, transform_indices = @transform_2, window_bounds = array<i64: 1, 256>}, {pipeline_mode = #tpu.pipeline_mode<synchronous>, transform_indices = @transform_3, window_bounds = array<i64: 256, 128>}, {pipeline_mode = #tpu.pipeline_mode<synchronous>, transform_indices = @transform_4, window_bounds = array<i64: 1, 128>}, {transform_indices = @transform_5, window_bounds = array<i64: 128, 128>}]} {
    %c0 = arith.constant 0 : index
    %c0_0 = arith.constant 0 : index
    %0 = vector.load %arg1[%c0, %c0_0] : memref<128x784xf32, #tpu.memory_space<vmem>>, vector<128x784xf32>
    %1 = arith.truncf %0 : vector<128x784xf32> to vector<128x784xbf16>
    %c0_1 = arith.constant 0 : index
    %c0_2 = arith.constant 0 : index
    %2 = vector.load %arg2[%c0_1, %c0_2] : memref<784x256xbf16, #tpu.memory_space<vmem>>, vector<784x256xbf16>
    %cst = arith.constant dense<0.000000e+00> : vector<128x256xf32>
    %3 = tpu.matmul %1, %2, %cst {dimension_numbers = #tpu.dot_dimension_numbers<[1], [0], [0], [1], [0, 0, 1, 1], [], []>} : vector<128x784xbf16>, vector<784x256xbf16>, vector<128x256xf32> -> vector<128x256xf32>
    %c0_3 = arith.constant 0 : index
    %c0_4 = arith.constant 0 : index
    %4 = vector.load %arg3[%c0_3, %c0_4] : memref<1x256xf32, #tpu.memory_space<vmem>>, vector<1x256xf32>
    %5 = vector.broadcast %4 : vector<1x256xf32> to vector<128x256xf32>
    %6 = arith.addf %3, %5 : vector<128x256xf32>
    %7 = math.tanh %6 : vector<128x256xf32>
    %8 = arith.truncf %7 : vector<128x256xf32> to vector<128x256xbf16>
    %c0_5 = arith.constant 0 : index
    %c0_6 = arith.constant 0 : index
    %9 = vector.load %arg4[%c0_5, %c0_6] : memref<256x128xbf16, #tpu.memory_space<vmem>>, vector<256x128xbf16>
    %cst_7 = arith.constant dense<0.000000e+00> : vector<128x128xf32>
    %10 = tpu.matmul %8, %9, %cst_7 {dimension_numbers = #tpu.dot_dimension_numbers<[1], [0], [0], [1], [0, 0, 1, 1], [], []>} : vector<128x256xbf16>, vector<256x128xbf16>, vector<128x128xf32> -> vector<128x128xf32>
    %c0_8 = arith.constant 0 : index
    %c0_9 = arith.constant 0 : index
    %11 = vector.load %arg5[%c0_8, %c0_9] : memref<1x128xf32, #tpu.memory_space<vmem>>, vector<1x128xf32>
    %12 = vector.broadcast %11 : vector<1x128xf32> to vector<128x128xf32>
    %13 = arith.addf %10, %12 : vector<128x128xf32>
    %c0_10 = arith.constant 0 : index
    %c0_11 = arith.constant 0 : index
    %14 = vector.load %arg6[%c0_10, %c0_11] : memref<128x128xf32, #tpu.memory_space<vmem>>, vector<128x128xf32>
    tpu.vector_store %arg6[%c0_10, %c0_11], %13 {strides = array<i32>} : memref<128x128xf32, #tpu.memory_space<vmem>>, vector<128x128xf32>,
    return
  }
  func.func @transform_0(%arg0: i32) -> (i32, i32) {
    %c0_i32 = arith.constant 0 : i32
    %c0_i32_0 = arith.constant 0 : i32
    return %arg0, %c0_i32 : i32, i32
  }
  func.func @transform_1(%arg0: i32) -> (i32, i32) {
    %c0_i32 = arith.constant 0 : i32
    %c0_i32_0 = arith.constant 0 : i32
    %c0_i32_1 = arith.constant 0 : i32
    return %c0_i32, %c0_i32_0 : i32, i32
  }
  func.func @transform_2(%arg0: i32) -> (i32, i32) {
    %c0_i32 = arith.constant 0 : i32
    %c0_i32_0 = arith.constant 0 : i32
    %c0_i32_1 = arith.constant 0 : i32
    return %c0_i32, %c0_i32_0 : i32, i32
  }
  func.func @transform_3(%arg0: i32) -> (i32, i32) {
    %c0_i32 = arith.constant 0 : i32
    %c0_i32_0 = arith.constant 0 : i32
    %c0_i32_1 = arith.constant 0 : i32
    return %c0_i32, %c0_i32_0 : i32, i32
  }
  func.func @transform_4(%arg0: i32) -> (i32, i32) {
    %c0_i32 = arith.constant 0 : i32
    %c0_i32_0 = arith.constant 0 : i32
    %c0_i32_1 = arith.constant 0 : i32
    return %c0_i32, %c0_i32_0 : i32, i32
  }
  func.func @transform_5(%arg0: i32) -> (i32, i32) {
    %c0_i32 = arith.constant 0 : i32
    %c0_i32_0 = arith.constant 0 : i32
    return %arg0, %c0_i32 : i32, i32
  }
}

module attributes {stable_mosaic.version = 11 : i64} {
  func.func @_mlp_kernel(%arg0: i32, %arg1: memref<128x784xf32, #tpu.memory_space<vmem>>, %arg2: memref<784x256xbf16, #tpu.memory_space<vmem>>, %arg3: memref<1x256xf32, #tpu.memory_space<vmem>>, %arg4: memref<256x128xbf16, #tpu.memory_space<vmem>>, %arg5: memref<1x128xf32, #tpu.memory_space<vmem>>, %arg6: memref<128x128xf32, #tpu.memory_space<vmem>>) attributes {dimension_semantics = [#tpu.dimension_semantics<parallel>], iteration_bounds = array<i64: 2>, scalar_prefetch = 0 : i64, scratch_operands = 0 : i64, tpu.core_type = #tpu.core_type<tc>, window_params = [{transform_indices = @transform_0, window_bounds = array<i64: 128, 784>}, {pipeline_mode = #tpu.pipeline_mode<synchronous>, transform_indices = @transform_1, window_bounds = array<i64: 784, 256>}, {pipeline_mode = #tpu.pipeline_mode<synchronous>, transform_indices = @transform_2, window_bounds = array<i64: 1, 256>}, {pipeline_mode = #tpu.pipeline_mode<synchronous>, transform_indices = @transform_3, window_bounds = array<i64: 256, 128>}, {pipeline_mode = #tpu.pipeline_mode<synchronous>, transform_indices = @transform_4, window_bounds = array<i64: 1, 128>}, {transform_indices = @transform_5, window_bounds = array<i64: 128, 128>}]} {
    %c0 = arith.constant 0 : index
    %c0_0 = arith.constant 0 : index
    %0 = vector.load %arg1[%c0, %c0_0] : memref<128x784xf32, #tpu.memory_space<vmem>>, vector<128x784xf32>
    %1 = arith.truncf %0 : vector<128x784xf32> to vector<128x784xbf16>
    %c0_1 = arith.constant 0 : index
    %c0_2 = arith.constant 0 : index
    %2 = vector.load %arg2[%c0_1, %c0_2] : memref<784x256xbf16, #tpu.memory_space<vmem>>, vector<784x256xbf16>
    %cst = arith.constant dense<0.000000e+00> : vector<128x256xf32>
    %3 = tpu.matmul %1, %2, %cst {dimension_numbers = #tpu.dot_dimension_numbers<[1], [0], [0], [1], [0, 0, 1, 1], [], []>} : vector<128x784xbf16>, vector<784x256xbf16>, vector<128x256xf32> -> vector<128x256xf32>
    %c0_3 = arith.constant 0 : index
    %c0_4 = arith.constant 0 : index
    %4 = vector.load %arg3[%c0_3, %c0_4] : memref<1x256xf32, #tpu.memory_space<vmem>>, vector<1x256xf32>
    %5 = vector.broadcast %4 : vector<1x256xf32> to vector<128x256xf32>
    %6 = arith.addf %3, %5 : vector<128x256xf32>
    %7 = math.tanh %6 : vector<128x256xf32>
    %8 = arith.truncf %7 : vector<128x256xf32> to vector<128x256xbf16>
    %c0_5 = arith.constant 0 : index
    %c0_6 = arith.constant 0 : index
    %9 = vector.load %arg4[%c0_5, %c0_6] : memref<256x128xbf16, #tpu.memory_space<vmem>>, vector<256x128xbf16>
    %cst_7 = arith.constant dense<0.000000e+00> : vector<128x128xf32>
    %10 = tpu.matmul %8, %9, %cst_7 {dimension_numbers = #tpu.dot_dimension_numbers<[1], [0], [0], [1], [0, 0, 1, 1], [], []>} : vector<128x256xbf16>, vector<256x128xbf16>, vector<128x128xf32> -> vector<128x128xf32>
    %c0_8 = arith.constant 0 : index
    %c0_9 = arith.constant 0 : index
    %11 = vector.load %arg5[%c0_8, %c0_9] : memref<1x128xf32, #tpu.memory_space<vmem>>, vector<1x128xf32>
    %12 = vector.broadcast %11 : vector<1x128xf32> to vector<128x128xf32>
    %13 = arith.addf %10, %12 : vector<128x128xf32>
    %c0_10 = arith.constant 0 : index
    %c0_11 = arith.constant 0 : index
    %14 = vector.load %arg6[%c0_10, %c0_11] : memref<128x128xf32, #tpu.memory_space<vmem>>, vector<128x128xf32>
    tpu.vector_store %arg6[%c0_10, %c0_11], %13 {strides = array<i32>} : memref<128x128xf32, #tpu.memory_space<vmem>>, vector<128x128xf32>,
    return
  }
  func.func @transform_0(%arg0: i32) -> (i32, i32) {
    %c0_i32 = arith.constant 0 : i32
    %c0_i32_0 = arith.constant 0 : i32
    return %arg0, %c0_i32 : i32, i32
  }
  func.func @transform_1(%arg0: i32) -> (i32, i32) {
    %c0_i32 = arith.constant 0 : i32
    %c0_i32_0 = arith.constant 0 : i32
    %c0_i32_1 = arith.constant 0 : i32
    return %c0_i32, %c0_i32_0 : i32, i32
  }
  func.func @transform_2(%arg0: i32) -> (i32, i32) {
    %c0_i32 = arith.constant 0 : i32
    %c0_i32_0 = arith.constant 0 : i32
    %c0_i32_1 = arith.constant 0 : i32
    return %c0_i32, %c0_i32_0 : i32, i32
  }
  func.func @transform_3(%arg0: i32) -> (i32, i32) {
    %c0_i32 = arith.constant 0 : i32
    %c0_i32_0 = arith.constant 0 : i32
    %c0_i32_1 = arith.constant 0 : i32
    return %c0_i32, %c0_i32_0 : i32, i32
  }
  func.func @transform_4(%arg0: i32) -> (i32, i32) {
    %c0_i32 = arith.constant 0 : i32
    %c0_i32_0 = arith.constant 0 : i32
    %c0_i32_1 = arith.constant 0 : i32
    return %c0_i32, %c0_i32_0 : i32, i32
  }
  func.func @transform_5(%arg0: i32) -> (i32, i32) {
    %c0_i32 = arith.constant 0 : i32
    %c0_i32_0 = arith.constant 0 : i32
    return %arg0, %c0_i32 : i32, i32
  }
}

</mosaic_0001>

<llo_original>
// kernel: mnist_model_forward.1
$region0: #{mnist_model_forward.1}
  #allocation0 [shape = 'u32[]', space=smem, size = 0x4, offset = 0x4, fixed_abs, tag = 'smem constant byte address 0x4 - core index']
  #allocation1 [shape = 'u32[144,128]{1,0:T(1,128)}', space=vmem, size = 0x12000, scoped, tag = 'internal scratch']
  %s0 = inlined_call_operand.vmem [shape: f32[256,784], index: 0, kind: input, shape index: {}]
  %s1 = inlined_call_operand.vmem [shape: bf16[784,256], index: 1, kind: input, shape index: {}]
  %s2 = inlined_call_operand.vmem [shape: f32[1,256], index: 2, kind: input, shape index: {}]
  %s3 = inlined_call_operand.vmem [shape: bf16[256,128], index: 3, kind: input, shape index: {}]
  %s4 = inlined_call_operand.vmem [shape: f32[1,128], index: 4, kind: input, shape index: {}]
  %s5 = inlined_call_operand.vmem [shape: f32[256,128], index: 5, kind: output, shape index: {}]
  %s6 = sld [smem:[#allocation0]]
  $region53: #{mnist_model_forward.1} parent=0
    _
  %s8 = ssub.s32 1, %s6
  %s9 = scalar_select 0, %s8, %s6
  loop: start=0, step=1, limit=4
  $region2: #{mnist_model_forward.1} parent=0 // loop_pre_header
    _
  $region3: #{mnist_model_forward.1} parent=0 // loop_header
    %s11 = sphi 0, %s15
    %p12 = scmp.ge.s32.totalorder %s11, 4
    %s21 = sphi 0, %s23
    %s24 = sphi 0, %s21
    %s25 = sphi 0, %s24
    %s41 = sphi 0, %s25
    %s45 = sphi 0, %s45
    %s47 = sphi 0, %s45
    %s48 = sphi 0, %s47
    %s62 = sphi 0, %s48
    %s66 = sphi 0, %s66
    %s68 = sphi 0, %s66
    %s69 = sphi 0, %s68
    %s83 = sphi 0, %s69
    %s87 = sphi 0, %s87
    %s89 = sphi 0, %s87
    %s90 = sphi 0, %s89
    %s104 = sphi 0, %s90
    %s108 = sphi 0, %s108
    %s110 = sphi 0, %s108
    %s111 = sphi 0, %s110
    %s125 = sphi 0, %s111
    %s131 = sphi 0, %s133
    %s134 = sphi 0, %s131
    %s135 = sphi 0, %s134
    %s151 = sphi 0, %s135
  $region4: #{mnist_model_forward.1} parent=0 // loop_header_branch
    %14 = sbr.rel (%p12) target = $region8
  $region5: #{mnist_model_forward.1} parent=0 // loop_body
    %s16 = ssub.s32 %s11, 1
    %s17 = ssub.s32 %s11, 2
    %s18 = sadd.s32 %s11, 1
    %s19 = ssub.s32 %s11, %s18
    %p20 = scmp.eq.s32.totalorder %s19, 0
    %s22 = sadd.s32 %s21, 1
    %s23 = scalar_select %p20, %s21, %s22
    %p26 = pneg %p20
    %p27 = scmp.eq.s32.totalorder %s11, 1
    %p28 = por %p26, %p27
    %p29 = scmp.ne.s32.totalorder %s21, %s24
    %p30 = scmp.eq.s32.totalorder %s11, 0
    %p31 = por %p29, %p30
    %p32 = scmp.ne.s32.totalorder %s21, %s24
    %p33 = scmp.eq.s32.totalorder %s16, 1
    %p34 = por %p32, %p33
    %p35 = scmp.ne.s32.totalorder %s24, %s25
    %p36 = scmp.eq.s32.totalorder %s16, 0
    %p37 = por %p35, %p36
    %p38 = scmp.ne.s32.totalorder %s24, %s25
    %p39 = scmp.eq.s32.totalorder %s17, 1
    %p40 = por %p38, %p39
    %p42 = scmp.ne.s32.totalorder %s25, %s41
    %p43 = scmp.eq.s32.totalorder %s17, 0
    %p44 = por %p42, %p43
    %s46 = sadd.s32 %s45, 1
    %p49 = scmp.eq.s32.totalorder %s11, 1
    %p50 = scmp.ne.s32.totalorder %s45, %s47
    %p51 = scmp.eq.s32.totalorder %s11, 0
    %p52 = por %p50, %p51
    %p53 = scmp.ne.s32.totalorder %s45, %s47
    %p54 = scmp.eq.s32.totalorder %s16, 1
    %p55 = por %p53, %p54
    %p56 = scmp.ne.s32.totalorder %s47, %s48
    %p57 = scmp.eq.s32.totalorder %s16, 0
    %p58 = por %p56, %p57
    %p59 = scmp.ne.s32.totalorder %s47, %s48
    %p60 = scmp.eq.s32.totalorder %s17, 1
    %p61 = por %p59, %p60
    %p63 = scmp.ne.s32.totalorder %s48, %s62
    %p64 = scmp.eq.s32.totalorder %s17, 0
    %p65 = por %p63, %p64
    %s67 = sadd.s32 %s66, 1
    %p70 = scmp.eq.s32.totalorder %s11, 1
    %p71 = scmp.ne.s32.totalorder %s66, %s68
    %p72 = scmp.eq.s32.totalorder %s11, 0
    %p73 = por %p71, %p72
    %p74 = scmp.ne.s32.totalorder %s66, %s68
    %p75 = scmp.eq.s32.totalorder %s16, 1
    %p76 = por %p74, %p75
    %p77 = scmp.ne.s32.totalorder %s68, %s69
    %p78 = scmp.eq.s32.totalorder %s16, 0
    %p79 = por %p77, %p78
    %p80 = scmp.ne.s32.totalorder %s68, %s69
    %p81 = scmp.eq.s32.totalorder %s17, 1
    %p82 = por %p80, %p81
    %p84 = scmp.ne.s32.totalorder %s69, %s83
    %p85 = scmp.eq.s32.totalorder %s17, 0
    %p86 = por %p84, %p85
    %s88 = sadd.s32 %s87, 1
    %p91 = scmp.eq.s32.totalorder %s11, 1
    %p92 = scmp.ne.s32.totalorder %s87, %s89
    %p93 = scmp.eq.s32.totalorder %s11, 0
    %p94 = por %p92, %p93
    %p95 = scmp.ne.s32.totalorder %s87, %s89
    %p96 = scmp.eq.s32.totalorder %s16, 1
    %p97 = por %p95, %p96
    %p98 = scmp.ne.s32.totalorder %s89, %s90
    %p99 = scmp.eq.s32.totalorder %s16, 0
    %p100 = por %p98, %p99
    %p101 = scmp.ne.s32.totalorder %s89, %s90
    %p102 = scmp.eq.s32.totalorder %s17, 1
    %p103 = por %p101, %p102
    %p105 = scmp.ne.s32.totalorder %s90, %s104
    %p106 = scmp.eq.s32.totalorder %s17, 0
    %p107 = por %p105, %p106
    %s109 = sadd.s32 %s108, 1
    %p112 = scmp.eq.s32.totalorder %s11, 1
    %p113 = scmp.ne.s32.totalorder %s108, %s110
    %p114 = scmp.eq.s32.totalorder %s11, 0
    %p115 = por %p113, %p114
    %p116 = scmp.ne.s32.totalorder %s108, %s110
    %p117 = scmp.eq.s32.totalorder %s16, 1
    %p118 = por %p116, %p117
    %p119 = scmp.ne.s32.totalorder %s110, %s111
    %p120 = scmp.eq.s32.totalorder %s16, 0
    %p121 = por %p119, %p120
    %p122 = scmp.ne.s32.totalorder %s110, %s111
    %p123 = scmp.eq.s32.totalorder %s17, 1
    %p124 = por %p122, %p123
    %p126 = scmp.ne.s32.totalorder %s111, %s125
    %p127 = scmp.eq.s32.totalorder %s17, 0
    %p128 = por %p126, %p127
    %s129 = ssub.s32 %s11, %s18
    %p130 = scmp.eq.s32.totalorder %s129, 0
    %s132 = sadd.s32 %s131, 1
    %s133 = scalar_select %p130, %s131, %s132
    %p136 = pneg %p130
    %p137 = scmp.eq.s32.totalorder %s11, 1
    %p138 = por %p136, %p137
    %p139 = scmp.ne.s32.totalorder %s131, %s134
    %p140 = scmp.eq.s32.totalorder %s11, 0
    %p141 = por %p139, %p140
    %p142 = scmp.ne.s32.totalorder %s131, %s134
    %p143 = scmp.eq.s32.totalorder %s16, 1
    %p144 = por %p142, %p143
    %p145 = scmp.ne.s32.totalorder %s134, %s135
    %p146 = scmp.eq.s32.totalorder %s16, 0
    %p147 = por %p145, %p146
    %p148 = scmp.ne.s32.totalorder %s134, %s135
    %p149 = scmp.eq.s32.totalorder %s17, 1
    %p150 = por %p148, %p149
    %p152 = scmp.ne.s32.totalorder %s135, %s151
    %p153 = scmp.eq.s32.totalorder %s17, 0
    %p154 = por %p152, %p153
    %p155 = scmp.le.s32.totalorder 1, %s11
    %p156 = scmp.lt.s32.totalorder %s11, 3
    %p157 = pnand %p155, %p156
    %p158 = pneg %p157
    // Predicated region
    $region9: #{mnist_model_forward.1} parent=5 // pred_check
      _
    $region10: #{mnist_model_forward.1} parent=5 // pred_check_branch
      %160 = sbr.rel (%p157) target = $region12
    $region11: #{mnist_model_forward.1} parent=5 // pred_region
      %s161 = ssub.s32 %s11, 1
      // Predicated region
      $region13: #{mnist_model_forward.1} parent=11 // pred_check
        %p162 = pneg %p58
      $region14: #{mnist_model_forward.1} parent=11 // pred_check_branch
        %164 = sbr.rel (%p162) target = $region16
      $region15: #{mnist_model_forward.1} parent=11 // pred_region
        _
      $region16: #{mnist_model_forward.1} parent=11 // pred_fallthru
        _
      // Predicated region
      $region17: #{mnist_model_forward.1} parent=11 // pred_check
        %p165 = pneg %p79
      $region18: #{mnist_model_forward.1} parent=11 // pred_check_branch
        %167 = sbr.rel (%p165) target = $region20
      $region19: #{mnist_model_forward.1} parent=11 // pred_region
        _
      $region20: #{mnist_model_forward.1} parent=11 // pred_fallthru
        _
      // Predicated region
      $region21: #{mnist_model_forward.1} parent=11 // pred_check
        %p168 = pneg %p100
      $region22: #{mnist_model_forward.1} parent=11 // pred_check_branch
        %170 = sbr.rel (%p168) target = $region24
      $region23: #{mnist_model_forward.1} parent=11 // pred_region
        _
      $region24: #{mnist_model_forward.1} parent=11 // pred_fallthru
        _
      // Predicated region
      $region25: #{mnist_model_forward.1} parent=11 // pred_check
        %p171 = pneg %p121
      $region26: #{mnist_model_forward.1} parent=11 // pred_check_branch
        %173 = sbr.rel (%p171) target = $region28
      $region27: #{mnist_model_forward.1} parent=11 // pred_region
        _
      $region28: #{mnist_model_forward.1} parent=11 // pred_fallthru
        _
    $region12: #{mnist_model_forward.1} parent=5 // pred_fallthru
      _
    %p174 = scmp.lt.s32.totalorder %s11, 2
    // Predicated region
    $region29: #{mnist_model_forward.1} parent=5 // pred_check
      %p175 = pneg %p174
    $region30: #{mnist_model_forward.1} parent=5 // pred_check_branch
      %177 = sbr.rel (%p175) target = $region32
    $region31: #{mnist_model_forward.1} parent=5 // pred_region
      // Predicated region
      $region33: #{mnist_model_forward.1} parent=31 // pred_check
        %p178 = pneg %p31
      $region34: #{mnist_model_forward.1} parent=31 // pred_check_branch
        %180 = sbr.rel (%p178) target = $region36
      $region35: #{mnist_model_forward.1} parent=31 // pred_region
        %s181 = smul.u32 16, %s11
        %p182 = scmp.lt.s32.totalorder %s181, 31
        %s183 = scalar_select %p182, %s181, 31
        %s184 = smul.addr %s183, 7
        %s185 = smul.addr %s184, 8
        %s186 = scalar_lea.vmem %s0, %s185
        %s187 = smul.u32 16, %s11
      $region36: #{mnist_model_forward.1} parent=31 // pred_fallthru
        _
    $region32: #{mnist_model_forward.1} parent=5 // pred_fallthru
      _
    %p188 = scmp.le.s32.totalorder 1, %s11
    %p189 = scmp.lt.s32.totalorder %s11, 3
    %p190 = pnand %p188, %p189
    %p191 = pneg %p190
    // Predicated region
    $region37: #{mnist_model_forward.1} parent=5 // pred_check
      _
    $region38: #{mnist_model_forward.1} parent=5 // pred_check_branch
      %193 = sbr.rel (%p190) target = $region40
    $region39: #{mnist_model_forward.1} parent=5 // pred_region
      %s194 = ssub.s32 %s11, 1
      %s195 = smul.u32 16, %s16
      %p196 = scmp.lt.s32.totalorder %s195, 31
      %s197 = scalar_select %p196, %s195, 31
      %s198 = smul.addr %s197, 7
      %s199 = smul.addr %s198, 8
      %s200 = scalar_lea.vmem %s0, %s199
      %p201 = pneg %p37
      %p202 = pneg %p34
      %p203 = pneg %p58
      %p204 = pneg %p55
      %p205 = pneg %p79
      %p206 = pneg %p76
      %p207 = pneg %p100
      %p208 = pneg %p97
      %p209 = pneg %p121
      %p210 = pneg %p118
      %p211 = pneg %p147
      %p212 = pneg %p144
      %s213 = smul.u32 16, %s16
      %p214 = scmp.lt.s32.totalorder %s213, 31
      %s215 = scalar_select %p214, %s213, 31
      %s216 = smul.addr %s215, 8
      %s217 = scalar_lea.vmem %s5, %s216
      %s218 = smul.u32 16, %s16
      %p219 = scmp.lt.s32.totalorder %s218, 31
      %s220 = scalar_select %p219, %s218, 31
      %s221 = smul.addr %s220, 7
      %s222 = smul.addr %s221, 8
      %s223 = scalar_lea.vmem %s0, %s222
      %s224 = smul.u32 16, %s16
      %s225 = smul.u32 16, %s16
      %p226 = scmp.lt.s32.totalorder %s225, 31
      %s227 = scalar_select %p226, %s225, 31
      %s228 = smul.addr %s227, 8
      %s229 = scalar_lea.vmem %s5, %s228
      %s230 = smul.u32 16, %s16
      %v232 = vld [vmem:[%s223] sm:$0xff]
      %v233 = vld [vmem:[%s223 + $0x8] sm:$0xff]
      %v234 = vld [vmem:[%s223 + $0x10] sm:$0xff]
      %v235 = vld [vmem:[%s223 + $0x18] sm:$0xff]
      %v236 = vld [vmem:[%s223 + $0x20] sm:$0xff]
      %v237 = vld [vmem:[%s223 + $0x28] sm:$0xff]
      %v238 = vld [vmem:[%s223 + $0x30] sm:$0xff]
      %v239 = vld [vmem:[%s223 + $0x38] sm:$0xff]
      %v240 = vld [vmem:[%s223 + $0x40] sm:$0xff]
      %v241 = vld [vmem:[%s223 + $0x48] sm:$0xff]
      %v242 = vld [vmem:[%s223 + $0x50] sm:$0xff]
      %v243 = vld [vmem:[%s223 + $0x58] sm:$0xff]
      %v244 = vld [vmem:[%s223 + $0x60] sm:$0xff]
      %v245 = vld [vmem:[%s223 + $0x68] sm:$0xff]
      %v246 = vld [vmem:[%s223 + $0x70] sm:$0xff]
      %v247 = vld [vmem:[%s223 + $0x78] sm:$0xff]
      %v248 = vld [vmem:[%s223 + $0x80] sm:$0xff]
      %v249 = vld [vmem:[%s223 + $0x88] sm:$0xff]
      %v250 = vld [vmem:[%s223 + $0x90] sm:$0xff]
      %v251 = vld [vmem:[%s223 + $0x98] sm:$0xff]
      %v252 = vld [vmem:[%s223 + $0xa0] sm:$0xff]
      %v253 = vld [vmem:[%s223 + $0xa8] sm:$0xff]
      %v254 = vld [vmem:[%s223 + $0xb0] sm:$0xff]
      %v255 = vld [vmem:[%s223 + $0xb8] sm:$0xff]
      %v256 = vld [vmem:[%s223 + $0xc0] sm:$0xff]
      %v257 = vld [vmem:[%s223 + $0xc8] sm:$0xff]
      %v258 = vld [vmem:[%s223 + $0xd0] sm:$0xff]
      %v259 = vld [vmem:[%s223 + $0xd8] sm:$0xff]
      %v260 = vld [vmem:[%s223 + $0xe0] sm:$0xff]
      %v261 = vld [vmem:[%s223 + $0xe8] sm:$0xff]
      %v262 = vld [vmem:[%s223 + $0xf0] sm:$0xff]
      %v263 = vld [vmem:[%s223 + $0xf8] sm:$0xff]
      %v264 = vld [vmem:[%s223 + $0x100] sm:$0xff]
      %v265 = vld [vmem:[%s223 + $0x108] sm:$0xff]
      %v266 = vld [vmem:[%s223 + $0x110] sm:$0xff]
      %v267 = vld [vmem:[%s223 + $0x118] sm:$0xff]
      %v268 = vld [vmem:[%s223 + $0x120] sm:$0xff]
      %v269 = vld [vmem:[%s223 + $0x128] sm:$0xff]
      %v270 = vld [vmem:[%s223 + $0x130] sm:$0xff]
      %v271 = vld [vmem:[%s223 + $0x138] sm:$0xff]
      %v272 = vld [vmem:[%s223 + $0x140] sm:$0xff]
      %v273 = vld [vmem:[%s223 + $0x148] sm:$0xff]
      %v274 = vld [vmem:[%s223 + $0x150] sm:$0xff]
      %v275 = vld [vmem:[%s223 + $0x158] sm:$0xff]
      %v276 = vld [vmem:[%s223 + $0x160] sm:$0xff]
      %v277 = vld [vmem:[%s223 + $0x168] sm:$0xff]
      %v278 = vld [vmem:[%s223 + $0x170] sm:$0xff]
      %v279 = vld [vmem:[%s223 + $0x178] sm:$0xff]
      %v280 = vld [vmem:[%s223 + $0x180] sm:$0xff]
      %v281 = vld [vmem:[%s223 + $0x188] sm:$0xff]
      %v282 = vld [vmem:[%s223 + $0x190] sm:$0xff]
      %v283 = vld [vmem:[%s223 + $0x198] sm:$0xff]
      %v284 = vld [vmem:[%s223 + $0x1a0] sm:$0xff]
      %v285 = vld [vmem:[%s223 + $0x1a8] sm:$0xff]
      %v286 = vld [vmem:[%s223 + $0x1b0] sm:$0xff]
      %v287 = vld [vmem:[%s223 + $0x1b8] sm:$0xff]
      %v288 = vld [vmem:[%s223 + $0x1c0] sm:$0xff]
      %v289 = vld [vmem:[%s223 + $0x1c8] sm:$0xff]
      %v290 = vld [vmem:[%s223 + $0x1d0] sm:$0xff]
      %v291 = vld [vmem:[%s223 + $0x1d8] sm:$0xff]
      %v292 = vld [vmem:[%s223 + $0x1e0] sm:$0xff]
      %v293 = vld [vmem:[%s223 + $0x1e8] sm:$0xff]
      %v294 = vld [vmem:[%s223 + $0x1f0] sm:$0xff]
      %v295 = vld [vmem:[%s223 + $0x1f8] sm:$0xff]
      %v296 = vld [vmem:[%s223 + $0x200] sm:$0xff]
      %v297 = vld [vmem:[%s223 + $0x208] sm:$0xff]
      %v298 = vld [vmem:[%s223 + $0x210] sm:$0xff]
      %v299 = vld [vmem:[%s223 + $0x218] sm:$0xff]
      %v300 = vld [vmem:[%s223 + $0x220] sm:$0xff]
      %v301 = vld [vmem:[%s223 + $0x228] sm:$0xff]
      %v302 = vld [vmem:[%s223 + $0x230] sm:$0xff]
      %v303 = vld [vmem:[%s223 + $0x238] sm:$0xff]
      %v304 = vld [vmem:[%s223 + $0x240] sm:$0xff]
      %v305 = vld [vmem:[%s223 + $0x248] sm:$0xff]
      %v306 = vld [vmem:[%s223 + $0x250] sm:$0xff]
      %v307 = vld [vmem:[%s223 + $0x258] sm:$0xff]
      %v308 = vld [vmem:[%s223 + $0x260] sm:$0xff]
      %v309 = vld [vmem:[%s223 + $0x268] sm:$0xff]
      %v310 = vld [vmem:[%s223 + $0x270] sm:$0xff]
      %v311 = vld [vmem:[%s223 + $0x278] sm:$0xff]
      %v312 = vld [vmem:[%s223 + $0x280] sm:$0xff]
      %v313 = vld [vmem:[%s223 + $0x288] sm:$0xff]
      %v314 = vld [vmem:[%s223 + $0x290] sm:$0xff]
      %v315 = vld [vmem:[%s223 + $0x298] sm:$0xff]
      %v316 = vld [vmem:[%s223 + $0x2a0] sm:$0xff]
      %v317 = vld [vmem:[%s223 + $0x2a8] sm:$0xff]
      %v318 = vld [vmem:[%s223 + $0x2b0] sm:$0xff]
      %v319 = vld [vmem:[%s223 + $0x2b8] sm:$0xff]
      %v320 = vld [vmem:[%s223 + $0x2c0] sm:$0xff]
      %v321 = vld [vmem:[%s223 + $0x2c8] sm:$0xff]
      %v322 = vld [vmem:[%s223 + $0x2d0] sm:$0xff]
      %v323 = vld [vmem:[%s223 + $0x2d8] sm:$0xff]
      %v324 = vld [vmem:[%s223 + $0x2e0] sm:$0xff]
      %v325 = vld [vmem:[%s223 + $0x2e8] sm:$0xff]
      %v326 = vld [vmem:[%s223 + $0x2f0] sm:$0xff]
      %v327 = vld [vmem:[%s223 + $0x2f8] sm:$0xff]
      %v328 = vld [vmem:[%s223 + $0x300] sm:$0xff]
      %v329 = vld [vmem:[%s223 + $0x308] sm:$0xff]
      %v330 = vld [vmem:[%s223 + $0x310] sm:$0xff]
      %v331 = vld [vmem:[%s223 + $0x318] sm:$0xff]
      %v332 = vld [vmem:[%s223 + $0x320] sm:$0xff]
      %v333 = vld [vmem:[%s223 + $0x328] sm:$0xff]
      %v334 = vld [vmem:[%s223 + $0x330] sm:$0xff]
      %v335 = vld [vmem:[%s223 + $0x338] sm:$0xff]
      %v336 = vld [vmem:[%s223 + $0x340] sm:$0xff]
      %v337 = vld [vmem:[%s223 + $0x348] sm:$0xff]
      %v338 = vld [vmem:[%s223 + $0x350] sm:$0xff]
      %v339 = vld [vmem:[%s223 + $0x358] sm:$0xff]
      %v340 = vld [vmem:[%s223 + $0x360] sm:$0xff]
      %v341 = vld [vmem:[%s223 + $0x368] sm:$0xff]
      %v342 = vld [vmem:[%s223 + $0x370] sm:$0xff]
      %v343 = vld [vmem:[%s223 + $0x378] sm:$0xff]
      %v344 = vpack.c.bf16 %v239, %v232
      %v345 = vpack.c.bf16 %v240, %v233
      %v346 = vpack.c.bf16 %v241, %v234
      %v347 = vpack.c.bf16 %v242, %v235
      %v348 = vpack.c.bf16 %v243, %v236
      %v349 = vpack.c.bf16 %v244, %v237
      %v350 = vpack.c.bf16 %v245, %v238
      %v351 = vpack.c.bf16 %v253, %v246
      %v352 = vpack.c.bf16 %v254, %v247
      %v353 = vpack.c.bf16 %v255, %v248
      %v354 = vpack.c.bf16 %v256, %v249
      %v355 = vpack.c.bf16 %v257, %v250
      %v356 = vpack.c.bf16 %v258, %v251
      %v357 = vpack.c.bf16 %v259, %v252
      %v358 = vpack.c.bf16 %v267, %v260
      %v359 = vpack.c.bf16 %v268, %v261
      %v360 = vpack.c.bf16 %v269, %v262
      %v361 = vpack.c.bf16 %v270, %v263
      %v362 = vpack.c.bf16 %v271, %v264
      %v363 = vpack.c.bf16 %v272, %v265
      %v364 = vpack.c.bf16 %v273, %v266
      %v365 = vpack.c.bf16 %v281, %v274
      %v366 = vpack.c.bf16 %v282, %v275
      %v367 = vpack.c.bf16 %v283, %v276
      %v368 = vpack.c.bf16 %v284, %v277
      %v369 = vpack.c.bf16 %v285, %v278
      %v370 = vpack.c.bf16 %v286, %v279
      %v371 = vpack.c.bf16 %v287, %v280
      %v372 = vpack.c.bf16 %v295, %v288
      %v373 = vpack.c.bf16 %v296, %v289
      %v374 = vpack.c.bf16 %v297, %v290
      %v375 = vpack.c.bf16 %v298, %v291
      %v376 = vpack.c.bf16 %v299, %v292
      %v377 = vpack.c.bf16 %v300, %v293
      %v378 = vpack.c.bf16 %v301, %v294
      %v379 = vpack.c.bf16 %v309, %v302
      %v380 = vpack.c.bf16 %v310, %v303
      %v381 = vpack.c.bf16 %v311, %v304
      %v382 = vpack.c.bf16 %v312, %v305
      %v383 = vpack.c.bf16 %v313, %v306
      %v384 = vpack.c.bf16 %v314, %v307
      %v385 = vpack.c.bf16 %v315, %v308
      %v386 = vpack.c.bf16 %v323, %v316
      %v387 = vpack.c.bf16 %v324, %v317
      %v388 = vpack.c.bf16 %v325, %v318
      %v389 = vpack.c.bf16 %v326, %v319
      %v390 = vpack.c.bf16 %v327, %v320
      %v391 = vpack.c.bf16 %v328, %v321
      %v392 = vpack.c.bf16 %v329, %v322
      %v393 = vpack.c.bf16 %v337, %v330
      %v394 = vpack.c.bf16 %v338, %v331
      %v395 = vpack.c.bf16 %v339, %v332
      %v396 = vpack.c.bf16 %v340, %v333
      %v397 = vpack.c.bf16 %v341, %v334
      %v398 = vpack.c.bf16 %v342, %v335
      %v399 = vpack.c.bf16 %v343, %v336
      %v400 = vld [vmem:[%s1] sm:$0xff]
      %v401 = vld [vmem:[%s1 + $0x8] sm:$0xff]
      %v402 = vld [vmem:[%s1 + $0x10] sm:$0xff]
      %v403 = vld [vmem:[%s1 + $0x18] sm:$0xff]
      %v404 = vld [vmem:[%s1 + $0x20] sm:$0xff]
      %v405 = vld [vmem:[%s1 + $0x28] sm:$0xff]
      %v406 = vld [vmem:[%s1 + $0x30] sm:$0xff]
      %v407 = vld [vmem:[%s1 + $0x38] sm:$0xff]
      %v408 = vld [vmem:[%s1 + $0x40] sm:$0xff]
      %v409 = vld [vmem:[%s1 + $0x48] sm:$0xff]
      %v410 = vld [vmem:[%s1 + $0x50] sm:$0xff]
      %v411 = vld [vmem:[%s1 + $0x58] sm:$0xff]
      %v412 = vld [vmem:[%s1 + $0x60] sm:$0xff]
      %v413 = vld [vmem:[%s1 + $0x68] sm:$0xff]
      %v414 = vld [vmem:[%s1 + $0x70] sm:$0xff]
      %v415 = vld [vmem:[%s1 + $0x78] sm:$0xff]
      %v416 = vld [vmem:[%s1 + $0x80] sm:$0xff]
      %v417 = vld [vmem:[%s1 + $0x88] sm:$0xff]
      %v418 = vld [vmem:[%s1 + $0x90] sm:$0xff]
      %v419 = vld [vmem:[%s1 + $0x98] sm:$0xff]
      %v420 = vld [vmem:[%s1 + $0xa0] sm:$0xff]
      %v421 = vld [vmem:[%s1 + $0xa8] sm:$0xff]
      %v422 = vld [vmem:[%s1 + $0xb0] sm:$0xff]
      %v423 = vld [vmem:[%s1 + $0xb8] sm:$0xff]
      %v424 = vld [vmem:[%s1 + $0xc0] sm:$0xff]
      %v425 = vld [vmem:[%s1 + $0xc8] sm:$0xff]
      %v426 = vld [vmem:[%s1 + $0xd0] sm:$0xff]
      %v427 = vld [vmem:[%s1 + $0xd8] sm:$0xff]
      %v428 = vld [vmem:[%s1 + $0xe0] sm:$0xff]
      %v429 = vld [vmem:[%s1 + $0xe8] sm:$0xff]
      %v430 = vld [vmem:[%s1 + $0xf0] sm:$0xff]
      %v431 = vld [vmem:[%s1 + $0xf8] sm:$0xff]
      %v432 = vld [vmem:[%s1 + $0x100] sm:$0xff]
      %v433 = vld [vmem:[%s1 + $0x108] sm:$0xff]
      %v434 = vld [vmem:[%s1 + $0x110] sm:$0xff]
      %v435 = vld [vmem:[%s1 + $0x118] sm:$0xff]
      %v436 = vld [vmem:[%s1 + $0x120] sm:$0xff]
      %v437 = vld [vmem:[%s1 + $0x128] sm:$0xff]
      %v438 = vld [vmem:[%s1 + $0x130] sm:$0xff]
      %v439 = vld [vmem:[%s1 + $0x138] sm:$0xff]
      %v440 = vld [vmem:[%s1 + $0x140] sm:$0xff]
      %v441 = vld [vmem:[%s1 + $0x148] sm:$0xff]
      %v442 = vld [vmem:[%s1 + $0x150] sm:$0xff]
      %v443 = vld [vmem:[%s1 + $0x158] sm:$0xff]
      %v444 = vld [vmem:[%s1 + $0x160] sm:$0xff]
      %v445 = vld [vmem:[%s1 + $0x168] sm:$0xff]
      %v446 = vld [vmem:[%s1 + $0x170] sm:$0xff]
      %v447 = vld [vmem:[%s1 + $0x178] sm:$0xff]
      %v448 = vld [vmem:[%s1 + $0x180] sm:$0xff]
      %v449 = vld [vmem:[%s1 + $0x188] sm:$0xff]
      %v450 = vld [vmem:[%s1 + $0x190] sm:$0xff]
      %v451 = vld [vmem:[%s1 + $0x198] sm:$0xff]
      %v452 = vld [vmem:[%s1 + $0x1a0] sm:$0xff]
      %v453 = vld [vmem:[%s1 + $0x1a8] sm:$0xff]
      %v454 = vld [vmem:[%s1 + $0x1b0] sm:$0xff]
      %v455 = vld [vmem:[%s1 + $0x1b8] sm:$0xff]
      %v456 = vld [vmem:[%s1 + $0x1c0] sm:$0xff]
      %v457 = vld [vmem:[%s1 + $0x1c8] sm:$0xff]
      %v458 = vld [vmem:[%s1 + $0x1d0] sm:$0xff]
      %v459 = vld [vmem:[%s1 + $0x1d8] sm:$0xff]
      %v460 = vld [vmem:[%s1 + $0x1e0] sm:$0xff]
      %v461 = vld [vmem:[%s1 + $0x1e8] sm:$0xff]
      %v462 = vld [vmem:[%s1 + $0x1f0] sm:$0xff]
      %v463 = vld [vmem:[%s1 + $0x1f8] sm:$0xff]
      %v464 = vld [vmem:[%s1 + $0x200] sm:$0xff]
      %v465 = vld [vmem:[%s1 + $0x208] sm:$0xff]
      %v466 = vld [vmem:[%s1 + $0x210] sm:$0xff]
      %v467 = vld [vmem:[%s1 + $0x218] sm:$0xff]
      %v468 = vld [vmem:[%s1 + $0x220] sm:$0xff]
      %v469 = vld [vmem:[%s1 + $0x228] sm:$0xff]
      %v470 = vld [vmem:[%s1 + $0x230] sm:$0xff]
      %v471 = vld [vmem:[%s1 + $0x238] sm:$0xff]
      %v472 = vld [vmem:[%s1 + $0x240] sm:$0xff]
      %v473 = vld [vmem:[%s1 + $0x248] sm:$0xff]
      %v474 = vld [vmem:[%s1 + $0x250] sm:$0xff]
      %v475 = vld [vmem:[%s1 + $0x258] sm:$0xff]
      %v476 = vld [vmem:[%s1 + $0x260] sm:$0xff]
      %v477 = vld [vmem:[%s1 + $0x268] sm:$0xff]
      %v478 = vld [vmem:[%s1 + $0x270] sm:$0xff]
      %v479 = vld [vmem:[%s1 + $0x278] sm:$0xff]
      %v480 = vld [vmem:[%s1 + $0x280] sm:$0xff]
      %v481 = vld [vmem:[%s1 + $0x288] sm:$0xff]
      %v482 = vld [vmem:[%s1 + $0x290] sm:$0xff]
      %v483 = vld [vmem:[%s1 + $0x298] sm:$0xff]
      %v484 = vld [vmem:[%s1 + $0x2a0] sm:$0xff]
      %v485 = vld [vmem:[%s1 + $0x2a8] sm:$0xff]
      %v486 = vld [vmem:[%s1 + $0x2b0] sm:$0xff]
      %v487 = vld [vmem:[%s1 + $0x2b8] sm:$0xff]
      %v488 = vld [vmem:[%s1 + $0x2c0] sm:$0xff]
      %v489 = vld [vmem:[%s1 + $0x2c8] sm:$0xff]
      %v490 = vld [vmem:[%s1 + $0x2d0] sm:$0xff]
      %v491 = vld [vmem:[%s1 + $0x2d8] sm:$0xff]
      %v492 = vld [vmem:[%s1 + $0x2e0] sm:$0xff]
      %v493 = vld [vmem:[%s1 + $0x2e8] sm:$0xff]
      %v494 = vld [vmem:[%s1 + $0x2f0] sm:$0xff]
      %v495 = vld [vmem:[%s1 + $0x2f8] sm:$0xff]
      %v496 = vld [vmem:[%s1 + $0x300] sm:$0xff]
      %v497 = vld [vmem:[%s1 + $0x308] sm:$0xff]
      %v498 = vld [vmem:[%s2] sm:$0x3]
      %v500 = vlaneseq
      %v501 = vshrl.u32 %v500, 7
      %v502 = vsub.s32 0, %v501
      %v503 = vrot.slane %v498, %v502
      %v504 = vlaneseq
      %v505 = vshrl.u32 %v504, 7
      %v506 = vsub.s32 1, %v505
      %v507 = vrot.slane %v498, %v506
      %v608 = vunpack.c.l.b16 %v400
      %v609 = vunpack.c.h.b16 %v400
      %v610 = vunpack.c.l.b16 %v401
      %v611 = vunpack.c.h.b16 %v401
      %v612 = vunpack.c.l.b16 %v402
      %v613 = vunpack.c.h.b16 %v402
      %v614 = vunpack.c.l.b16 %v403
      %v615 = vunpack.c.h.b16 %v403
      %v616 = vunpack.c.l.b16 %v404
      %v617 = vunpack.c.h.b16 %v404
      %v618 = vunpack.c.l.b16 %v405
      %v619 = vunpack.c.h.b16 %v405
      %v620 = vunpack.c.l.b16 %v406
      %v621 = vunpack.c.h.b16 %v406
      %v622 = vunpack.c.l.b16 %v407
      %v623 = vunpack.c.h.b16 %v407
      %v624 = vunpack.c.l.b16 %v408
      %v625 = vunpack.c.h.b16 %v408
      %v626 = vunpack.c.l.b16 %v409
      %v627 = vunpack.c.h.b16 %v409
      %v628 = vunpack.c.l.b16 %v410
      %v629 = vunpack.c.h.b16 %v410
      %v630 = vunpack.c.l.b16 %v411
      %v631 = vunpack.c.h.b16 %v411
      %v632 = vunpack.c.l.b16 %v412
      %v633 = vunpack.c.h.b16 %v412
      %v634 = vunpack.c.l.b16 %v413
      %v635 = vunpack.c.h.b16 %v413
      %v636 = vunpack.c.l.b16 %v414
      %v637 = vunpack.c.h.b16 %v414
      %v638 = vunpack.c.l.b16 %v415
      %v639 = vunpack.c.h.b16 %v415
      %v640 = vunpack.c.l.b16 %v416
      %v641 = vunpack.c.h.b16 %v416
      %v642 = vunpack.c.l.b16 %v417
      %v643 = vunpack.c.h.b16 %v417
      %v644 = vunpack.c.l.b16 %v418
      %v645 = vunpack.c.h.b16 %v418
      %v646 = vunpack.c.l.b16 %v419
      %v647 = vunpack.c.h.b16 %v419
      %v648 = vunpack.c.l.b16 %v420
      %v649 = vunpack.c.h.b16 %v420
      %v650 = vunpack.c.l.b16 %v421
      %v651 = vunpack.c.h.b16 %v421
      %v652 = vunpack.c.l.b16 %v422
      %v653 = vunpack.c.h.b16 %v422
      %v654 = vunpack.c.l.b16 %v423
      %v655 = vunpack.c.h.b16 %v423
      %v656 = vunpack.c.l.b16 %v424
      %v657 = vunpack.c.h.b16 %v424
      %v658 = vunpack.c.l.b16 %v425
      %v659 = vunpack.c.h.b16 %v425
      %v660 = vunpack.c.l.b16 %v426
      %v661 = vunpack.c.h.b16 %v426
      %v662 = vunpack.c.l.b16 %v427
      %v663 = vunpack.c.h.b16 %v427
      %v664 = vunpack.c.l.b16 %v428
      %v665 = vunpack.c.h.b16 %v428
      %v666 = vunpack.c.l.b16 %v429
      %v667 = vunpack.c.h.b16 %v429
      %v668 = vunpack.c.l.b16 %v430
      %v669 = vunpack.c.h.b16 %v430
      %v670 = vunpack.c.l.b16 %v431
      %v671 = vunpack.c.h.b16 %v431
      %v672 = vunpack.c.l.b16 %v432
      %v673 = vunpack.c.h.b16 %v432
      %v674 = vunpack.c.l.b16 %v433
      %v675 = vunpack.c.h.b16 %v433
      %v676 = vunpack.c.l.b16 %v434
      %v677 = vunpack.c.h.b16 %v434
      %v678 = vunpack.c.l.b16 %v435
      %v679 = vunpack.c.h.b16 %v435
      %v680 = vunpack.c.l.b16 %v436
      %v681 = vunpack.c.h.b16 %v436
      %v682 = vunpack.c.l.b16 %v437
      %v683 = vunpack.c.h.b16 %v437
      %v684 = vunpack.c.l.b16 %v438
      %v685 = vunpack.c.h.b16 %v438
      %v686 = vunpack.c.l.b16 %v439
      %v687 = vunpack.c.h.b16 %v439
      %v688 = vunpack.c.l.b16 %v440
      %v689 = vunpack.c.h.b16 %v440
      %v690 = vunpack.c.l.b16 %v441
      %v691 = vunpack.c.h.b16 %v441
      %v692 = vunpack.c.l.b16 %v442
      %v693 = vunpack.c.h.b16 %v442
      %v694 = vunpack.c.l.b16 %v443
      %v695 = vunpack.c.h.b16 %v443
      %v696 = vunpack.c.l.b16 %v444
      %v697 = vunpack.c.h.b16 %v444
      %v698 = vunpack.c.l.b16 %v445
      %v699 = vunpack.c.h.b16 %v445
      %v700 = vunpack.c.l.b16 %v446
      %v701 = vunpack.c.h.b16 %v446
      %v702 = vunpack.c.l.b16 %v447
      %v703 = vunpack.c.h.b16 %v447
      %v704 = vunpack.c.l.b16 %v448
      %v705 = vunpack.c.h.b16 %v448
      %v706 = vunpack.c.l.b16 %v449
      %v707 = vunpack.c.h.b16 %v449
      %v708 = vunpack.c.l.b16 %v450
      %v709 = vunpack.c.h.b16 %v450
      %v710 = vunpack.c.l.b16 %v451
      %v711 = vunpack.c.h.b16 %v451
      %v712 = vunpack.c.l.b16 %v452
      %v713 = vunpack.c.h.b16 %v452
      %v714 = vunpack.c.l.b16 %v453
      %v715 = vunpack.c.h.b16 %v453
      %v716 = vunpack.c.l.b16 %v454
      %v717 = vunpack.c.h.b16 %v454
      %v718 = vunpack.c.l.b16 %v455
      %v719 = vunpack.c.h.b16 %v455
      %v720 = vunpack.c.l.b16 %v456
      %v721 = vunpack.c.h.b16 %v456
      %v722 = vunpack.c.l.b16 %v457
      %v723 = vunpack.c.h.b16 %v457
      %v724 = vunpack.c.l.b16 %v458
      %v725 = vunpack.c.h.b16 %v458
      %v726 = vunpack.c.l.b16 %v459
      %v727 = vunpack.c.h.b16 %v459
      %v728 = vunpack.c.l.b16 %v460
      %v729 = vunpack.c.h.b16 %v460
      %v730 = vunpack.c.l.b16 %v461
      %v731 = vunpack.c.h.b16 %v461
      %v732 = vunpack.c.l.b16 %v462
      %v733 = vunpack.c.h.b16 %v462
      %v734 = vunpack.c.l.b16 %v463
      %v735 = vunpack.c.h.b16 %v463
      %v736 = vunpack.c.l.b16 %v464
      %v737 = vunpack.c.h.b16 %v464
      %v738 = vunpack.c.l.b16 %v465
      %v739 = vunpack.c.h.b16 %v465
      %v740 = vunpack.c.l.b16 %v466
      %v741 = vunpack.c.h.b16 %v466
      %v742 = vunpack.c.l.b16 %v467
      %v743 = vunpack.c.h.b16 %v467
      %v744 = vunpack.c.l.b16 %v468
      %v745 = vunpack.c.h.b16 %v468
      %v746 = vunpack.c.l.b16 %v469
      %v747 = vunpack.c.h.b16 %v469
      %v748 = vunpack.c.l.b16 %v470
      %v749 = vunpack.c.h.b16 %v470
      %v750 = vunpack.c.l.b16 %v471
      %v751 = vunpack.c.h.b16 %v471
      %v752 = vunpack.c.l.b16 %v472
      %v753 = vunpack.c.h.b16 %v472
      %v754 = vunpack.c.l.b16 %v473
      %v755 = vunpack.c.h.b16 %v473
      %v756 = vunpack.c.l.b16 %v474
      %v757 = vunpack.c.h.b16 %v474
      %v758 = vunpack.c.l.b16 %v475
      %v759 = vunpack.c.h.b16 %v475
      %v760 = vunpack.c.l.b16 %v476
      %v761 = vunpack.c.h.b16 %v476
      %v762 = vunpack.c.l.b16 %v477
      %v763 = vunpack.c.h.b16 %v477
      %v764 = vunpack.c.l.b16 %v478
      %v765 = vunpack.c.h.b16 %v478
      %v766 = vunpack.c.l.b16 %v479
      %v767 = vunpack.c.h.b16 %v479
      %v768 = vunpack.c.l.b16 %v480
      %v769 = vunpack.c.h.b16 %v480
      %v770 = vunpack.c.l.b16 %v481
      %v771 = vunpack.c.h.b16 %v481
      %v772 = vunpack.c.l.b16 %v482
      %v773 = vunpack.c.h.b16 %v482
      %v774 = vunpack.c.l.b16 %v483
      %v775 = vunpack.c.h.b16 %v483
      %v776 = vunpack.c.l.b16 %v484
      %v777 = vunpack.c.h.b16 %v484
      %v778 = vunpack.c.l.b16 %v485
      %v779 = vunpack.c.h.b16 %v485
      %v780 = vunpack.c.l.b16 %v486
      %v781 = vunpack.c.h.b16 %v486
      %v782 = vunpack.c.l.b16 %v487
      %v783 = vunpack.c.h.b16 %v487
      %v784 = vunpack.c.l.b16 %v488
      %v785 = vunpack.c.h.b16 %v488
      %v786 = vunpack.c.l.b16 %v489
      %v787 = vunpack.c.h.b16 %v489
      %v788 = vunpack.c.l.b16 %v490
      %v789 = vunpack.c.h.b16 %v490
      %v790 = vunpack.c.l.b16 %v491
      %v791 = vunpack.c.h.b16 %v491
      %v792 = vunpack.c.l.b16 %v492
      %v793 = vunpack.c.h.b16 %v492
      %v794 = vunpack.c.l.b16 %v493
      %v795 = vunpack.c.h.b16 %v493
      %v796 = vunpack.c.l.b16 %v494
      %v797 = vunpack.c.h.b16 %v494
      %v798 = vunpack.c.l.b16 %v495
      %v799 = vunpack.c.h.b16 %v495
      %v800 = vunpack.c.l.b16 %v496
      %v801 = vunpack.c.h.b16 %v496
      %v802 = vunpack.c.l.b16 %v497
      %v803 = vunpack.c.h.b16 %v497
      %v804 = vpack.c.b16 %v610, %v608
      %v805 = vpack.c.b16 %v611, %v609
      %v806 = vpack.c.b16 %v614, %v612
      %v807 = vpack.c.b16 %v615, %v613
      %v808 = vpack.c.b16 %v618, %v616
      %v809 = vpack.c.b16 %v619, %v617
      %v810 = vpack.c.b16 %v622, %v620
      %v811 = vpack.c.b16 %v623, %v621
      %v812 = vpack.c.b16 %v626, %v624
      %v813 = vpack.c.b16 %v627, %v625
      %v814 = vpack.c.b16 %v630, %v628
      %v815 = vpack.c.b16 %v631, %v629
      %v816 = vpack.c.b16 %v634, %v632
      %v817 = vpack.c.b16 %v635, %v633
      %v818 = vpack.c.b16 %v638, %v636
      %v819 = vpack.c.b16 %v639, %v637
      %v820 = vpack.c.b16 %v642, %v640
      %v821 = vpack.c.b16 %v643, %v641
      %v822 = vpack.c.b16 %v646, %v644
      %v823 = vpack.c.b16 %v647, %v645
      %v824 = vpack.c.b16 %v650, %v648
      %v825 = vpack.c.b16 %v651, %v649
      %v826 = vpack.c.b16 %v654, %v652
      %v827 = vpack.c.b16 %v655, %v653
      %v828 = vpack.c.b16 %v658, %v656
      %v829 = vpack.c.b16 %v659, %v657
      %v830 = vpack.c.b16 %v662, %v660
      %v831 = vpack.c.b16 %v663, %v661
      %v832 = vpack.c.b16 %v666, %v664
      %v833 = vpack.c.b16 %v667, %v665
      %v834 = vpack.c.b16 %v670, %v668
      %v835 = vpack.c.b16 %v671, %v669
      %v836 = vpack.c.b16 %v674, %v672
      %v837 = vpack.c.b16 %v675, %v673
      %v838 = vpack.c.b16 %v678, %v676
      %v839 = vpack.c.b16 %v679, %v677
      %v840 = vpack.c.b16 %v682, %v680
      %v841 = vpack.c.b16 %v683, %v681
      %v842 = vpack.c.b16 %v686, %v684
      %v843 = vpack.c.b16 %v687, %v685
      %v844 = vpack.c.b16 %v690, %v688
      %v845 = vpack.c.b16 %v691, %v689
      %v846 = vpack.c.b16 %v694, %v692
      %v847 = vpack.c.b16 %v695, %v693
      %v848 = vpack.c.b16 %v698, %v696
      %v849 = vpack.c.b16 %v699, %v697
      %v850 = vpack.c.b16 %v702, %v700
      %v851 = vpack.c.b16 %v703, %v701
      %v852 = vpack.c.b16 %v706, %v704
      %v853 = vpack.c.b16 %v707, %v705
      %v854 = vpack.c.b16 %v710, %v708
      %v855 = vpack.c.b16 %v711, %v709
      %v856 = vpack.c.b16 %v714, %v712
      %v857 = vpack.c.b16 %v715, %v713
      %v858 = vpack.c.b16 %v718, %v716
      %v859 = vpack.c.b16 %v719, %v717
      %v860 = vpack.c.b16 %v722, %v720
      %v861 = vpack.c.b16 %v723, %v721
      %v862 = vpack.c.b16 %v726, %v724
      %v863 = vpack.c.b16 %v727, %v725
      %v864 = vpack.c.b16 %v730, %v728
      %v865 = vpack.c.b16 %v731, %v729
      %v866 = vpack.c.b16 %v734, %v732
      %v867 = vpack.c.b16 %v735, %v733
      %v868 = vpack.c.b16 %v738, %v736
      %v869 = vpack.c.b16 %v739, %v737
      %v870 = vpack.c.b16 %v742, %v740
      %v871 = vpack.c.b16 %v743, %v741
      %v872 = vpack.c.b16 %v746, %v744
      %v873 = vpack.c.b16 %v747, %v745
      %v874 = vpack.c.b16 %v750, %v748
      %v875 = vpack.c.b16 %v751, %v749
      %v876 = vpack.c.b16 %v754, %v752
      %v877 = vpack.c.b16 %v755, %v753
      %v878 = vpack.c.b16 %v758, %v756
      %v879 = vpack.c.b16 %v759, %v757
      %v880 = vpack.c.b16 %v762, %v760
      %v881 = vpack.c.b16 %v763, %v761
      %v882 = vpack.c.b16 %v766, %v764
      %v883 = vpack.c.b16 %v767, %v765
      %v884 = vpack.c.b16 %v770, %v768
      %v885 = vpack.c.b16 %v771, %v769
      %v886 = vpack.c.b16 %v774, %v772
      %v887 = vpack.c.b16 %v775, %v773
      %v888 = vpack.c.b16 %v778, %v776
      %v889 = vpack.c.b16 %v779, %v777
      %v890 = vpack.c.b16 %v782, %v780
      %v891 = vpack.c.b16 %v783, %v781
      %v892 = vpack.c.b16 %v786, %v784
      %v893 = vpack.c.b16 %v787, %v785
      %v894 = vpack.c.b16 %v790, %v788
      %v895 = vpack.c.b16 %v791, %v789
      %v896 = vpack.c.b16 %v794, %v792
      %v897 = vpack.c.b16 %v795, %v793
      %v898 = vpack.c.b16 %v798, %v796
      %v899 = vpack.c.b16 %v799, %v797
      %v900 = vpack.c.b16 %v802, %v800
      %v901 = vpack.c.b16 %v803, %v801
      %vm1000 = vcmask 130048
      %v1002 = vsel %vm1000, %v350, 0
      %v1005 = vsel %vm1000, %v357, 0
      %v1008 = vsel %vm1000, %v364, 0
      %v1011 = vsel %vm1000, %v371, 0
      %v1014 = vsel %vm1000, %v378, 0
      %v1017 = vsel %vm1000, %v385, 0
      %v1020 = vsel %vm1000, %v392, 0
      %v1023 = vsel %vm1000, %v399, 0
      %1025 = vmatprep.subr.bf16.mxu0 %v805
      %1026 = vmatpush1.bf16.msra.mxu0 %v804
      %1027 = vmatprep.subr.bf16.mxu0 %v807
      %1028 = vmatpush1.bf16.msra.mxu0 %v806
      %1029 = vmatprep.subr.bf16.mxu0 %v809
      %1030 = vmatpush1.bf16.msra.mxu0 %v808
      %1031 = vmatprep.subr.bf16.mxu0 %v811
      %1032 = vmatpush1.bf16.msra.mxu0 %v810
      %1033 = vmatprep.subr.bf16.mxu0 %v813
      %1034 = vmatpush1.bf16.msra.mxu0 %v812
      %1035 = vmatprep.subr.bf16.mxu0 %v815
      %1036 = vmatpush1.bf16.msra.mxu0 %v814
      %1037 = vmatprep.subr.bf16.mxu0 %v817
      %1038 = vmatpush1.bf16.msra.mxu0 %v816
      %1039 = vmatprep.subr.bf16.mxu0 %v819
      %1040 = vmatpush1.bf16.msra.mxu0 %v818
      %1041 = vmatprep.subr.bf16.mxu0 %v821
      %1042 = vmatpush1.bf16.msra.mxu0 %v820
      %1043 = vmatprep.subr.bf16.mxu0 %v823
      %1044 = vmatpush1.bf16.msra.mxu0 %v822
      %1045 = vmatprep.subr.bf16.mxu0 %v825
      %1046 = vmatpush1.bf16.msra.mxu0 %v824
      %1047 = vmatprep.subr.bf16.mxu0 %v827
      %1048 = vmatpush1.bf16.msra.mxu0 %v826
      %1049 = vmatprep.subr.bf16.mxu0 %v829
      %1050 = vmatpush1.bf16.msra.mxu0 %v828
      %1051 = vmatprep.subr.bf16.mxu0 %v831
      %1052 = vmatpush1.bf16.msra.mxu0 %v830
      %1053 = vmatprep.subr.bf16.mxu0 %v833
      %1054 = vmatpush1.bf16.msra.mxu0 %v832
      %1055 = vmatprep.subr.bf16.mxu0 %v835
      %1056 = vmatpush1.bf16.msra.mxu0 %v834
      %1057 = vmatprep.mubr.bf16.mxu0 %v345
      %1058 = vmatmul.mubr.bf16.gmra.mrb[0].mxu0 %v344
      %v1059 = vpop.f32.mrb[0].mxu0
      %v1060 = vadd.f32 %v503, %v1059
      %v1061 = vpop.f32.mrb[0].mxu0
      %v1062 = vadd.f32 %v507, %v1061
      %v1063 = vpop.f32.mrb[0].mxu0
      %v1064 = vadd.f32 %v503, %v1063
      %v1065 = vpop.f32.mrb[0].mxu0
      %v1066 = vadd.f32 %v507, %v1065
      %1067 = vmatprep.mubr.bf16.mxu0 %v352
      %1068 = vmatmul.mubr.bf16.gmra.mrb[0].mxu0 %v351
      %v1069 = vpop.f32.mrb[0].mxu0
      %v1070 = vadd.f32 %v503, %v1069
      %v1071 = vpop.f32.mrb[0].mxu0
      %v1072 = vadd.f32 %v507, %v1071
      %v1073 = vpop.f32.mrb[0].mxu0
      %v1074 = vadd.f32 %v503, %v1073
      %v1075 = vpop.f32.mrb[0].mxu0
      %v1076 = vadd.f32 %v507, %v1075
      %1077 = vmatprep.mubr.bf16.mxu0 %v359
      %1078 = vmatmul.mubr.bf16.gmra.mrb[0].mxu0 %v358
      %v1079 = vpop.f32.mrb[0].mxu0
      %v1080 = vadd.f32 %v503, %v1079
      %v1081 = vpop.f32.mrb[0].mxu0
      %v1082 = vadd.f32 %v507, %v1081
      %v1083 = vpop.f32.mrb[0].mxu0
      %v1084 = vadd.f32 %v503, %v1083
      %v1085 = vpop.f32.mrb[0].mxu0
      %v1086 = vadd.f32 %v507, %v1085
      %1087 = vmatprep.mubr.bf16.mxu0 %v366
      %1088 = vmatmul.mubr.bf16.gmra.mrb[0].mxu0 %v365
      %v1089 = vpop.f32.mrb[0].mxu0
      %v1090 = vadd.f32 %v503, %v1089
      %v1091 = vpop.f32.mrb[0].mxu0
      %v1092 = vadd.f32 %v507, %v1091
      %v1093 = vpop.f32.mrb[0].mxu0
      %v1094 = vadd.f32 %v503, %v1093
      %v1095 = vpop.f32.mrb[0].mxu0
      %v1096 = vadd.f32 %v507, %v1095
      %1097 = vmatprep.mubr.bf16.mxu0 %v373
      %1098 = vmatmul.mubr.bf16.gmra.mrb[0].mxu0 %v372
      %v1099 = vpop.f32.mrb[0].mxu0
      %v1100 = vadd.f32 %v503, %v1099
      %v1101 = vpop.f32.mrb[0].mxu0
      %v1102 = vadd.f32 %v507, %v1101
      %v1103 = vpop.f32.mrb[0].mxu0
      %v1104 = vadd.f32 %v503, %v1103
      %v1105 = vpop.f32.mrb[0].mxu0
      %v1106 = vadd.f32 %v507, %v1105
      %1107 = vmatprep.mubr.bf16.mxu0 %v380
      %1108 = vmatmul.mubr.bf16.gmra.mrb[0].mxu0 %v379
      %v1109 = vpop.f32.mrb[0].mxu0
      %v1110 = vadd.f32 %v503, %v1109
      %v1111 = vpop.f32.mrb[0].mxu0
      %v1112 = vadd.f32 %v507, %v1111
      %v1113 = vpop.f32.mrb[0].mxu0
      %v1114 = vadd.f32 %v503, %v1113
      %v1115 = vpop.f32.mrb[0].mxu0
      %v1116 = vadd.f32 %v507, %v1115
      %1117 = vmatprep.mubr.bf16.mxu0 %v387
      %1118 = vmatmul.mubr.bf16.gmra.mrb[0].mxu0 %v386
      %v1119 = vpop.f32.mrb[0].mxu0
      %v1120 = vadd.f32 %v503, %v1119
      %v1121 = vpop.f32.mrb[0].mxu0
      %v1122 = vadd.f32 %v507, %v1121
      %v1123 = vpop.f32.mrb[0].mxu0
      %v1124 = vadd.f32 %v503, %v1123
      %v1125 = vpop.f32.mrb[0].mxu0
      %v1126 = vadd.f32 %v507, %v1125
      %1127 = vmatprep.mubr.bf16.mxu0 %v394
      %1128 = vmatmul.mubr.bf16.gmra.mrb[0].mxu0 %v393
      %v1129 = vpop.f32.mrb[0].mxu0
      %v1130 = vadd.f32 %v503, %v1129
      %v1131 = vpop.f32.mrb[0].mxu0
      %v1132 = vadd.f32 %v507, %v1131
      %v1133 = vpop.f32.mrb[0].mxu0
      %v1134 = vadd.f32 %v503, %v1133
      %v1135 = vpop.f32.mrb[0].mxu0
      %v1136 = vadd.f32 %v507, %v1135
      %1137 = vdwg.mxu0
      %1138 = vmatprep.subr.bf16.mxu0 %v837
      %1139 = vmatpush1.bf16.msra.mxu0 %v836
      %1140 = vmatprep.subr.bf16.mxu0 %v839
      %1141 = vmatpush1.bf16.msra.mxu0 %v838
      %1142 = vmatprep.subr.bf16.mxu0 %v841
      %1143 = vmatpush1.bf16.msra.mxu0 %v840
      %1144 = vmatprep.subr.bf16.mxu0 %v843
      %1145 = vmatpush1.bf16.msra.mxu0 %v842
      %1146 = vmatprep.subr.bf16.mxu0 %v845
      %1147 = vmatpush1.bf16.msra.mxu0 %v844
      %1148 = vmatprep.subr.bf16.mxu0 %v847
      %1149 = vmatpush1.bf16.msra.mxu0 %v846
      %1150 = vmatprep.subr.bf16.mxu0 %v849
      %1151 = vmatpush1.bf16.msra.mxu0 %v848
      %1152 = vmatprep.subr.bf16.mxu0 %v851
      %1153 = vmatpush1.bf16.msra.mxu0 %v850
      %1154 = vmatprep.subr.bf16.mxu0 %v853
      %1155 = vmatpush1.bf16.msra.mxu0 %v852
      %1156 = vmatprep.subr.bf16.mxu0 %v855
      %1157 = vmatpush1.bf16.msra.mxu0 %v854
      %1158 = vmatprep.subr.bf16.mxu0 %v857
      %1159 = vmatpush1.bf16.msra.mxu0 %v856
      %1160 = vmatprep.subr.bf16.mxu0 %v859
      %1161 = vmatpush1.bf16.msra.mxu0 %v858
      %1162 = vmatprep.subr.bf16.mxu0 %v861
      %1163 = vmatpush1.bf16.msra.mxu0 %v860
      %1164 = vmatprep.subr.bf16.mxu0 %v863
      %1165 = vmatpush1.bf16.msra.mxu0 %v862
      %1166 = vmatprep.subr.bf16.mxu0 %v865
      %1167 = vmatpush1.bf16.msra.mxu0 %v864
      %1168 = vmatprep.subr.bf16.mxu0 %v867
      %1169 = vmatpush1.bf16.msra.mxu0 %v866
      %1170 = vmatprep.mubr.bf16.mxu0 %v347
      %1171 = vmatmul.mubr.bf16.gmra.mrb[0].mxu0 %v346
      %v1172 = vpop.f32.mrb[0].mxu0
      %v1173 = vadd.f32 %v1060, %v1172
      %v1174 = vpop.f32.mrb[0].mxu0
      %v1175 = vadd.f32 %v1062, %v1174
      %v1176 = vpop.f32.mrb[0].mxu0
      %v1177 = vadd.f32 %v1064, %v1176
      %v1178 = vpop.f32.mrb[0].mxu0
      %v1179 = vadd.f32 %v1066, %v1178
      %1180 = vmatprep.mubr.bf16.mxu0 %v354
      %1181 = vmatmul.mubr.bf16.gmra.mrb[0].mxu0 %v353
      %v1182 = vpop.f32.mrb[0].mxu0
      %v1183 = vadd.f32 %v1070, %v1182
      %v1184 = vpop.f32.mrb[0].mxu0
      %v1185 = vadd.f32 %v1072, %v1184
      %v1186 = vpop.f32.mrb[0].mxu0
      %v1187 = vadd.f32 %v1074, %v1186
      %v1188 = vpop.f32.mrb[0].mxu0
      %v1189 = vadd.f32 %v1076, %v1188
      %1190 = vmatprep.mubr.bf16.mxu0 %v361
      %1191 = vmatmul.mubr.bf16.gmra.mrb[0].mxu0 %v360
      %v1192 = vpop.f32.mrb[0].mxu0
      %v1193 = vadd.f32 %v1080, %v1192
      %v1194 = vpop.f32.mrb[0].mxu0
      %v1195 = vadd.f32 %v1082, %v1194
      %v1196 = vpop.f32.mrb[0].mxu0
      %v1197 = vadd.f32 %v1084, %v1196
      %v1198 = vpop.f32.mrb[0].mxu0
      %v1199 = vadd.f32 %v1086, %v1198
      %1200 = vmatprep.mubr.bf16.mxu0 %v368
      %1201 = vmatmul.mubr.bf16.gmra.mrb[0].mxu0 %v367
      %v1202 = vpop.f32.mrb[0].mxu0
      %v1203 = vadd.f32 %v1090, %v1202
      %v1204 = vpop.f32.mrb[0].mxu0
      %v1205 = vadd.f32 %v1092, %v1204
      %v1206 = vpop.f32.mrb[0].mxu0
      %v1207 = vadd.f32 %v1094, %v1206
      %v1208 = vpop.f32.mrb[0].mxu0
      %v1209 = vadd.f32 %v1096, %v1208
      %1210 = vmatprep.mubr.bf16.mxu0 %v375
      %1211 = vmatmul.mubr.bf16.gmra.mrb[0].mxu0 %v374
      %v1212 = vpop.f32.mrb[0].mxu0
      %v1213 = vadd.f32 %v1100, %v1212
      %v1214 = vpop.f32.mrb[0].mxu0
      %v1215 = vadd.f32 %v1102, %v1214
      %v1216 = vpop.f32.mrb[0].mxu0
      %v1217 = vadd.f32 %v1104, %v1216
      %v1218 = vpop.f32.mrb[0].mxu0
      %v1219 = vadd.f32 %v1106, %v1218
      %1220 = vmatprep.mubr.bf16.mxu0 %v382
      %1221 = vmatmul.mubr.bf16.gmra.mrb[0].mxu0 %v381
      %v1222 = vpop.f32.mrb[0].mxu0
      %v1223 = vadd.f32 %v1110, %v1222
      %v1224 = vpop.f32.mrb[0].mxu0
      %v1225 = vadd.f32 %v1112, %v1224
      %v1226 = vpop.f32.mrb[0].mxu0
      %v1227 = vadd.f32 %v1114, %v1226
      %v1228 = vpop.f32.mrb[0].mxu0
      %v1229 = vadd.f32 %v1116, %v1228
      %1230 = vmatprep.mubr.bf16.mxu0 %v389
      %1231 = vmatmul.mubr.bf16.gmra.mrb[0].mxu0 %v388
      %v1232 = vpop.f32.mrb[0].mxu0
      %v1233 = vadd.f32 %v1120, %v1232
      %v1234 = vpop.f32.mrb[0].mxu0
      %v1235 = vadd.f32 %v1122, %v1234
      %v1236 = vpop.f32.mrb[0].mxu0
      %v1237 = vadd.f32 %v1124, %v1236
      %v1238 = vpop.f32.mrb[0].mxu0
      %v1239 = vadd.f32 %v1126, %v1238
      %1240 = vmatprep.mubr.bf16.mxu0 %v396
      %1241 = vmatmul.mubr.bf16.gmra.mrb[0].mxu0 %v395
      %v1242 = vpop.f32.mrb[0].mxu0
      %v1243 = vadd.f32 %v1130, %v1242
      %v1244 = vpop.f32.mrb[0].mxu0
      %v1245 = vadd.f32 %v1132, %v1244
      %v1246 = vpop.f32.mrb[0].mxu0
      %v1247 = vadd.f32 %v1134, %v1246
      %v1248 = vpop.f32.mrb[0].mxu0
      %v1249 = vadd.f32 %v1136, %v1248
      %1250 = vdwg.mxu0
      %1251 = vmatprep.subr.bf16.mxu0 %v869
      %1252 = vmatpush1.bf16.msra.mxu0 %v868
      %1253 = vmatprep.subr.bf16.mxu0 %v871
      %1254 = vmatpush1.bf16.msra.mxu0 %v870
      %1255 = vmatprep.subr.bf16.mxu0 %v873
      %1256 = vmatpush1.bf16.msra.mxu0 %v872
      %1257 = vmatprep.subr.bf16.mxu0 %v875
      %1258 = vmatpush1.bf16.msra.mxu0 %v874
      %1259 = vmatprep.subr.bf16.mxu0 %v877
      %1260 = vmatpush1.bf16.msra.mxu0 %v876
      %1261 = vmatprep.subr.bf16.mxu0 %v879
      %1262 = vmatpush1.bf16.msra.mxu0 %v878
      %1263 = vmatprep.subr.bf16.mxu0 %v881
      %1264 = vmatpush1.bf16.msra.mxu0 %v880
      %1265 = vmatprep.subr.bf16.mxu0 %v883
      %1266 = vmatpush1.bf16.msra.mxu0 %v882
      %1267 = vmatprep.subr.bf16.mxu0 %v885
      %1268 = vmatpush1.bf16.msra.mxu0 %v884
      %1269 = vmatprep.subr.bf16.mxu0 %v887
      %1270 = vmatpush1.bf16.msra.mxu0 %v886
      %1271 = vmatprep.subr.bf16.mxu0 %v889
      %1272 = vmatpush1.bf16.msra.mxu0 %v888
      %1273 = vmatprep.subr.bf16.mxu0 %v891
      %1274 = vmatpush1.bf16.msra.mxu0 %v890
      %1275 = vmatprep.subr.bf16.mxu0 %v893
      %1276 = vmatpush1.bf16.msra.mxu0 %v892
      %1277 = vmatprep.subr.bf16.mxu0 %v895
      %1278 = vmatpush1.bf16.msra.mxu0 %v894
      %1279 = vmatprep.subr.bf16.mxu0 %v897
      %1280 = vmatpush1.bf16.msra.mxu0 %v896
      %1281 = vmatprep.subr.bf16.mxu0 %v899
      %1282 = vmatpush1.bf16.msra.mxu0 %v898
      %1283 = vmatprep.mubr.bf16.mxu0 %v349
      %1284 = vmatmul.mubr.bf16.gmra.mrb[0].mxu0 %v348
      %v1285 = vpop.f32.mrb[0].mxu0
      %v1286 = vadd.f32 %v1173, %v1285
      %v1287 = vpop.f32.mrb[0].mxu0
      %v1288 = vadd.f32 %v1175, %v1287
      %v1289 = vpop.f32.mrb[0].mxu0
      %v1290 = vadd.f32 %v1177, %v1289
      %v1291 = vpop.f32.mrb[0].mxu0
      %v1292 = vadd.f32 %v1179, %v1291
      %1293 = vmatprep.mubr.bf16.mxu0 %v356
      %1294 = vmatmul.mubr.bf16.gmra.mrb[0].mxu0 %v355
      %v1295 = vpop.f32.mrb[0].mxu0
      %v1296 = vadd.f32 %v1183, %v1295
      %v1297 = vpop.f32.mrb[0].mxu0
      %v1298 = vadd.f32 %v1185, %v1297
      %v1299 = vpop.f32.mrb[0].mxu0
      %v1300 = vadd.f32 %v1187, %v1299
      %v1301 = vpop.f32.mrb[0].mxu0
      %v1302 = vadd.f32 %v1189, %v1301
      %1303 = vmatprep.mubr.bf16.mxu0 %v363
      %1304 = vmatmul.mubr.bf16.gmra.mrb[0].mxu0 %v362
      %v1305 = vpop.f32.mrb[0].mxu0
      %v1306 = vadd.f32 %v1193, %v1305
      %v1307 = vpop.f32.mrb[0].mxu0
      %v1308 = vadd.f32 %v1195, %v1307
      %v1309 = vpop.f32.mrb[0].mxu0
      %v1310 = vadd.f32 %v1197, %v1309
      %v1311 = vpop.f32.mrb[0].mxu0
      %v1312 = vadd.f32 %v1199, %v1311
      %1313 = vmatprep.mubr.bf16.mxu0 %v370
      %1314 = vmatmul.mubr.bf16.gmra.mrb[0].mxu0 %v369
      %v1315 = vpop.f32.mrb[0].mxu0
      %v1316 = vadd.f32 %v1203, %v1315
      %v1317 = vpop.f32.mrb[0].mxu0
      %v1318 = vadd.f32 %v1205, %v1317
      %v1319 = vpop.f32.mrb[0].mxu0
      %v1320 = vadd.f32 %v1207, %v1319
      %v1321 = vpop.f32.mrb[0].mxu0
      %v1322 = vadd.f32 %v1209, %v1321
      %1323 = vmatprep.mubr.bf16.mxu0 %v377
      %1324 = vmatmul.mubr.bf16.gmra.mrb[0].mxu0 %v376
      %v1325 = vpop.f32.mrb[0].mxu0
      %v1326 = vadd.f32 %v1213, %v1325
      %v1327 = vpop.f32.mrb[0].mxu0
      %v1328 = vadd.f32 %v1215, %v1327
      %v1329 = vpop.f32.mrb[0].mxu0
      %v1330 = vadd.f32 %v1217, %v1329
      %v1331 = vpop.f32.mrb[0].mxu0
      %v1332 = vadd.f32 %v1219, %v1331
      %1333 = vmatprep.mubr.bf16.mxu0 %v384
      %1334 = vmatmul.mubr.bf16.gmra.mrb[0].mxu0 %v383
      %v1335 = vpop.f32.mrb[0].mxu0
      %v1336 = vadd.f32 %v1223, %v1335
      %v1337 = vpop.f32.mrb[0].mxu0
      %v1338 = vadd.f32 %v1225, %v1337
      %v1339 = vpop.f32.mrb[0].mxu0
      %v1340 = vadd.f32 %v1227, %v1339
      %v1341 = vpop.f32.mrb[0].mxu0
      %v1342 = vadd.f32 %v1229, %v1341
      %1343 = vmatprep.mubr.bf16.mxu0 %v391
      %1344 = vmatmul.mubr.bf16.gmra.mrb[0].mxu0 %v390
      %v1345 = vpop.f32.mrb[0].mxu0
      %v1346 = vadd.f32 %v1233, %v1345
      %v1347 = vpop.f32.mrb[0].mxu0
      %v1348 = vadd.f32 %v1235, %v1347
      %v1349 = vpop.f32.mrb[0].mxu0
      %v1350 = vadd.f32 %v1237, %v1349
      %v1351 = vpop.f32.mrb[0].mxu0
      %v1352 = vadd.f32 %v1239, %v1351
      %1353 = vmatprep.mubr.bf16.mxu0 %v398
      %1354 = vmatmul.mubr.bf16.gmra.mrb[0].mxu0 %v397
      %v1355 = vpop.f32.mrb[0].mxu0
      %v1356 = vadd.f32 %v1243, %v1355
      %v1357 = vpop.f32.mrb[0].mxu0
      %v1358 = vadd.f32 %v1245, %v1357
      %v1359 = vpop.f32.mrb[0].mxu0
      %v1360 = vadd.f32 %v1247, %v1359
      %v1361 = vpop.f32.mrb[0].mxu0
      %v1362 = vadd.f32 %v1249, %v1361
      %1363 = vdwg.mxu0
      %1364 = vmatprep.subr.bf16.mxu0 %v901
      %1365 = vmatpush1.bf16.msra.mxu0 %v900
      %1366 = vmatprep.subr.bf16.mxu0 0
      %1367 = vmatpush1.bf16.msra.mxu0 0
      %1368 = vmatprep.subr.bf16.mxu0 0
      %1369 = vmatpush1.bf16.msra.mxu0 0
      %1370 = vmatprep.subr.bf16.mxu0 0
      %1371 = vmatpush1.bf16.msra.mxu0 0
      %1372 = vmatprep.subr.bf16.mxu0 0
      %1373 = vmatpush1.bf16.msra.mxu0 0
      %1374 = vmatprep.subr.bf16.mxu0 0
      %1375 = vmatpush1.bf16.msra.mxu0 0
      %1376 = vmatprep.subr.bf16.mxu0 0
      %1377 = vmatpush1.bf16.msra.mxu0 0
      %1378 = vmatprep.subr.bf16.mxu0 0
      %1379 = vmatpush1.bf16.msra.mxu0 0
      %1380 = vmatprep.subr.bf16.mxu0 0
      %1381 = vmatpush1.bf16.msra.mxu0 0
      %1382 = vmatprep.subr.bf16.mxu0 0
      %1383 = vmatpush1.bf16.msra.mxu0 0
      %1384 = vmatprep.subr.bf16.mxu0 0
      %1385 = vmatpush1.bf16.msra.mxu0 0
      %1386 = vmatprep.subr.bf16.mxu0 0
      %1387 = vmatpush1.bf16.msra.mxu0 0
      %1388 = vmatprep.subr.bf16.mxu0 0
      %1389 = vmatpush1.bf16.msra.mxu0 0
      %1390 = vmatprep.subr.bf16.mxu0 0
      %1391 = vmatpush1.bf16.msra.mxu0 0
      %1392 = vmatprep.subr.bf16.mxu0 0
      %1393 = vmatpush1.bf16.msra.mxu0 0
      %1394 = vmatprep.subr.bf16.mxu0 0
      %1395 = vmatpush1.bf16.msra.mxu0 0
      %1396 = vmatprep.mubr.bf16.mxu0 0
      %1397 = vmatmul.mubr.bf16.gmra.mrb[0].mxu0 %v1002
      %v1398 = vpop.f32.mrb[0].mxu0
      %v1399 = vadd.f32 %v1286, %v1398
      %v1400 = vpop.f32.mrb[0].mxu0
      %v1401 = vadd.f32 %v1288, %v1400
      %v1402 = vpop.f32.mrb[0].mxu0
      %v1403 = vadd.f32 %v1290, %v1402
      %v1404 = vpop.f32.mrb[0].mxu0
      %v1405 = vadd.f32 %v1292, %v1404
      %1406 = vmatprep.mubr.bf16.mxu0 0
      %1407 = vmatmul.mubr.bf16.gmra.mrb[0].mxu0 %v1005
      %v1408 = vpop.f32.mrb[0].mxu0
      %v1409 = vadd.f32 %v1296, %v1408
      %v1410 = vpop.f32.mrb[0].mxu0
      %v1411 = vadd.f32 %v1298, %v1410
      %v1412 = vpop.f32.mrb[0].mxu0
      %v1413 = vadd.f32 %v1300, %v1412
      %v1414 = vpop.f32.mrb[0].mxu0
      %v1415 = vadd.f32 %v1302, %v1414
      %1416 = vmatprep.mubr.bf16.mxu0 0
      %1417 = vmatmul.mubr.bf16.gmra.mrb[0].mxu0 %v1008
      %v1418 = vpop.f32.mrb[0].mxu0
      %v1419 = vadd.f32 %v1306, %v1418
      %v1420 = vpop.f32.mrb[0].mxu0
      %v1421 = vadd.f32 %v1308, %v1420
      %v1422 = vpop.f32.mrb[0].mxu0
      %v1423 = vadd.f32 %v1310, %v1422
      %v1424 = vpop.f32.mrb[0].mxu0
      %v1425 = vadd.f32 %v1312, %v1424
      %1426 = vmatprep.mubr.bf16.mxu0 0
      %1427 = vmatmul.mubr.bf16.gmra.mrb[0].mxu0 %v1011
      %v1428 = vpop.f32.mrb[0].mxu0
      %v1429 = vadd.f32 %v1316, %v1428
      %v1430 = vpop.f32.mrb[0].mxu0
      %v1431 = vadd.f32 %v1318, %v1430
      %v1432 = vpop.f32.mrb[0].mxu0
      %v1433 = vadd.f32 %v1320, %v1432
      %v1434 = vpop.f32.mrb[0].mxu0
      %v1435 = vadd.f32 %v1322, %v1434
      %1436 = vmatprep.mubr.bf16.mxu0 0
      %1437 = vmatmul.mubr.bf16.gmra.mrb[0].mxu0 %v1014
      %v1438 = vpop.f32.mrb[0].mxu0
      %v1439 = vadd.f32 %v1326, %v1438
      %v1440 = vpop.f32.mrb[0].mxu0
      %v1441 = vadd.f32 %v1328, %v1440
      %v1442 = vpop.f32.mrb[0].mxu0
      %v1443 = vadd.f32 %v1330, %v1442
      %v1444 = vpop.f32.mrb[0].mxu0
      %v1445 = vadd.f32 %v1332, %v1444
      %1446 = vmatprep.mubr.bf16.mxu0 0
      %1447 = vmatmul.mubr.bf16.gmra.mrb[0].mxu0 %v1017
      %v1448 = vpop.f32.mrb[0].mxu0
      %v1449 = vadd.f32 %v1336, %v1448
      %v1450 = vpop.f32.mrb[0].mxu0
      %v1451 = vadd.f32 %v1338, %v1450
      %v1452 = vpop.f32.mrb[0].mxu0
      %v1453 = vadd.f32 %v1340, %v1452
      %v1454 = vpop.f32.mrb[0].mxu0
      %v1455 = vadd.f32 %v1342, %v1454
      %1456 = vmatprep.mubr.bf16.mxu0 0
      %1457 = vmatmul.mubr.bf16.gmra.mrb[0].mxu0 %v1020
      %v1458 = vpop.f32.mrb[0].mxu0
      %v1459 = vadd.f32 %v1346, %v1458
      %v1460 = vpop.f32.mrb[0].mxu0
      %v1461 = vadd.f32 %v1348, %v1460
      %v1462 = vpop.f32.mrb[0].mxu0
      %v1463 = vadd.f32 %v1350, %v1462
      %v1464 = vpop.f32.mrb[0].mxu0
      %v1465 = vadd.f32 %v1352, %v1464
      %1466 = vmatprep.mubr.bf16.mxu0 0
      %1467 = vmatmul.mubr.bf16.gmra.mrb[0].mxu0 %v1023
      %v1468 = vpop.f32.mrb[0].mxu0
      %v1469 = vadd.f32 %v1356, %v1468
      %v1470 = vpop.f32.mrb[0].mxu0
      %v1471 = vadd.f32 %v1358, %v1470
      %v1472 = vpop.f32.mrb[0].mxu0
      %v1473 = vadd.f32 %v1360, %v1472
      %v1474 = vpop.f32.mrb[0].mxu0
      %v1475 = vadd.f32 %v1362, %v1474
      %1476 = vdwg.mxu0
      %v1477 = vtanh.pop %v1399
      %v1478 = vtanh.pop %v1401
      %v1479 = vtanh.pop %v1403
      %v1480 = vtanh.pop %v1405
      %v1481 = vtanh.pop %v1409
      %v1482 = vtanh.pop %v1411
      %v1483 = vtanh.pop %v1413
      %v1484 = vtanh.pop %v1415
      %v1485 = vtanh.pop %v1419
      %v1486 = vtanh.pop %v1421
      %v1487 = vtanh.pop %v1423
      %v1488 = vtanh.pop %v1425
      %v1489 = vtanh.pop %v1429
      %v1490 = vtanh.pop %v1431
      %v1491 = vtanh.pop %v1433
      %v1492 = vtanh.pop %v1435
      %v1493 = vtanh.pop %v1439
      %v1494 = vtanh.pop %v1441
      %v1495 = vtanh.pop %v1443
      %v1496 = vtanh.pop %v1445
      %v1497 = vtanh.pop %v1449
      %v1498 = vtanh.pop %v1451
      %v1499 = vtanh.pop %v1453
      %v1500 = vtanh.pop %v1455
      %v1501 = vtanh.pop %v1459
      %v1502 = vtanh.pop %v1461
      %v1503 = vtanh.pop %v1463
      %v1504 = vtanh.pop %v1465
      %v1505 = vtanh.pop %v1469
      %v1506 = vtanh.pop %v1471
      %v1507 = vtanh.pop %v1473
      %v1508 = vtanh.pop %v1475
      %v1509 = vpack.c.bf16 %v1479, %v1477
      %v1510 = vpack.c.bf16 %v1480, %v1478
      %v1511 = vpack.c.bf16 %v1483, %v1481
      %v1512 = vpack.c.bf16 %v1484, %v1482
      %v1513 = vpack.c.bf16 %v1487, %v1485
      %v1514 = vpack.c.bf16 %v1488, %v1486
      %v1515 = vpack.c.bf16 %v1491, %v1489
      %v1516 = vpack.c.bf16 %v1492, %v1490
      %v1517 = vpack.c.bf16 %v1495, %v1493
      %v1518 = vpack.c.bf16 %v1496, %v1494
      %v1519 = vpack.c.bf16 %v1499, %v1497
      %v1520 = vpack.c.bf16 %v1500, %v1498
      %v1521 = vpack.c.bf16 %v1503, %v1501
      %v1522 = vpack.c.bf16 %v1504, %v1502
      %v1523 = vpack.c.bf16 %v1507, %v1505
      %v1524 = vpack.c.bf16 %v1508, %v1506
      %v1525 = vld [vmem:[%s3] sm:$0xf]
      %v1526 = vld [vmem:[%s3 + $0x4] sm:$0xf]
      %v1527 = vld [vmem:[%s3 + $0x8] sm:$0xf]
      %v1528 = vld [vmem:[%s3 + $0xc] sm:$0xf]
      %v1529 = vld [vmem:[%s3 + $0x10] sm:$0xf]
      %v1530 = vld [vmem:[%s3 + $0x14] sm:$0xf]
      %v1531 = vld [vmem:[%s3 + $0x18] sm:$0xf]
      %v1532 = vld [vmem:[%s3 + $0x1c] sm:$0xf]
      %v1533 = vld [vmem:[%s3 + $0x20] sm:$0xf]
      %v1534 = vld [vmem:[%s3 + $0x24] sm:$0xf]
      %v1535 = vld [vmem:[%s3 + $0x28] sm:$0xf]
      %v1536 = vld [vmem:[%s3 + $0x2c] sm:$0xf]
      %v1537 = vld [vmem:[%s3 + $0x30] sm:$0xf]
      %v1538 = vld [vmem:[%s3 + $0x34] sm:$0xf]
      %v1539 = vld [vmem:[%s3 + $0x38] sm:$0xf]
      %v1540 = vld [vmem:[%s3 + $0x3c] sm:$0xf]
      %v1541 = vld [vmem:[%s3 + $0x40] sm:$0xf]
      %v1542 = vld [vmem:[%s3 + $0x44] sm:$0xf]
      %v1543 = vld [vmem:[%s3 + $0x48] sm:$0xf]
      %v1544 = vld [vmem:[%s3 + $0x4c] sm:$0xf]
      %v1545 = vld [vmem:[%s3 + $0x50] sm:$0xf]
      %v1546 = vld [vmem:[%s3 + $0x54] sm:$0xf]
      %v1547 = vld [vmem:[%s3 + $0x58] sm:$0xf]
      %v1548 = vld [vmem:[%s3 + $0x5c] sm:$0xf]
      %v1549 = vld [vmem:[%s3 + $0x60] sm:$0xf]
      %v1550 = vld [vmem:[%s3 + $0x64] sm:$0xf]
      %v1551 = vld [vmem:[%s3 + $0x68] sm:$0xf]
      %v1552 = vld [vmem:[%s3 + $0x6c] sm:$0xf]
      %v1553 = vld [vmem:[%s3 + $0x70] sm:$0xf]
      %v1554 = vld [vmem:[%s3 + $0x74] sm:$0xf]
      %v1555 = vld [vmem:[%s3 + $0x78] sm:$0xf]
      %v1556 = vld [vmem:[%s3 + $0x7c] sm:$0xf]
      %v1557 = vld [vmem:[%s4] sm:$0x1]
      %v1559 = vlaneseq
      %v1560 = vshrl.u32 %v1559, 7
      %v1561 = vsub.s32 0, %v1560
      %v1562 = vrot.slane %v1557, %v1561
      %v1596 = vunpack.c.l.b16 %v1525
      %v1597 = vunpack.c.l.b16 %v1526
      %v1598 = vunpack.c.l.b16 %v1527
      %v1599 = vunpack.c.l.b16 %v1528
      %v1600 = vunpack.c.l.b16 %v1529
      %v1601 = vunpack.c.l.b16 %v1530
      %v1602 = vunpack.c.l.b16 %v1531
      %v1603 = vunpack.c.l.b16 %v1532
      %v1604 = vunpack.c.l.b16 %v1533
      %v1605 = vunpack.c.l.b16 %v1534
      %v1606 = vunpack.c.l.b16 %v1535
      %v1607 = vunpack.c.l.b16 %v1536
      %v1608 = vunpack.c.l.b16 %v1537
      %v1609 = vunpack.c.l.b16 %v1538
      %v1610 = vunpack.c.l.b16 %v1539
      %v1611 = vunpack.c.l.b16 %v1540
      %v1612 = vunpack.c.l.b16 %v1541
      %v1613 = vunpack.c.l.b16 %v1542
      %v1614 = vunpack.c.l.b16 %v1543
      %v1615 = vunpack.c.l.b16 %v1544
      %v1616 = vunpack.c.l.b16 %v1545
      %v1617 = vunpack.c.l.b16 %v1546
      %v1618 = vunpack.c.l.b16 %v1547
      %v1619 = vunpack.c.l.b16 %v1548
      %v1620 = vunpack.c.l.b16 %v1549
      %v1621 = vunpack.c.l.b16 %v1550
      %v1622 = vunpack.c.l.b16 %v1551
      %v1623 = vunpack.c.l.b16 %v1552
      %v1624 = vunpack.c.l.b16 %v1553
      %v1625 = vunpack.c.l.b16 %v1554
      %v1626 = vunpack.c.l.b16 %v1555
      %v1627 = vunpack.c.l.b16 %v1556
      %v1628 = vpack.c.b16 %v1597, %v1596
      %v1629 = vpack.c.b16 %v1599, %v1598
      %v1630 = vpack.c.b16 %v1601, %v1600
      %v1631 = vpack.c.b16 %v1603, %v1602
      %v1632 = vpack.c.b16 %v1605, %v1604
      %v1633 = vpack.c.b16 %v1607, %v1606
      %v1634 = vpack.c.b16 %v1609, %v1608
      %v1635 = vpack.c.b16 %v1611, %v1610
      %v1636 = vpack.c.b16 %v1613, %v1612
      %v1637 = vpack.c.b16 %v1615, %v1614
      %v1638 = vpack.c.b16 %v1617, %v1616
      %v1639 = vpack.c.b16 %v1619, %v1618
      %v1640 = vpack.c.b16 %v1621, %v1620
      %v1641 = vpack.c.b16 %v1623, %v1622
      %v1642 = vpack.c.b16 %v1625, %v1624
      %v1643 = vpack.c.b16 %v1627, %v1626
      %1660 = vmatprep.subr.bf16.mxu0 0
      %1661 = vmatpush1.bf16.msra.mxu0 %v1628
      %1662 = vmatprep.subr.bf16.mxu0 0
      %1663 = vmatpush1.bf16.msra.mxu0 %v1629
      %1664 = vmatprep.subr.bf16.mxu0 0
      %1665 = vmatpush1.bf16.msra.mxu0 %v1630
      %1666 = vmatprep.subr.bf16.mxu0 0
      %1667 = vmatpush1.bf16.msra.mxu0 %v1631
      %1668 = vmatprep.subr.bf16.mxu0 0
      %1669 = vmatpush1.bf16.msra.mxu0 %v1632
      %1670 = vmatprep.subr.bf16.mxu0 0
      %1671 = vmatpush1.bf16.msra.mxu0 %v1633
      %1672 = vmatprep.subr.bf16.mxu0 0
      %1673 = vmatpush1.bf16.msra.mxu0 %v1634
      %1674 = vmatprep.subr.bf16.mxu0 0
      %1675 = vmatpush1.bf16.msra.mxu0 %v1635
      %1676 = vmatprep.subr.bf16.mxu0 0
      %1677 = vmatpush1.bf16.msra.mxu0 %v1636
      %1678 = vmatprep.subr.bf16.mxu0 0
      %1679 = vmatpush1.bf16.msra.mxu0 %v1637
      %1680 = vmatprep.subr.bf16.mxu0 0
      %1681 = vmatpush1.bf16.msra.mxu0 %v1638
      %1682 = vmatprep.subr.bf16.mxu0 0
      %1683 = vmatpush1.bf16.msra.mxu0 %v1639
      %1684 = vmatprep.subr.bf16.mxu0 0
      %1685 = vmatpush1.bf16.msra.mxu0 %v1640
      %1686 = vmatprep.subr.bf16.mxu0 0
      %1687 = vmatpush1.bf16.msra.mxu0 %v1641
      %1688 = vmatprep.subr.bf16.mxu0 0
      %1689 = vmatpush1.bf16.msra.mxu0 %v1642
      %1690 = vmatprep.subr.bf16.mxu0 0
      %1691 = vmatpush1.bf16.msra.mxu0 %v1643
      %1692 = vmatprep.mubr.bf16.mxu0 %v1510
      %1693 = vmatmul.mubr.bf16.gmra.mrb[0].mxu0 %v1509
      %v1694 = vpop.f32.mrb[0].mxu0
      %v1695 = vadd.f32 %v1562, %v1694
      %v1696 = vpop.f32.mrb[0].mxu0
      %v1697 = vpop.f32.mrb[0].mxu0
      %v1698 = vadd.f32 %v1562, %v1697
      %v1699 = vpop.f32.mrb[0].mxu0
      %1700 = vmatprep.mubr.bf16.mxu0 %v1512
      %1701 = vmatmul.mubr.bf16.gmra.mrb[0].mxu0 %v1511
      %v1702 = vpop.f32.mrb[0].mxu0
      %v1703 = vadd.f32 %v1562, %v1702
      %v1704 = vpop.f32.mrb[0].mxu0
      %v1705 = vpop.f32.mrb[0].mxu0
      %v1706 = vadd.f32 %v1562, %v1705
      %v1707 = vpop.f32.mrb[0].mxu0
      %1708 = vmatprep.mubr.bf16.mxu0 %v1514
      %1709 = vmatmul.mubr.bf16.gmra.mrb[0].mxu0 %v1513
      %v1710 = vpop.f32.mrb[0].mxu0
      %v1711 = vadd.f32 %v1562, %v1710
      %v1712 = vpop.f32.mrb[0].mxu0
      %v1713 = vpop.f32.mrb[0].mxu0
      %v1714 = vadd.f32 %v1562, %v1713
      %v1715 = vpop.f32.mrb[0].mxu0
      %1716 = vmatprep.mubr.bf16.mxu0 %v1516
      %1717 = vmatmul.mubr.bf16.gmra.mrb[0].mxu0 %v1515
      %v1718 = vpop.f32.mrb[0].mxu0
      %v1719 = vadd.f32 %v1562, %v1718
      %v1720 = vpop.f32.mrb[0].mxu0
      %v1721 = vpop.f32.mrb[0].mxu0
      %v1722 = vadd.f32 %v1562, %v1721
      %v1723 = vpop.f32.mrb[0].mxu0
      %1724 = vmatprep.mubr.bf16.mxu0 %v1518
      %1725 = vmatmul.mubr.bf16.gmra.mrb[0].mxu0 %v1517
      %v1726 = vpop.f32.mrb[0].mxu0
      %v1727 = vadd.f32 %v1562, %v1726
      %v1728 = vpop.f32.mrb[0].mxu0
      %v1729 = vpop.f32.mrb[0].mxu0
      %v1730 = vadd.f32 %v1562, %v1729
      %v1731 = vpop.f32.mrb[0].mxu0
      %1732 = vmatprep.mubr.bf16.mxu0 %v1520
      %1733 = vmatmul.mubr.bf16.gmra.mrb[0].mxu0 %v1519
      %v1734 = vpop.f32.mrb[0].mxu0
      %v1735 = vadd.f32 %v1562, %v1734
      %v1736 = vpop.f32.mrb[0].mxu0
      %v1737 = vpop.f32.mrb[0].mxu0
      %v1738 = vadd.f32 %v1562, %v1737
      %v1739 = vpop.f32.mrb[0].mxu0
      %1740 = vmatprep.mubr.bf16.mxu0 %v1522
      %1741 = vmatmul.mubr.bf16.gmra.mrb[0].mxu0 %v1521
      %v1742 = vpop.f32.mrb[0].mxu0
      %v1743 = vadd.f32 %v1562, %v1742
      %v1744 = vpop.f32.mrb[0].mxu0
      %v1745 = vpop.f32.mrb[0].mxu0
      %v1746 = vadd.f32 %v1562, %v1745
      %v1747 = vpop.f32.mrb[0].mxu0
      %1748 = vmatprep.mubr.bf16.mxu0 %v1524
      %1749 = vmatmul.mubr.bf16.gmra.mrb[0].mxu0 %v1523
      %v1750 = vpop.f32.mrb[0].mxu0
      %v1751 = vadd.f32 %v1562, %v1750
      %v1752 = vpop.f32.mrb[0].mxu0
      %v1753 = vpop.f32.mrb[0].mxu0
      %v1754 = vadd.f32 %v1562, %v1753
      %v1755 = vpop.f32.mrb[0].mxu0
      %1756 = vdwg.mxu0
      %1757 = vst [vmem:[%s229] sm:$0xff] %v1695
      %1758 = vst [vmem:[%s229 + $0x8] sm:$0xff] %v1698
      %1759 = vst [vmem:[%s229 + $0x10] sm:$0xff] %v1703
      %1760 = vst [vmem:[%s229 + $0x18] sm:$0xff] %v1706
      %1761 = vst [vmem:[%s229 + $0x20] sm:$0xff] %v1711
      %1762 = vst [vmem:[%s229 + $0x28] sm:$0xff] %v1714
      %1763 = vst [vmem:[%s229 + $0x30] sm:$0xff] %v1719
      %1764 = vst [vmem:[%s229 + $0x38] sm:$0xff] %v1722
      %1765 = vst [vmem:[%s229 + $0x40] sm:$0xff] %v1727
      %1766 = vst [vmem:[%s229 + $0x48] sm:$0xff] %v1730
      %1767 = vst [vmem:[%s229 + $0x50] sm:$0xff] %v1735
      %1768 = vst [vmem:[%s229 + $0x58] sm:$0xff] %v1738
      %1769 = vst [vmem:[%s229 + $0x60] sm:$0xff] %v1743
      %1770 = vst [vmem:[%s229 + $0x68] sm:$0xff] %v1746
      %1771 = vst [vmem:[%s229 + $0x70] sm:$0xff] %v1751
      %1772 = vst [vmem:[%s229 + $0x78] sm:$0xff] %v1754
      %s1773 = smul.u32 16, %s16
      %p1774 = scmp.lt.s32.totalorder %s1773, 31
      %s1775 = scalar_select %p1774, %s1773, 31
      %s1776 = smul.addr %s1775, 8
      %s1777 = scalar_lea.vmem %s5, %s1776
      // Predicated region
      $region41: #{mnist_model_forward.1} parent=39 // pred_check
        %p1778 = pneg %p144
      $region42: #{mnist_model_forward.1} parent=39 // pred_check_branch
        %1780 = sbr.rel (%p1778) target = $region44
      $region43: #{mnist_model_forward.1} parent=39 // pred_region
        %s1781 = smul.u32 16, %s16
      $region44: #{mnist_model_forward.1} parent=39 // pred_fallthru
        _
    $region40: #{mnist_model_forward.1} parent=5 // pred_fallthru
      _
    %p1782 = scmp.le.s32.totalorder 2, %s11
    // Predicated region
    $region45: #{mnist_model_forward.1} parent=5 // pred_check
      %p1783 = pneg %p1782
    $region46: #{mnist_model_forward.1} parent=5 // pred_check_branch
      %1785 = sbr.rel (%p1783) target = $region48
    $region47: #{mnist_model_forward.1} parent=5 // pred_region
      %s1786 = ssub.s32 %s11, 2
      // Predicated region
      $region49: #{mnist_model_forward.1} parent=47 // pred_check
        %p1787 = pneg %p150
      $region50: #{mnist_model_forward.1} parent=47 // pred_check_branch
        %1789 = sbr.rel (%p1787) target = $region52
      $region51: #{mnist_model_forward.1} parent=47 // pred_region
        %s1790 = smul.u32 16, %s17
        %p1791 = scmp.lt.s32.totalorder %s1790, 31
        %s1792 = scalar_select %p1791, %s1790, 31
        %s1793 = smul.addr %s1792, 8
        %s1794 = scalar_lea.vmem %s5, %s1793
      $region52: #{mnist_model_forward.1} parent=47 // pred_fallthru
        _
    $region48: #{mnist_model_forward.1} parent=5 // pred_fallthru
      _
  $region6: #{mnist_model_forward.1} parent=0 // loop_footer
    %s15 = sadd.s32 1, %s11
  $region7: #{mnist_model_forward.1} parent=0 // loop_footer_branch
    %10 = sbr.rel target = $region3
  $region8: #{mnist_model_forward.1} parent=0 // loop_exit
    _

// kernel: mnist_model_forward.1
$region0: #{mnist_model_forward.1}
  #allocation0 [shape = 'u32[]', space=smem, size = 0x4, offset = 0x4, fixed_abs, tag = 'smem constant byte address 0x4 - core index']
  #allocation1 [shape = 'u32[144,128]{1,0:T(1,128)}', space=vmem, size = 0x12000, scoped, tag = 'internal scratch']
  %s0 = inlined_call_operand.vmem [shape: f32[256,784], index: 0, kind: input, shape index: {}]
  %s1 = inlined_call_operand.vmem [shape: bf16[784,256], index: 1, kind: input, shape index: {}]
  %s2 = inlined_call_operand.vmem [shape: f32[1,256], index: 2, kind: input, shape index: {}]
  %s3 = inlined_call_operand.vmem [shape: bf16[256,128], index: 3, kind: input, shape index: {}]
  %s4 = inlined_call_operand.vmem [shape: f32[1,128], index: 4, kind: input, shape index: {}]
  %s5 = inlined_call_operand.vmem [shape: f32[256,128], index: 5, kind: output, shape index: {}]
  %s6 = sld [smem:[#allocation0]]
  $region53: #{mnist_model_forward.1} parent=0
    _
  %s8 = ssub.s32 1, %s6
  %s9 = scalar_select 0, %s8, %s6
  loop: start=0, step=1, limit=4
  $region2: #{mnist_model_forward.1} parent=0 // loop_pre_header
    _
  $region3: #{mnist_model_forward.1} parent=0 // loop_header
    %s11 = sphi 0, %s15
    %p12 = scmp.ge.s32.totalorder %s11, 4
    %s21 = sphi 0, %s23
    %s24 = sphi 0, %s21
    %s25 = sphi 0, %s24
    %s41 = sphi 0, %s25
    %s45 = sphi 0, %s45
    %s47 = sphi 0, %s45
    %s48 = sphi 0, %s47
    %s62 = sphi 0, %s48
    %s66 = sphi 0, %s66
    %s68 = sphi 0, %s66
    %s69 = sphi 0, %s68
    %s83 = sphi 0, %s69
    %s87 = sphi 0, %s87
    %s89 = sphi 0, %s87
    %s90 = sphi 0, %s89
    %s104 = sphi 0, %s90
    %s108 = sphi 0, %s108
    %s110 = sphi 0, %s108
    %s111 = sphi 0, %s110
    %s125 = sphi 0, %s111
    %s131 = sphi 0, %s133
    %s134 = sphi 0, %s131
    %s135 = sphi 0, %s134
    %s151 = sphi 0, %s135
  $region4: #{mnist_model_forward.1} parent=0 // loop_header_branch
    %14 = sbr.rel (%p12) target = $region8
  $region5: #{mnist_model_forward.1} parent=0 // loop_body
    %s16 = ssub.s32 %s11, 1
    %s17 = ssub.s32 %s11, 2
    %s18 = sadd.s32 %s11, 1
    %s19 = ssub.s32 %s11, %s18
    %p20 = scmp.eq.s32.totalorder %s19, 0
    %s22 = sadd.s32 %s21, 1
    %s23 = scalar_select %p20, %s21, %s22
    %p26 = pneg %p20
    %p27 = scmp.eq.s32.totalorder %s11, 1
    %p28 = por %p26, %p27
    %p29 = scmp.ne.s32.totalorder %s21, %s24
    %p30 = scmp.eq.s32.totalorder %s11, 0
    %p31 = por %p29, %p30
    %p32 = scmp.ne.s32.totalorder %s21, %s24
    %p33 = scmp.eq.s32.totalorder %s16, 1
    %p34 = por %p32, %p33
    %p35 = scmp.ne.s32.totalorder %s24, %s25
    %p36 = scmp.eq.s32.totalorder %s16, 0
    %p37 = por %p35, %p36
    %p38 = scmp.ne.s32.totalorder %s24, %s25
    %p39 = scmp.eq.s32.totalorder %s17, 1
    %p40 = por %p38, %p39
    %p42 = scmp.ne.s32.totalorder %s25, %s41
    %p43 = scmp.eq.s32.totalorder %s17, 0
    %p44 = por %p42, %p43
    %s46 = sadd.s32 %s45, 1
    %p49 = scmp.eq.s32.totalorder %s11, 1
    %p50 = scmp.ne.s32.totalorder %s45, %s47
    %p51 = scmp.eq.s32.totalorder %s11, 0
    %p52 = por %p50, %p51
    %p53 = scmp.ne.s32.totalorder %s45, %s47
    %p54 = scmp.eq.s32.totalorder %s16, 1
    %p55 = por %p53, %p54
    %p56 = scmp.ne.s32.totalorder %s47, %s48
    %p57 = scmp.eq.s32.totalorder %s16, 0
    %p58 = por %p56, %p57
    %p59 = scmp.ne.s32.totalorder %s47, %s48
    %p60 = scmp.eq.s32.totalorder %s17, 1
    %p61 = por %p59, %p60
    %p63 = scmp.ne.s32.totalorder %s48, %s62
    %p64 = scmp.eq.s32.totalorder %s17, 0
    %p65 = por %p63, %p64
    %s67 = sadd.s32 %s66, 1
    %p70 = scmp.eq.s32.totalorder %s11, 1
    %p71 = scmp.ne.s32.totalorder %s66, %s68
    %p72 = scmp.eq.s32.totalorder %s11, 0
    %p73 = por %p71, %p72
    %p74 = scmp.ne.s32.totalorder %s66, %s68
    %p75 = scmp.eq.s32.totalorder %s16, 1
    %p76 = por %p74, %p75
    %p77 = scmp.ne.s32.totalorder %s68, %s69
    %p78 = scmp.eq.s32.totalorder %s16, 0
    %p79 = por %p77, %p78
    %p80 = scmp.ne.s32.totalorder %s68, %s69
    %p81 = scmp.eq.s32.totalorder %s17, 1
    %p82 = por %p80, %p81
    %p84 = scmp.ne.s32.totalorder %s69, %s83
    %p85 = scmp.eq.s32.totalorder %s17, 0
    %p86 = por %p84, %p85
    %s88 = sadd.s32 %s87, 1
    %p91 = scmp.eq.s32.totalorder %s11, 1
    %p92 = scmp.ne.s32.totalorder %s87, %s89
    %p93 = scmp.eq.s32.totalorder %s11, 0
    %p94 = por %p92, %p93
    %p95 = scmp.ne.s32.totalorder %s87, %s89
    %p96 = scmp.eq.s32.totalorder %s16, 1
    %p97 = por %p95, %p96
    %p98 = scmp.ne.s32.totalorder %s89, %s90
    %p99 = scmp.eq.s32.totalorder %s16, 0
    %p100 = por %p98, %p99
    %p101 = scmp.ne.s32.totalorder %s89, %s90
    %p102 = scmp.eq.s32.totalorder %s17, 1
    %p103 = por %p101, %p102
    %p105 = scmp.ne.s32.totalorder %s90, %s104
    %p106 = scmp.eq.s32.totalorder %s17, 0
    %p107 = por %p105, %p106
    %s109 = sadd.s32 %s108, 1
    %p112 = scmp.eq.s32.totalorder %s11, 1
    %p113 = scmp.ne.s32.totalorder %s108, %s110
    %p114 = scmp.eq.s32.totalorder %s11, 0
    %p115 = por %p113, %p114
    %p116 = scmp.ne.s32.totalorder %s108, %s110
    %p117 = scmp.eq.s32.totalorder %s16, 1
    %p118 = por %p116, %p117
    %p119 = scmp.ne.s32.totalorder %s110, %s111
    %p120 = scmp.eq.s32.totalorder %s16, 0
    %p121 = por %p119, %p120
    %p122 = scmp.ne.s32.totalorder %s110, %s111
    %p123 = scmp.eq.s32.totalorder %s17, 1
    %p124 = por %p122, %p123
    %p126 = scmp.ne.s32.totalorder %s111, %s125
    %p127 = scmp.eq.s32.totalorder %s17, 0
    %p128 = por %p126, %p127
    %s129 = ssub.s32 %s11, %s18
    %p130 = scmp.eq.s32.totalorder %s129, 0
    %s132 = sadd.s32 %s131, 1
    %s133 = scalar_select %p130, %s131, %s132
    %p136 = pneg %p130
    %p137 = scmp.eq.s32.totalorder %s11, 1
    %p138 = por %p136, %p137
    %p139 = scmp.ne.s32.totalorder %s131, %s134
    %p140 = scmp.eq.s32.totalorder %s11, 0
    %p141 = por %p139, %p140
    %p142 = scmp.ne.s32.totalorder %s131, %s134
    %p143 = scmp.eq.s32.totalorder %s16, 1
    %p144 = por %p142, %p143
    %p145 = scmp.ne.s32.totalorder %s134, %s135
    %p146 = scmp.eq.s32.totalorder %s16, 0
    %p147 = por %p145, %p146
    %p148 = scmp.ne.s32.totalorder %s134, %s135
    %p149 = scmp.eq.s32.totalorder %s17, 1
    %p150 = por %p148, %p149
    %p152 = scmp.ne.s32.totalorder %s135, %s151
    %p153 = scmp.eq.s32.totalorder %s17, 0
    %p154 = por %p152, %p153
    %p155 = scmp.le.s32.totalorder 1, %s11
    %p156 = scmp.lt.s32.totalorder %s11, 3
    %p157 = pnand %p155, %p156
    %p158 = pneg %p157
    // Predicated region
    $region9: #{mnist_model_forward.1} parent=5 // pred_check
      _
    $region10: #{mnist_model_forward.1} parent=5 // pred_check_branch
      %160 = sbr.rel (%p157) target = $region12
    $region11: #{mnist_model_forward.1} parent=5 // pred_region
      %s161 = ssub.s32 %s11, 1
      // Predicated region
      $region13: #{mnist_model_forward.1} parent=11 // pred_check
        %p162 = pneg %p58
      $region14: #{mnist_model_forward.1} parent=11 // pred_check_branch
        %164 = sbr.rel (%p162) target = $region16
      $region15: #{mnist_model_forward.1} parent=11 // pred_region
        _
      $region16: #{mnist_model_forward.1} parent=11 // pred_fallthru
        _
      // Predicated region
      $region17: #{mnist_model_forward.1} parent=11 // pred_check
        %p165 = pneg %p79
      $region18: #{mnist_model_forward.1} parent=11 // pred_check_branch
        %167 = sbr.rel (%p165) target = $region20
      $region19: #{mnist_model_forward.1} parent=11 // pred_region
        _
      $region20: #{mnist_model_forward.1} parent=11 // pred_fallthru
        _
      // Predicated region
      $region21: #{mnist_model_forward.1} parent=11 // pred_check
        %p168 = pneg %p100
      $region22: #{mnist_model_forward.1} parent=11 // pred_check_branch
        %170 = sbr.rel (%p168) target = $region24
      $region23: #{mnist_model_forward.1} parent=11 // pred_region
        _
      $region24: #{mnist_model_forward.1} parent=11 // pred_fallthru
        _
      // Predicated region
      $region25: #{mnist_model_forward.1} parent=11 // pred_check
        %p171 = pneg %p121
      $region26: #{mnist_model_forward.1} parent=11 // pred_check_branch
        %173 = sbr.rel (%p171) target = $region28
      $region27: #{mnist_model_forward.1} parent=11 // pred_region
        _
      $region28: #{mnist_model_forward.1} parent=11 // pred_fallthru
        _
    $region12: #{mnist_model_forward.1} parent=5 // pred_fallthru
      _
    %p174 = scmp.lt.s32.totalorder %s11, 2
    // Predicated region
    $region29: #{mnist_model_forward.1} parent=5 // pred_check
      %p175 = pneg %p174
    $region30: #{mnist_model_forward.1} parent=5 // pred_check_branch
      %177 = sbr.rel (%p175) target = $region32
    $region31: #{mnist_model_forward.1} parent=5 // pred_region
      // Predicated region
      $region33: #{mnist_model_forward.1} parent=31 // pred_check
        %p178 = pneg %p31
      $region34: #{mnist_model_forward.1} parent=31 // pred_check_branch
        %180 = sbr.rel (%p178) target = $region36
      $region35: #{mnist_model_forward.1} parent=31 // pred_region
        %s181 = smul.u32 16, %s11
        %p182 = scmp.lt.s32.totalorder %s181, 31
        %s183 = scalar_select %p182, %s181, 31
        %s184 = smul.addr %s183, 7
        %s185 = smul.addr %s184, 8
        %s186 = scalar_lea.vmem %s0, %s185
        %s187 = smul.u32 16, %s11
      $region36: #{mnist_model_forward.1} parent=31 // pred_fallthru
        _
    $region32: #{mnist_model_forward.1} parent=5 // pred_fallthru
      _
    %p188 = scmp.le.s32.totalorder 1, %s11
    %p189 = scmp.lt.s32.totalorder %s11, 3
    %p190 = pnand %p188, %p189
    %p191 = pneg %p190
    // Predicated region
    $region37: #{mnist_model_forward.1} parent=5 // pred_check
      _
    $region38: #{mnist_model_forward.1} parent=5 // pred_check_branch
      %193 = sbr.rel (%p190) target = $region40
    $region39: #{mnist_model_forward.1} parent=5 // pred_region
      %s194 = ssub.s32 %s11, 1
      %s195 = smul.u32 16, %s16
      %p196 = scmp.lt.s32.totalorder %s195, 31
      %s197 = scalar_select %p196, %s195, 31
      %s198 = smul.addr %s197, 7
      %s199 = smul.addr %s198, 8
      %s200 = scalar_lea.vmem %s0, %s199
      %p201 = pneg %p37
      %p202 = pneg %p34
      %p203 = pneg %p58
      %p204 = pneg %p55
      %p205 = pneg %p79
      %p206 = pneg %p76
      %p207 = pneg %p100
      %p208 = pneg %p97
      %p209 = pneg %p121
      %p210 = pneg %p118
      %p211 = pneg %p147
      %p212 = pneg %p144
      %s213 = smul.u32 16, %s16
      %p214 = scmp.lt.s32.totalorder %s213, 31
      %s215 = scalar_select %p214, %s213, 31
      %s216 = smul.addr %s215, 8
      %s217 = scalar_lea.vmem %s5, %s216
      %s218 = smul.u32 16, %s16
      %p219 = scmp.lt.s32.totalorder %s218, 31
      %s220 = scalar_select %p219, %s218, 31
      %s221 = smul.addr %s220, 7
      %s222 = smul.addr %s221, 8
      %s223 = scalar_lea.vmem %s0, %s222
      %s224 = smul.u32 16, %s16
      %s225 = smul.u32 16, %s16
      %p226 = scmp.lt.s32.totalorder %s225, 31
      %s227 = scalar_select %p226, %s225, 31
      %s228 = smul.addr %s227, 8
      %s229 = scalar_lea.vmem %s5, %s228
      %s230 = smul.u32 16, %s16
      %v232 = vld [vmem:[%s223] sm:$0xff]
      %v233 = vld [vmem:[%s223 + $0x8] sm:$0xff]
      %v234 = vld [vmem:[%s223 + $0x10] sm:$0xff]
      %v235 = vld [vmem:[%s223 + $0x18] sm:$0xff]
      %v236 = vld [vmem:[%s223 + $0x20] sm:$0xff]
      %v237 = vld [vmem:[%s223 + $0x28] sm:$0xff]
      %v238 = vld [vmem:[%s223 + $0x30] sm:$0xff]
      %v239 = vld [vmem:[%s223 + $0x38] sm:$0xff]
      %v240 = vld [vmem:[%s223 + $0x40] sm:$0xff]
      %v241 = vld [vmem:[%s223 + $0x48] sm:$0xff]
      %v242 = vld [vmem:[%s223 + $0x50] sm:$0xff]
      %v243 = vld [vmem:[%s223 + $0x58] sm:$0xff]
      %v244 = vld [vmem:[%s223 + $0x60] sm:$0xff]
      %v245 = vld [vmem:[%s223 + $0x68] sm:$0xff]
      %v246 = vld [vmem:[%s223 + $0x70] sm:$0xff]
      %v247 = vld [vmem:[%s223 + $0x78] sm:$0xff]
      %v248 = vld [vmem:[%s223 + $0x80] sm:$0xff]
      %v249 = vld [vmem:[%s223 + $0x88] sm:$0xff]
      %v250 = vld [vmem:[%s223 + $0x90] sm:$0xff]
      %v251 = vld [vmem:[%s223 + $0x98] sm:$0xff]
      %v252 = vld [vmem:[%s223 + $0xa0] sm:$0xff]
      %v253 = vld [vmem:[%s223 + $0xa8] sm:$0xff]
      %v254 = vld [vmem:[%s223 + $0xb0] sm:$0xff]
      %v255 = vld [vmem:[%s223 + $0xb8] sm:$0xff]
      %v256 = vld [vmem:[%s223 + $0xc0] sm:$0xff]
      %v257 = vld [vmem:[%s223 + $0xc8] sm:$0xff]
      %v258 = vld [vmem:[%s223 + $0xd0] sm:$0xff]
      %v259 = vld [vmem:[%s223 + $0xd8] sm:$0xff]
      %v260 = vld [vmem:[%s223 + $0xe0] sm:$0xff]
      %v261 = vld [vmem:[%s223 + $0xe8] sm:$0xff]
      %v262 = vld [vmem:[%s223 + $0xf0] sm:$0xff]
      %v263 = vld [vmem:[%s223 + $0xf8] sm:$0xff]
      %v264 = vld [vmem:[%s223 + $0x100] sm:$0xff]
      %v265 = vld [vmem:[%s223 + $0x108] sm:$0xff]
      %v266 = vld [vmem:[%s223 + $0x110] sm:$0xff]
      %v267 = vld [vmem:[%s223 + $0x118] sm:$0xff]
      %v268 = vld [vmem:[%s223 + $0x120] sm:$0xff]
      %v269 = vld [vmem:[%s223 + $0x128] sm:$0xff]
      %v270 = vld [vmem:[%s223 + $0x130] sm:$0xff]
      %v271 = vld [vmem:[%s223 + $0x138] sm:$0xff]
      %v272 = vld [vmem:[%s223 + $0x140] sm:$0xff]
      %v273 = vld [vmem:[%s223 + $0x148] sm:$0xff]
      %v274 = vld [vmem:[%s223 + $0x150] sm:$0xff]
      %v275 = vld [vmem:[%s223 + $0x158] sm:$0xff]
      %v276 = vld [vmem:[%s223 + $0x160] sm:$0xff]
      %v277 = vld [vmem:[%s223 + $0x168] sm:$0xff]
      %v278 = vld [vmem:[%s223 + $0x170] sm:$0xff]
      %v279 = vld [vmem:[%s223 + $0x178] sm:$0xff]
      %v280 = vld [vmem:[%s223 + $0x180] sm:$0xff]
      %v281 = vld [vmem:[%s223 + $0x188] sm:$0xff]
      %v282 = vld [vmem:[%s223 + $0x190] sm:$0xff]
      %v283 = vld [vmem:[%s223 + $0x198] sm:$0xff]
      %v284 = vld [vmem:[%s223 + $0x1a0] sm:$0xff]
      %v285 = vld [vmem:[%s223 + $0x1a8] sm:$0xff]
      %v286 = vld [vmem:[%s223 + $0x1b0] sm:$0xff]
      %v287 = vld [vmem:[%s223 + $0x1b8] sm:$0xff]
      %v288 = vld [vmem:[%s223 + $0x1c0] sm:$0xff]
      %v289 = vld [vmem:[%s223 + $0x1c8] sm:$0xff]
      %v290 = vld [vmem:[%s223 + $0x1d0] sm:$0xff]
      %v291 = vld [vmem:[%s223 + $0x1d8] sm:$0xff]
      %v292 = vld [vmem:[%s223 + $0x1e0] sm:$0xff]
      %v293 = vld [vmem:[%s223 + $0x1e8] sm:$0xff]
      %v294 = vld [vmem:[%s223 + $0x1f0] sm:$0xff]
      %v295 = vld [vmem:[%s223 + $0x1f8] sm:$0xff]
      %v296 = vld [vmem:[%s223 + $0x200] sm:$0xff]
      %v297 = vld [vmem:[%s223 + $0x208] sm:$0xff]
      %v298 = vld [vmem:[%s223 + $0x210] sm:$0xff]
      %v299 = vld [vmem:[%s223 + $0x218] sm:$0xff]
      %v300 = vld [vmem:[%s223 + $0x220] sm:$0xff]
      %v301 = vld [vmem:[%s223 + $0x228] sm:$0xff]
      %v302 = vld [vmem:[%s223 + $0x230] sm:$0xff]
      %v303 = vld [vmem:[%s223 + $0x238] sm:$0xff]
      %v304 = vld [vmem:[%s223 + $0x240] sm:$0xff]
      %v305 = vld [vmem:[%s223 + $0x248] sm:$0xff]
      %v306 = vld [vmem:[%s223 + $0x250] sm:$0xff]
      %v307 = vld [vmem:[%s223 + $0x258] sm:$0xff]
      %v308 = vld [vmem:[%s223 + $0x260] sm:$0xff]
      %v309 = vld [vmem:[%s223 + $0x268] sm:$0xff]
      %v310 = vld [vmem:[%s223 + $0x270] sm:$0xff]
      %v311 = vld [vmem:[%s223 + $0x278] sm:$0xff]
      %v312 = vld [vmem:[%s223 + $0x280] sm:$0xff]
      %v313 = vld [vmem:[%s223 + $0x288] sm:$0xff]
      %v314 = vld [vmem:[%s223 + $0x290] sm:$0xff]
      %v315 = vld [vmem:[%s223 + $0x298] sm:$0xff]
      %v316 = vld [vmem:[%s223 + $0x2a0] sm:$0xff]
      %v317 = vld [vmem:[%s223 + $0x2a8] sm:$0xff]
      %v318 = vld [vmem:[%s223 + $0x2b0] sm:$0xff]
      %v319 = vld [vmem:[%s223 + $0x2b8] sm:$0xff]
      %v320 = vld [vmem:[%s223 + $0x2c0] sm:$0xff]
      %v321 = vld [vmem:[%s223 + $0x2c8] sm:$0xff]
      %v322 = vld [vmem:[%s223 + $0x2d0] sm:$0xff]
      %v323 = vld [vmem:[%s223 + $0x2d8] sm:$0xff]
      %v324 = vld [vmem:[%s223 + $0x2e0] sm:$0xff]
      %v325 = vld [vmem:[%s223 + $0x2e8] sm:$0xff]
      %v326 = vld [vmem:[%s223 + $0x2f0] sm:$0xff]
      %v327 = vld [vmem:[%s223 + $0x2f8] sm:$0xff]
      %v328 = vld [vmem:[%s223 + $0x300] sm:$0xff]
      %v329 = vld [vmem:[%s223 + $0x308] sm:$0xff]
      %v330 = vld [vmem:[%s223 + $0x310] sm:$0xff]
      %v331 = vld [vmem:[%s223 + $0x318] sm:$0xff]
      %v332 = vld [vmem:[%s223 + $0x320] sm:$0xff]
      %v333 = vld [vmem:[%s223 + $0x328] sm:$0xff]
      %v334 = vld [vmem:[%s223 + $0x330] sm:$0xff]
      %v335 = vld [vmem:[%s223 + $0x338] sm:$0xff]
      %v336 = vld [vmem:[%s223 + $0x340] sm:$0xff]
      %v337 = vld [vmem:[%s223 + $0x348] sm:$0xff]
      %v338 = vld [vmem:[%s223 + $0x350] sm:$0xff]
      %v339 = vld [vmem:[%s223 + $0x358] sm:$0xff]
      %v340 = vld [vmem:[%s223 + $0x360] sm:$0xff]
      %v341 = vld [vmem:[%s223 + $0x368] sm:$0xff]
      %v342 = vld [vmem:[%s223 + $0x370] sm:$0xff]
      %v343 = vld [vmem:[%s223 + $0x378] sm:$0xff]
      %v344 = vpack.c.bf16 %v239, %v232
      %v345 = vpack.c.bf16 %v240, %v233
      %v346 = vpack.c.bf16 %v241, %v234
      %v347 = vpack.c.bf16 %v242, %v235
      %v348 = vpack.c.bf16 %v243, %v236
      %v349 = vpack.c.bf16 %v244, %v237
      %v350 = vpack.c.bf16 %v245, %v238
      %v351 = vpack.c.bf16 %v253, %v246
      %v352 = vpack.c.bf16 %v254, %v247
      %v353 = vpack.c.bf16 %v255, %v248
      %v354 = vpack.c.bf16 %v256, %v249
      %v355 = vpack.c.bf16 %v257, %v250
      %v356 = vpack.c.bf16 %v258, %v251
      %v357 = vpack.c.bf16 %v259, %v252
      %v358 = vpack.c.bf16 %v267, %v260
      %v359 = vpack.c.bf16 %v268, %v261
      %v360 = vpack.c.bf16 %v269, %v262
      %v361 = vpack.c.bf16 %v270, %v263
      %v362 = vpack.c.bf16 %v271, %v264
      %v363 = vpack.c.bf16 %v272, %v265
      %v364 = vpack.c.bf16 %v273, %v266
      %v365 = vpack.c.bf16 %v281, %v274
      %v366 = vpack.c.bf16 %v282, %v275
      %v367 = vpack.c.bf16 %v283, %v276
      %v368 = vpack.c.bf16 %v284, %v277
      %v369 = vpack.c.bf16 %v285, %v278
      %v370 = vpack.c.bf16 %v286, %v279
      %v371 = vpack.c.bf16 %v287, %v280
      %v372 = vpack.c.bf16 %v295, %v288
      %v373 = vpack.c.bf16 %v296, %v289
      %v374 = vpack.c.bf16 %v297, %v290
      %v375 = vpack.c.bf16 %v298, %v291
      %v376 = vpack.c.bf16 %v299, %v292
      %v377 = vpack.c.bf16 %v300, %v293
      %v378 = vpack.c.bf16 %v301, %v294
      %v379 = vpack.c.bf16 %v309, %v302
      %v380 = vpack.c.bf16 %v310, %v303
      %v381 = vpack.c.bf16 %v311, %v304
      %v382 = vpack.c.bf16 %v312, %v305
      %v383 = vpack.c.bf16 %v313, %v306
      %v384 = vpack.c.bf16 %v314, %v307
      %v385 = vpack.c.bf16 %v315, %v308
      %v386 = vpack.c.bf16 %v323, %v316
      %v387 = vpack.c.bf16 %v324, %v317
      %v388 = vpack.c.bf16 %v325, %v318
      %v389 = vpack.c.bf16 %v326, %v319
      %v390 = vpack.c.bf16 %v327, %v320
      %v391 = vpack.c.bf16 %v328, %v321
      %v392 = vpack.c.bf16 %v329, %v322
      %v393 = vpack.c.bf16 %v337, %v330
      %v394 = vpack.c.bf16 %v338, %v331
      %v395 = vpack.c.bf16 %v339, %v332
      %v396 = vpack.c.bf16 %v340, %v333
      %v397 = vpack.c.bf16 %v341, %v334
      %v398 = vpack.c.bf16 %v342, %v335
      %v399 = vpack.c.bf16 %v343, %v336
      %v400 = vld [vmem:[%s1] sm:$0xff]
      %v401 = vld [vmem:[%s1 + $0x8] sm:$0xff]
      %v402 = vld [vmem:[%s1 + $0x10] sm:$0xff]
      %v403 = vld [vmem:[%s1 + $0x18] sm:$0xff]
      %v404 = vld [vmem:[%s1 + $0x20] sm:$0xff]
      %v405 = vld [vmem:[%s1 + $0x28] sm:$0xff]
      %v406 = vld [vmem:[%s1 + $0x30] sm:$0xff]
      %v407 = vld [vmem:[%s1 + $0x38] sm:$0xff]
      %v408 = vld [vmem:[%s1 + $0x40] sm:$0xff]
      %v409 = vld [vmem:[%s1 + $0x48] sm:$0xff]
      %v410 = vld [vmem:[%s1 + $0x50] sm:$0xff]
      %v411 = vld [vmem:[%s1 + $0x58] sm:$0xff]
      %v412 = vld [vmem:[%s1 + $0x60] sm:$0xff]
      %v413 = vld [vmem:[%s1 + $0x68] sm:$0xff]
      %v414 = vld [vmem:[%s1 + $0x70] sm:$0xff]
      %v415 = vld [vmem:[%s1 + $0x78] sm:$0xff]
      %v416 = vld [vmem:[%s1 + $0x80] sm:$0xff]
      %v417 = vld [vmem:[%s1 + $0x88] sm:$0xff]
      %v418 = vld [vmem:[%s1 + $0x90] sm:$0xff]
      %v419 = vld [vmem:[%s1 + $0x98] sm:$0xff]
      %v420 = vld [vmem:[%s1 + $0xa0] sm:$0xff]
      %v421 = vld [vmem:[%s1 + $0xa8] sm:$0xff]
      %v422 = vld [vmem:[%s1 + $0xb0] sm:$0xff]
      %v423 = vld [vmem:[%s1 + $0xb8] sm:$0xff]
      %v424 = vld [vmem:[%s1 + $0xc0] sm:$0xff]
      %v425 = vld [vmem:[%s1 + $0xc8] sm:$0xff]
      %v426 = vld [vmem:[%s1 + $0xd0] sm:$0xff]
      %v427 = vld [vmem:[%s1 + $0xd8] sm:$0xff]
      %v428 = vld [vmem:[%s1 + $0xe0] sm:$0xff]
      %v429 = vld [vmem:[%s1 + $0xe8] sm:$0xff]
      %v430 = vld [vmem:[%s1 + $0xf0] sm:$0xff]
      %v431 = vld [vmem:[%s1 + $0xf8] sm:$0xff]
      %v432 = vld [vmem:[%s1 + $0x100] sm:$0xff]
      %v433 = vld [vmem:[%s1 + $0x108] sm:$0xff]
      %v434 = vld [vmem:[%s1 + $0x110] sm:$0xff]
      %v435 = vld [vmem:[%s1 + $0x118] sm:$0xff]
      %v436 = vld [vmem:[%s1 + $0x120] sm:$0xff]
      %v437 = vld [vmem:[%s1 + $0x128] sm:$0xff]
      %v438 = vld [vmem:[%s1 + $0x130] sm:$0xff]
      %v439 = vld [vmem:[%s1 + $0x138] sm:$0xff]
      %v440 = vld [vmem:[%s1 + $0x140] sm:$0xff]
      %v441 = vld [vmem:[%s1 + $0x148] sm:$0xff]
      %v442 = vld [vmem:[%s1 + $0x150] sm:$0xff]
      %v443 = vld [vmem:[%s1 + $0x158] sm:$0xff]
      %v444 = vld [vmem:[%s1 + $0x160] sm:$0xff]
      %v445 = vld [vmem:[%s1 + $0x168] sm:$0xff]
      %v446 = vld [vmem:[%s1 + $0x170] sm:$0xff]
      %v447 = vld [vmem:[%s1 + $0x178] sm:$0xff]
      %v448 = vld [vmem:[%s1 + $0x180] sm:$0xff]
      %v449 = vld [vmem:[%s1 + $0x188] sm:$0xff]
      %v450 = vld [vmem:[%s1 + $0x190] sm:$0xff]
      %v451 = vld [vmem:[%s1 + $0x198] sm:$0xff]
      %v452 = vld [vmem:[%s1 + $0x1a0] sm:$0xff]
      %v453 = vld [vmem:[%s1 + $0x1a8] sm:$0xff]
      %v454 = vld [vmem:[%s1 + $0x1b0] sm:$0xff]
      %v455 = vld [vmem:[%s1 + $0x1b8] sm:$0xff]
      %v456 = vld [vmem:[%s1 + $0x1c0] sm:$0xff]
      %v457 = vld [vmem:[%s1 + $0x1c8] sm:$0xff]
      %v458 = vld [vmem:[%s1 + $0x1d0] sm:$0xff]
      %v459 = vld [vmem:[%s1 + $0x1d8] sm:$0xff]
      %v460 = vld [vmem:[%s1 + $0x1e0] sm:$0xff]
      %v461 = vld [vmem:[%s1 + $0x1e8] sm:$0xff]
      %v462 = vld [vmem:[%s1 + $0x1f0] sm:$0xff]
      %v463 = vld [vmem:[%s1 + $0x1f8] sm:$0xff]
      %v464 = vld [vmem:[%s1 + $0x200] sm:$0xff]
      %v465 = vld [vmem:[%s1 + $0x208] sm:$0xff]
      %v466 = vld [vmem:[%s1 + $0x210] sm:$0xff]
      %v467 = vld [vmem:[%s1 + $0x218] sm:$0xff]
      %v468 = vld [vmem:[%s1 + $0x220] sm:$0xff]
      %v469 = vld [vmem:[%s1 + $0x228] sm:$0xff]
      %v470 = vld [vmem:[%s1 + $0x230] sm:$0xff]
      %v471 = vld [vmem:[%s1 + $0x238] sm:$0xff]
      %v472 = vld [vmem:[%s1 + $0x240] sm:$0xff]
      %v473 = vld [vmem:[%s1 + $0x248] sm:$0xff]
      %v474 = vld [vmem:[%s1 + $0x250] sm:$0xff]
      %v475 = vld [vmem:[%s1 + $0x258] sm:$0xff]
      %v476 = vld [vmem:[%s1 + $0x260] sm:$0xff]
      %v477 = vld [vmem:[%s1 + $0x268] sm:$0xff]
      %v478 = vld [vmem:[%s1 + $0x270] sm:$0xff]
      %v479 = vld [vmem:[%s1 + $0x278] sm:$0xff]
      %v480 = vld [vmem:[%s1 + $0x280] sm:$0xff]
      %v481 = vld [vmem:[%s1 + $0x288] sm:$0xff]
      %v482 = vld [vmem:[%s1 + $0x290] sm:$0xff]
      %v483 = vld [vmem:[%s1 + $0x298] sm:$0xff]
      %v484 = vld [vmem:[%s1 + $0x2a0] sm:$0xff]
      %v485 = vld [vmem:[%s1 + $0x2a8] sm:$0xff]
      %v486 = vld [vmem:[%s1 + $0x2b0] sm:$0xff]
      %v487 = vld [vmem:[%s1 + $0x2b8] sm:$0xff]
      %v488 = vld [vmem:[%s1 + $0x2c0] sm:$0xff]
      %v489 = vld [vmem:[%s1 + $0x2c8] sm:$0xff]
      %v490 = vld [vmem:[%s1 + $0x2d0] sm:$0xff]
      %v491 = vld [vmem:[%s1 + $0x2d8] sm:$0xff]
      %v492 = vld [vmem:[%s1 + $0x2e0] sm:$0xff]
      %v493 = vld [vmem:[%s1 + $0x2e8] sm:$0xff]
      %v494 = vld [vmem:[%s1 + $0x2f0] sm:$0xff]
      %v495 = vld [vmem:[%s1 + $0x2f8] sm:$0xff]
      %v496 = vld [vmem:[%s1 + $0x300] sm:$0xff]
      %v497 = vld [vmem:[%s1 + $0x308] sm:$0xff]
      %v498 = vld [vmem:[%s2] sm:$0x3]
      %v500 = vlaneseq
      %v501 = vshrl.u32 %v500, 7
      %v502 = vsub.s32 0, %v501
      %v503 = vrot.slane %v498, %v502
      %v504 = vlaneseq
      %v505 = vshrl.u32 %v504, 7
      %v506 = vsub.s32 1, %v505
      %v507 = vrot.slane %v498, %v506
      %v608 = vunpack.c.l.b16 %v400
      %v609 = vunpack.c.h.b16 %v400
      %v610 = vunpack.c.l.b16 %v401
      %v611 = vunpack.c.h.b16 %v401
      %v612 = vunpack.c.l.b16 %v402
      %v613 = vunpack.c.h.b16 %v402
      %v614 = vunpack.c.l.b16 %v403
      %v615 = vunpack.c.h.b16 %v403
      %v616 = vunpack.c.l.b16 %v404
      %v617 = vunpack.c.h.b16 %v404
      %v618 = vunpack.c.l.b16 %v405
      %v619 = vunpack.c.h.b16 %v405
      %v620 = vunpack.c.l.b16 %v406
      %v621 = vunpack.c.h.b16 %v406
      %v622 = vunpack.c.l.b16 %v407
      %v623 = vunpack.c.h.b16 %v407
      %v624 = vunpack.c.l.b16 %v408
      %v625 = vunpack.c.h.b16 %v408
      %v626 = vunpack.c.l.b16 %v409
      %v627 = vunpack.c.h.b16 %v409
      %v628 = vunpack.c.l.b16 %v410
      %v629 = vunpack.c.h.b16 %v410
      %v630 = vunpack.c.l.b16 %v411
      %v631 = vunpack.c.h.b16 %v411
      %v632 = vunpack.c.l.b16 %v412
      %v633 = vunpack.c.h.b16 %v412
      %v634 = vunpack.c.l.b16 %v413
      %v635 = vunpack.c.h.b16 %v413
      %v636 = vunpack.c.l.b16 %v414
      %v637 = vunpack.c.h.b16 %v414
      %v638 = vunpack.c.l.b16 %v415
      %v639 = vunpack.c.h.b16 %v415
      %v640 = vunpack.c.l.b16 %v416
      %v641 = vunpack.c.h.b16 %v416
      %v642 = vunpack.c.l.b16 %v417
      %v643 = vunpack.c.h.b16 %v417
      %v644 = vunpack.c.l.b16 %v418
      %v645 = vunpack.c.h.b16 %v418
      %v646 = vunpack.c.l.b16 %v419
      %v647 = vunpack.c.h.b16 %v419
      %v648 = vunpack.c.l.b16 %v420
      %v649 = vunpack.c.h.b16 %v420
      %v650 = vunpack.c.l.b16 %v421
      %v651 = vunpack.c.h.b16 %v421
      %v652 = vunpack.c.l.b16 %v422
      %v653 = vunpack.c.h.b16 %v422
      %v654 = vunpack.c.l.b16 %v423
      %v655 = vunpack.c.h.b16 %v423
      %v656 = vunpack.c.l.b16 %v424
      %v657 = vunpack.c.h.b16 %v424
      %v658 = vunpack.c.l.b16 %v425
      %v659 = vunpack.c.h.b16 %v425
      %v660 = vunpack.c.l.b16 %v426
      %v661 = vunpack.c.h.b16 %v426
      %v662 = vunpack.c.l.b16 %v427
      %v663 = vunpack.c.h.b16 %v427
      %v664 = vunpack.c.l.b16 %v428
      %v665 = vunpack.c.h.b16 %v428
      %v666 = vunpack.c.l.b16 %v429
      %v667 = vunpack.c.h.b16 %v429
      %v668 = vunpack.c.l.b16 %v430
      %v669 = vunpack.c.h.b16 %v430
      %v670 = vunpack.c.l.b16 %v431
      %v671 = vunpack.c.h.b16 %v431
      %v672 = vunpack.c.l.b16 %v432
      %v673 = vunpack.c.h.b16 %v432
      %v674 = vunpack.c.l.b16 %v433
      %v675 = vunpack.c.h.b16 %v433
      %v676 = vunpack.c.l.b16 %v434
      %v677 = vunpack.c.h.b16 %v434
      %v678 = vunpack.c.l.b16 %v435
      %v679 = vunpack.c.h.b16 %v435
      %v680 = vunpack.c.l.b16 %v436
      %v681 = vunpack.c.h.b16 %v436
      %v682 = vunpack.c.l.b16 %v437
      %v683 = vunpack.c.h.b16 %v437
      %v684 = vunpack.c.l.b16 %v438
      %v685 = vunpack.c.h.b16 %v438
      %v686 = vunpack.c.l.b16 %v439
      %v687 = vunpack.c.h.b16 %v439
      %v688 = vunpack.c.l.b16 %v440
      %v689 = vunpack.c.h.b16 %v440
      %v690 = vunpack.c.l.b16 %v441
      %v691 = vunpack.c.h.b16 %v441
      %v692 = vunpack.c.l.b16 %v442
      %v693 = vunpack.c.h.b16 %v442
      %v694 = vunpack.c.l.b16 %v443
      %v695 = vunpack.c.h.b16 %v443
      %v696 = vunpack.c.l.b16 %v444
      %v697 = vunpack.c.h.b16 %v444
      %v698 = vunpack.c.l.b16 %v445
      %v699 = vunpack.c.h.b16 %v445
      %v700 = vunpack.c.l.b16 %v446
      %v701 = vunpack.c.h.b16 %v446
      %v702 = vunpack.c.l.b16 %v447
      %v703 = vunpack.c.h.b16 %v447
      %v704 = vunpack.c.l.b16 %v448
      %v705 = vunpack.c.h.b16 %v448
      %v706 = vunpack.c.l.b16 %v449
      %v707 = vunpack.c.h.b16 %v449
      %v708 = vunpack.c.l.b16 %v450
      %v709 = vunpack.c.h.b16 %v450
      %v710 = vunpack.c.l.b16 %v451
      %v711 = vunpack.c.h.b16 %v451
      %v712 = vunpack.c.l.b16 %v452
      %v713 = vunpack.c.h.b16 %v452
      %v714 = vunpack.c.l.b16 %v453
      %v715 = vunpack.c.h.b16 %v453
      %v716 = vunpack.c.l.b16 %v454
      %v717 = vunpack.c.h.b16 %v454
      %v718 = vunpack.c.l.b16 %v455
      %v719 = vunpack.c.h.b16 %v455
      %v720 = vunpack.c.l.b16 %v456
      %v721 = vunpack.c.h.b16 %v456
      %v722 = vunpack.c.l.b16 %v457
      %v723 = vunpack.c.h.b16 %v457
      %v724 = vunpack.c.l.b16 %v458
      %v725 = vunpack.c.h.b16 %v458
      %v726 = vunpack.c.l.b16 %v459
      %v727 = vunpack.c.h.b16 %v459
      %v728 = vunpack.c.l.b16 %v460
      %v729 = vunpack.c.h.b16 %v460
      %v730 = vunpack.c.l.b16 %v461
      %v731 = vunpack.c.h.b16 %v461
      %v732 = vunpack.c.l.b16 %v462
      %v733 = vunpack.c.h.b16 %v462
      %v734 = vunpack.c.l.b16 %v463
      %v735 = vunpack.c.h.b16 %v463
      %v736 = vunpack.c.l.b16 %v464
      %v737 = vunpack.c.h.b16 %v464
      %v738 = vunpack.c.l.b16 %v465
      %v739 = vunpack.c.h.b16 %v465
      %v740 = vunpack.c.l.b16 %v466
      %v741 = vunpack.c.h.b16 %v466
      %v742 = vunpack.c.l.b16 %v467
      %v743 = vunpack.c.h.b16 %v467
      %v744 = vunpack.c.l.b16 %v468
      %v745 = vunpack.c.h.b16 %v468
      %v746 = vunpack.c.l.b16 %v469
      %v747 = vunpack.c.h.b16 %v469
      %v748 = vunpack.c.l.b16 %v470
      %v749 = vunpack.c.h.b16 %v470
      %v750 = vunpack.c.l.b16 %v471
      %v751 = vunpack.c.h.b16 %v471
      %v752 = vunpack.c.l.b16 %v472
      %v753 = vunpack.c.h.b16 %v472
      %v754 = vunpack.c.l.b16 %v473
      %v755 = vunpack.c.h.b16 %v473
      %v756 = vunpack.c.l.b16 %v474
      %v757 = vunpack.c.h.b16 %v474
      %v758 = vunpack.c.l.b16 %v475
      %v759 = vunpack.c.h.b16 %v475
      %v760 = vunpack.c.l.b16 %v476
      %v761 = vunpack.c.h.b16 %v476
      %v762 = vunpack.c.l.b16 %v477
      %v763 = vunpack.c.h.b16 %v477
      %v764 = vunpack.c.l.b16 %v478
      %v765 = vunpack.c.h.b16 %v478
      %v766 = vunpack.c.l.b16 %v479
      %v767 = vunpack.c.h.b16 %v479
      %v768 = vunpack.c.l.b16 %v480
      %v769 = vunpack.c.h.b16 %v480
      %v770 = vunpack.c.l.b16 %v481
      %v771 = vunpack.c.h.b16 %v481
      %v772 = vunpack.c.l.b16 %v482
      %v773 = vunpack.c.h.b16 %v482
      %v774 = vunpack.c.l.b16 %v483
      %v775 = vunpack.c.h.b16 %v483
      %v776 = vunpack.c.l.b16 %v484
      %v777 = vunpack.c.h.b16 %v484
      %v778 = vunpack.c.l.b16 %v485
      %v779 = vunpack.c.h.b16 %v485
      %v780 = vunpack.c.l.b16 %v486
      %v781 = vunpack.c.h.b16 %v486
      %v782 = vunpack.c.l.b16 %v487
      %v783 = vunpack.c.h.b16 %v487
      %v784 = vunpack.c.l.b16 %v488
      %v785 = vunpack.c.h.b16 %v488
      %v786 = vunpack.c.l.b16 %v489
      %v787 = vunpack.c.h.b16 %v489
      %v788 = vunpack.c.l.b16 %v490
      %v789 = vunpack.c.h.b16 %v490
      %v790 = vunpack.c.l.b16 %v491
      %v791 = vunpack.c.h.b16 %v491
      %v792 = vunpack.c.l.b16 %v492
      %v793 = vunpack.c.h.b16 %v492
      %v794 = vunpack.c.l.b16 %v493
      %v795 = vunpack.c.h.b16 %v493
      %v796 = vunpack.c.l.b16 %v494
      %v797 = vunpack.c.h.b16 %v494
      %v798 = vunpack.c.l.b16 %v495
      %v799 = vunpack.c.h.b16 %v495
      %v800 = vunpack.c.l.b16 %v496
      %v801 = vunpack.c.h.b16 %v496
      %v802 = vunpack.c.l.b16 %v497
      %v803 = vunpack.c.h.b16 %v497
      %v804 = vpack.c.b16 %v610, %v608
      %v805 = vpack.c.b16 %v611, %v609
      %v806 = vpack.c.b16 %v614, %v612
      %v807 = vpack.c.b16 %v615, %v613
      %v808 = vpack.c.b16 %v618, %v616
      %v809 = vpack.c.b16 %v619, %v617
      %v810 = vpack.c.b16 %v622, %v620
      %v811 = vpack.c.b16 %v623, %v621
      %v812 = vpack.c.b16 %v626, %v624
      %v813 = vpack.c.b16 %v627, %v625
      %v814 = vpack.c.b16 %v630, %v628
      %v815 = vpack.c.b16 %v631, %v629
      %v816 = vpack.c.b16 %v634, %v632
      %v817 = vpack.c.b16 %v635, %v633
      %v818 = vpack.c.b16 %v638, %v636
      %v819 = vpack.c.b16 %v639, %v637
      %v820 = vpack.c.b16 %v642, %v640
      %v821 = vpack.c.b16 %v643, %v641
      %v822 = vpack.c.b16 %v646, %v644
      %v823 = vpack.c.b16 %v647, %v645
      %v824 = vpack.c.b16 %v650, %v648
      %v825 = vpack.c.b16 %v651, %v649
      %v826 = vpack.c.b16 %v654, %v652
      %v827 = vpack.c.b16 %v655, %v653
      %v828 = vpack.c.b16 %v658, %v656
      %v829 = vpack.c.b16 %v659, %v657
      %v830 = vpack.c.b16 %v662, %v660
      %v831 = vpack.c.b16 %v663, %v661
      %v832 = vpack.c.b16 %v666, %v664
      %v833 = vpack.c.b16 %v667, %v665
      %v834 = vpack.c.b16 %v670, %v668
      %v835 = vpack.c.b16 %v671, %v669
      %v836 = vpack.c.b16 %v674, %v672
      %v837 = vpack.c.b16 %v675, %v673
      %v838 = vpack.c.b16 %v678, %v676
      %v839 = vpack.c.b16 %v679, %v677
      %v840 = vpack.c.b16 %v682, %v680
      %v841 = vpack.c.b16 %v683, %v681
      %v842 = vpack.c.b16 %v686, %v684
      %v843 = vpack.c.b16 %v687, %v685
      %v844 = vpack.c.b16 %v690, %v688
      %v845 = vpack.c.b16 %v691, %v689
      %v846 = vpack.c.b16 %v694, %v692
      %v847 = vpack.c.b16 %v695, %v693
      %v848 = vpack.c.b16 %v698, %v696
      %v849 = vpack.c.b16 %v699, %v697
      %v850 = vpack.c.b16 %v702, %v700
      %v851 = vpack.c.b16 %v703, %v701
      %v852 = vpack.c.b16 %v706, %v704
      %v853 = vpack.c.b16 %v707, %v705
      %v854 = vpack.c.b16 %v710, %v708
      %v855 = vpack.c.b16 %v711, %v709
      %v856 = vpack.c.b16 %v714, %v712
      %v857 = vpack.c.b16 %v715, %v713
      %v858 = vpack.c.b16 %v718, %v716
      %v859 = vpack.c.b16 %v719, %v717
      %v860 = vpack.c.b16 %v722, %v720
      %v861 = vpack.c.b16 %v723, %v721
      %v862 = vpack.c.b16 %v726, %v724
      %v863 = vpack.c.b16 %v727, %v725
      %v864 = vpack.c.b16 %v730, %v728
      %v865 = vpack.c.b16 %v731, %v729
      %v866 = vpack.c.b16 %v734, %v732
      %v867 = vpack.c.b16 %v735, %v733
      %v868 = vpack.c.b16 %v738, %v736
      %v869 = vpack.c.b16 %v739, %v737
      %v870 = vpack.c.b16 %v742, %v740
      %v871 = vpack.c.b16 %v743, %v741
      %v872 = vpack.c.b16 %v746, %v744
      %v873 = vpack.c.b16 %v747, %v745
      %v874 = vpack.c.b16 %v750, %v748
      %v875 = vpack.c.b16 %v751, %v749
      %v876 = vpack.c.b16 %v754, %v752
      %v877 = vpack.c.b16 %v755, %v753
      %v878 = vpack.c.b16 %v758, %v756
      %v879 = vpack.c.b16 %v759, %v757
      %v880 = vpack.c.b16 %v762, %v760
      %v881 = vpack.c.b16 %v763, %v761
      %v882 = vpack.c.b16 %v766, %v764
      %v883 = vpack.c.b16 %v767, %v765
      %v884 = vpack.c.b16 %v770, %v768
      %v885 = vpack.c.b16 %v771, %v769
      %v886 = vpack.c.b16 %v774, %v772
      %v887 = vpack.c.b16 %v775, %v773
      %v888 = vpack.c.b16 %v778, %v776
      %v889 = vpack.c.b16 %v779, %v777
      %v890 = vpack.c.b16 %v782, %v780
      %v891 = vpack.c.b16 %v783, %v781
      %v892 = vpack.c.b16 %v786, %v784
      %v893 = vpack.c.b16 %v787, %v785
      %v894 = vpack.c.b16 %v790, %v788
      %v895 = vpack.c.b16 %v791, %v789
      %v896 = vpack.c.b16 %v794, %v792
      %v897 = vpack.c.b16 %v795, %v793
      %v898 = vpack.c.b16 %v798, %v796
      %v899 = vpack.c.b16 %v799, %v797
      %v900 = vpack.c.b16 %v802, %v800
      %v901 = vpack.c.b16 %v803, %v801
      %vm1000 = vcmask 130048
      %v1002 = vsel %vm1000, %v350, 0
      %v1005 = vsel %vm1000, %v357, 0
      %v1008 = vsel %vm1000, %v364, 0
      %v1011 = vsel %vm1000, %v371, 0
      %v1014 = vsel %vm1000, %v378, 0
      %v1017 = vsel %vm1000, %v385, 0
      %v1020 = vsel %vm1000, %v392, 0
      %v1023 = vsel %vm1000, %v399, 0
      %1025 = vmatprep.subr.bf16.mxu0 %v805
      %1026 = vmatpush1.bf16.msra.mxu0 %v804
      %1027 = vmatprep.subr.bf16.mxu0 %v807
      %1028 = vmatpush1.bf16.msra.mxu0 %v806
      %1029 = vmatprep.subr.bf16.mxu0 %v809
      %1030 = vmatpush1.bf16.msra.mxu0 %v808
      %1031 = vmatprep.subr.bf16.mxu0 %v811
      %1032 = vmatpush1.bf16.msra.mxu0 %v810
      %1033 = vmatprep.subr.bf16.mxu0 %v813
      %1034 = vmatpush1.bf16.msra.mxu0 %v812
      %1035 = vmatprep.subr.bf16.mxu0 %v815
      %1036 = vmatpush1.bf16.msra.mxu0 %v814
      %1037 = vmatprep.subr.bf16.mxu0 %v817
      %1038 = vmatpush1.bf16.msra.mxu0 %v816
      %1039 = vmatprep.subr.bf16.mxu0 %v819
      %1040 = vmatpush1.bf16.msra.mxu0 %v818
      %1041 = vmatprep.subr.bf16.mxu0 %v821
      %1042 = vmatpush1.bf16.msra.mxu0 %v820
      %1043 = vmatprep.subr.bf16.mxu0 %v823
      %1044 = vmatpush1.bf16.msra.mxu0 %v822
      %1045 = vmatprep.subr.bf16.mxu0 %v825
      %1046 = vmatpush1.bf16.msra.mxu0 %v824
      %1047 = vmatprep.subr.bf16.mxu0 %v827
      %1048 = vmatpush1.bf16.msra.mxu0 %v826
      %1049 = vmatprep.subr.bf16.mxu0 %v829
      %1050 = vmatpush1.bf16.msra.mxu0 %v828
      %1051 = vmatprep.subr.bf16.mxu0 %v831
      %1052 = vmatpush1.bf16.msra.mxu0 %v830
      %1053 = vmatprep.subr.bf16.mxu0 %v833
      %1054 = vmatpush1.bf16.msra.mxu0 %v832
      %1055 = vmatprep.subr.bf16.mxu0 %v835
      %1056 = vmatpush1.bf16.msra.mxu0 %v834
      %1057 = vmatprep.mubr.bf16.mxu0 %v345
      %1058 = vmatmul.mubr.bf16.gmra.mrb[0].mxu0 %v344
      %v1059 = vpop.f32.mrb[0].mxu0
      %v1060 = vadd.f32 %v503, %v1059
      %v1061 = vpop.f32.mrb[0].mxu0
      %v1062 = vadd.f32 %v507, %v1061
      %v1063 = vpop.f32.mrb[0].mxu0
      %v1064 = vadd.f32 %v503, %v1063
      %v1065 = vpop.f32.mrb[0].mxu0
      %v1066 = vadd.f32 %v507, %v1065
      %1067 = vmatprep.mubr.bf16.mxu0 %v352
      %1068 = vmatmul.mubr.bf16.gmra.mrb[0].mxu0 %v351
      %v1069 = vpop.f32.mrb[0].mxu0
      %v1070 = vadd.f32 %v503, %v1069
      %v1071 = vpop.f32.mrb[0].mxu0
      %v1072 = vadd.f32 %v507, %v1071
      %v1073 = vpop.f32.mrb[0].mxu0
      %v1074 = vadd.f32 %v503, %v1073
      %v1075 = vpop.f32.mrb[0].mxu0
      %v1076 = vadd.f32 %v507, %v1075
      %1077 = vmatprep.mubr.bf16.mxu0 %v359
      %1078 = vmatmul.mubr.bf16.gmra.mrb[0].mxu0 %v358
      %v1079 = vpop.f32.mrb[0].mxu0
      %v1080 = vadd.f32 %v503, %v1079
      %v1081 = vpop.f32.mrb[0].mxu0
      %v1082 = vadd.f32 %v507, %v1081
      %v1083 = vpop.f32.mrb[0].mxu0
      %v1084 = vadd.f32 %v503, %v1083
      %v1085 = vpop.f32.mrb[0].mxu0
      %v1086 = vadd.f32 %v507, %v1085
      %1087 = vmatprep.mubr.bf16.mxu0 %v366
      %1088 = vmatmul.mubr.bf16.gmra.mrb[0].mxu0 %v365
      %v1089 = vpop.f32.mrb[0].mxu0
      %v1090 = vadd.f32 %v503, %v1089
      %v1091 = vpop.f32.mrb[0].mxu0
      %v1092 = vadd.f32 %v507, %v1091
      %v1093 = vpop.f32.mrb[0].mxu0
      %v1094 = vadd.f32 %v503, %v1093
      %v1095 = vpop.f32.mrb[0].mxu0
      %v1096 = vadd.f32 %v507, %v1095
      %1097 = vmatprep.mubr.bf16.mxu0 %v373
      %1098 = vmatmul.mubr.bf16.gmra.mrb[0].mxu0 %v372
      %v1099 = vpop.f32.mrb[0].mxu0
      %v1100 = vadd.f32 %v503, %v1099
      %v1101 = vpop.f32.mrb[0].mxu0
      %v1102 = vadd.f32 %v507, %v1101
      %v1103 = vpop.f32.mrb[0].mxu0
      %v1104 = vadd.f32 %v503, %v1103
      %v1105 = vpop.f32.mrb[0].mxu0
      %v1106 = vadd.f32 %v507, %v1105
      %1107 = vmatprep.mubr.bf16.mxu0 %v380
      %1108 = vmatmul.mubr.bf16.gmra.mrb[0].mxu0 %v379
      %v1109 = vpop.f32.mrb[0].mxu0
      %v1110 = vadd.f32 %v503, %v1109
      %v1111 = vpop.f32.mrb[0].mxu0
      %v1112 = vadd.f32 %v507, %v1111
      %v1113 = vpop.f32.mrb[0].mxu0
      %v1114 = vadd.f32 %v503, %v1113
      %v1115 = vpop.f32.mrb[0].mxu0
      %v1116 = vadd.f32 %v507, %v1115
      %1117 = vmatprep.mubr.bf16.mxu0 %v387
      %1118 = vmatmul.mubr.bf16.gmra.mrb[0].mxu0 %v386
      %v1119 = vpop.f32.mrb[0].mxu0
      %v1120 = vadd.f32 %v503, %v1119
      %v1121 = vpop.f32.mrb[0].mxu0
      %v1122 = vadd.f32 %v507, %v1121
      %v1123 = vpop.f32.mrb[0].mxu0
      %v1124 = vadd.f32 %v503, %v1123
      %v1125 = vpop.f32.mrb[0].mxu0
      %v1126 = vadd.f32 %v507, %v1125
      %1127 = vmatprep.mubr.bf16.mxu0 %v394
      %1128 = vmatmul.mubr.bf16.gmra.mrb[0].mxu0 %v393
      %v1129 = vpop.f32.mrb[0].mxu0
      %v1130 = vadd.f32 %v503, %v1129
      %v1131 = vpop.f32.mrb[0].mxu0
      %v1132 = vadd.f32 %v507, %v1131
      %v1133 = vpop.f32.mrb[0].mxu0
      %v1134 = vadd.f32 %v503, %v1133
      %v1135 = vpop.f32.mrb[0].mxu0
      %v1136 = vadd.f32 %v507, %v1135
      %1137 = vdwg.mxu0
      %1138 = vmatprep.subr.bf16.mxu0 %v837
      %1139 = vmatpush1.bf16.msra.mxu0 %v836
      %1140 = vmatprep.subr.bf16.mxu0 %v839
      %1141 = vmatpush1.bf16.msra.mxu0 %v838
      %1142 = vmatprep.subr.bf16.mxu0 %v841
      %1143 = vmatpush1.bf16.msra.mxu0 %v840
      %1144 = vmatprep.subr.bf16.mxu0 %v843
      %1145 = vmatpush1.bf16.msra.mxu0 %v842
      %1146 = vmatprep.subr.bf16.mxu0 %v845
      %1147 = vmatpush1.bf16.msra.mxu0 %v844
      %1148 = vmatprep.subr.bf16.mxu0 %v847
      %1149 = vmatpush1.bf16.msra.mxu0 %v846
      %1150 = vmatprep.subr.bf16.mxu0 %v849
      %1151 = vmatpush1.bf16.msra.mxu0 %v848
      %1152 = vmatprep.subr.bf16.mxu0 %v851
      %1153 = vmatpush1.bf16.msra.mxu0 %v850
      %1154 = vmatprep.subr.bf16.mxu0 %v853
      %1155 = vmatpush1.bf16.msra.mxu0 %v852
      %1156 = vmatprep.subr.bf16.mxu0 %v855
      %1157 = vmatpush1.bf16.msra.mxu0 %v854
      %1158 = vmatprep.subr.bf16.mxu0 %v857
      %1159 = vmatpush1.bf16.msra.mxu0 %v856
      %1160 = vmatprep.subr.bf16.mxu0 %v859
      %1161 = vmatpush1.bf16.msra.mxu0 %v858
      %1162 = vmatprep.subr.bf16.mxu0 %v861
      %1163 = vmatpush1.bf16.msra.mxu0 %v860
      %1164 = vmatprep.subr.bf16.mxu0 %v863
      %1165 = vmatpush1.bf16.msra.mxu0 %v862
      %1166 = vmatprep.subr.bf16.mxu0 %v865
      %1167 = vmatpush1.bf16.msra.mxu0 %v864
      %1168 = vmatprep.subr.bf16.mxu0 %v867
      %1169 = vmatpush1.bf16.msra.mxu0 %v866
      %1170 = vmatprep.mubr.bf16.mxu0 %v347
      %1171 = vmatmul.mubr.bf16.gmra.mrb[0].mxu0 %v346
      %v1172 = vpop.f32.mrb[0].mxu0
      %v1173 = vadd.f32 %v1060, %v1172
      %v1174 = vpop.f32.mrb[0].mxu0
      %v1175 = vadd.f32 %v1062, %v1174
      %v1176 = vpop.f32.mrb[0].mxu0
      %v1177 = vadd.f32 %v1064, %v1176
      %v1178 = vpop.f32.mrb[0].mxu0
      %v1179 = vadd.f32 %v1066, %v1178
      %1180 = vmatprep.mubr.bf16.mxu0 %v354
      %1181 = vmatmul.mubr.bf16.gmra.mrb[0].mxu0 %v353
      %v1182 = vpop.f32.mrb[0].mxu0
      %v1183 = vadd.f32 %v1070, %v1182
      %v1184 = vpop.f32.mrb[0].mxu0
      %v1185 = vadd.f32 %v1072, %v1184
      %v1186 = vpop.f32.mrb[0].mxu0
      %v1187 = vadd.f32 %v1074, %v1186
      %v1188 = vpop.f32.mrb[0].mxu0
      %v1189 = vadd.f32 %v1076, %v1188
      %1190 = vmatprep.mubr.bf16.mxu0 %v361
      %1191 = vmatmul.mubr.bf16.gmra.mrb[0].mxu0 %v360
      %v1192 = vpop.f32.mrb[0].mxu0
      %v1193 = vadd.f32 %v1080, %v1192
      %v1194 = vpop.f32.mrb[0].mxu0
      %v1195 = vadd.f32 %v1082, %v1194
      %v1196 = vpop.f32.mrb[0].mxu0
      %v1197 = vadd.f32 %v1084, %v1196
      %v1198 = vpop.f32.mrb[0].mxu0
      %v1199 = vadd.f32 %v1086, %v1198
      %1200 = vmatprep.mubr.bf16.mxu0 %v368
      %1201 = vmatmul.mubr.bf16.gmra.mrb[0].mxu0 %v367
      %v1202 = vpop.f32.mrb[0].mxu0
      %v1203 = vadd.f32 %v1090, %v1202
      %v1204 = vpop.f32.mrb[0].mxu0
      %v1205 = vadd.f32 %v1092, %v1204
      %v1206 = vpop.f32.mrb[0].mxu0
      %v1207 = vadd.f32 %v1094, %v1206
      %v1208 = vpop.f32.mrb[0].mxu0
      %v1209 = vadd.f32 %v1096, %v1208
      %1210 = vmatprep.mubr.bf16.mxu0 %v375
      %1211 = vmatmul.mubr.bf16.gmra.mrb[0].mxu0 %v374
      %v1212 = vpop.f32.mrb[0].mxu0
      %v1213 = vadd.f32 %v1100, %v1212
      %v1214 = vpop.f32.mrb[0].mxu0
      %v1215 = vadd.f32 %v1102, %v1214
      %v1216 = vpop.f32.mrb[0].mxu0
      %v1217 = vadd.f32 %v1104, %v1216
      %v1218 = vpop.f32.mrb[0].mxu0
      %v1219 = vadd.f32 %v1106, %v1218
      %1220 = vmatprep.mubr.bf16.mxu0 %v382
      %1221 = vmatmul.mubr.bf16.gmra.mrb[0].mxu0 %v381
      %v1222 = vpop.f32.mrb[0].mxu0
      %v1223 = vadd.f32 %v1110, %v1222
      %v1224 = vpop.f32.mrb[0].mxu0
      %v1225 = vadd.f32 %v1112, %v1224
      %v1226 = vpop.f32.mrb[0].mxu0
      %v1227 = vadd.f32 %v1114, %v1226
      %v1228 = vpop.f32.mrb[0].mxu0
      %v1229 = vadd.f32 %v1116, %v1228
      %1230 = vmatprep.mubr.bf16.mxu0 %v389
      %1231 = vmatmul.mubr.bf16.gmra.mrb[0].mxu0 %v388
      %v1232 = vpop.f32.mrb[0].mxu0
      %v1233 = vadd.f32 %v1120, %v1232
      %v1234 = vpop.f32.mrb[0].mxu0
      %v1235 = vadd.f32 %v1122, %v1234
      %v1236 = vpop.f32.mrb[0].mxu0
      %v1237 = vadd.f32 %v1124, %v1236
      %v1238 = vpop.f32.mrb[0].mxu0
      %v1239 = vadd.f32 %v1126, %v1238
      %1240 = vmatprep.mubr.bf16.mxu0 %v396
      %1241 = vmatmul.mubr.bf16.gmra.mrb[0].mxu0 %v395
      %v1242 = vpop.f32.mrb[0].mxu0
      %v1243 = vadd.f32 %v1130, %v1242
      %v1244 = vpop.f32.mrb[0].mxu0
      %v1245 = vadd.f32 %v1132, %v1244
      %v1246 = vpop.f32.mrb[0].mxu0
      %v1247 = vadd.f32 %v1134, %v1246
      %v1248 = vpop.f32.mrb[0].mxu0
      %v1249 = vadd.f32 %v1136, %v1248
      %1250 = vdwg.mxu0
      %1251 = vmatprep.subr.bf16.mxu0 %v869
      %1252 = vmatpush1.bf16.msra.mxu0 %v868
      %1253 = vmatprep.subr.bf16.mxu0 %v871
      %1254 = vmatpush1.bf16.msra.mxu0 %v870
      %1255 = vmatprep.subr.bf16.mxu0 %v873
      %1256 = vmatpush1.bf16.msra.mxu0 %v872
      %1257 = vmatprep.subr.bf16.mxu0 %v875
      %1258 = vmatpush1.bf16.msra.mxu0 %v874
      %1259 = vmatprep.subr.bf16.mxu0 %v877
      %1260 = vmatpush1.bf16.msra.mxu0 %v876
      %1261 = vmatprep.subr.bf16.mxu0 %v879
      %1262 = vmatpush1.bf16.msra.mxu0 %v878
      %1263 = vmatprep.subr.bf16.mxu0 %v881
      %1264 = vmatpush1.bf16.msra.mxu0 %v880
      %1265 = vmatprep.subr.bf16.mxu0 %v883
      %1266 = vmatpush1.bf16.msra.mxu0 %v882
      %1267 = vmatprep.subr.bf16.mxu0 %v885
      %1268 = vmatpush1.bf16.msra.mxu0 %v884
      %1269 = vmatprep.subr.bf16.mxu0 %v887
      %1270 = vmatpush1.bf16.msra.mxu0 %v886
      %1271 = vmatprep.subr.bf16.mxu0 %v889
      %1272 = vmatpush1.bf16.msra.mxu0 %v888
      %1273 = vmatprep.subr.bf16.mxu0 %v891
      %1274 = vmatpush1.bf16.msra.mxu0 %v890
      %1275 = vmatprep.subr.bf16.mxu0 %v893
      %1276 = vmatpush1.bf16.msra.mxu0 %v892
      %1277 = vmatprep.subr.bf16.mxu0 %v895
      %1278 = vmatpush1.bf16.msra.mxu0 %v894
      %1279 = vmatprep.subr.bf16.mxu0 %v897
      %1280 = vmatpush1.bf16.msra.mxu0 %v896
      %1281 = vmatprep.subr.bf16.mxu0 %v899
      %1282 = vmatpush1.bf16.msra.mxu0 %v898
      %1283 = vmatprep.mubr.bf16.mxu0 %v349
      %1284 = vmatmul.mubr.bf16.gmra.mrb[0].mxu0 %v348
      %v1285 = vpop.f32.mrb[0].mxu0
      %v1286 = vadd.f32 %v1173, %v1285
      %v1287 = vpop.f32.mrb[0].mxu0
      %v1288 = vadd.f32 %v1175, %v1287
      %v1289 = vpop.f32.mrb[0].mxu0
      %v1290 = vadd.f32 %v1177, %v1289
      %v1291 = vpop.f32.mrb[0].mxu0
      %v1292 = vadd.f32 %v1179, %v1291
      %1293 = vmatprep.mubr.bf16.mxu0 %v356
      %1294 = vmatmul.mubr.bf16.gmra.mrb[0].mxu0 %v355
      %v1295 = vpop.f32.mrb[0].mxu0
      %v1296 = vadd.f32 %v1183, %v1295
      %v1297 = vpop.f32.mrb[0].mxu0
      %v1298 = vadd.f32 %v1185, %v1297
      %v1299 = vpop.f32.mrb[0].mxu0
      %v1300 = vadd.f32 %v1187, %v1299
      %v1301 = vpop.f32.mrb[0].mxu0
      %v1302 = vadd.f32 %v1189, %v1301
      %1303 = vmatprep.mubr.bf16.mxu0 %v363
      %1304 = vmatmul.mubr.bf16.gmra.mrb[0].mxu0 %v362
      %v1305 = vpop.f32.mrb[0].mxu0
      %v1306 = vadd.f32 %v1193, %v1305
      %v1307 = vpop.f32.mrb[0].mxu0
      %v1308 = vadd.f32 %v1195, %v1307
      %v1309 = vpop.f32.mrb[0].mxu0
      %v1310 = vadd.f32 %v1197, %v1309
      %v1311 = vpop.f32.mrb[0].mxu0
      %v1312 = vadd.f32 %v1199, %v1311
      %1313 = vmatprep.mubr.bf16.mxu0 %v370
      %1314 = vmatmul.mubr.bf16.gmra.mrb[0].mxu0 %v369
      %v1315 = vpop.f32.mrb[0].mxu0
      %v1316 = vadd.f32 %v1203, %v1315
      %v1317 = vpop.f32.mrb[0].mxu0
      %v1318 = vadd.f32 %v1205, %v1317
      %v1319 = vpop.f32.mrb[0].mxu0
      %v1320 = vadd.f32 %v1207, %v1319
      %v1321 = vpop.f32.mrb[0].mxu0
      %v1322 = vadd.f32 %v1209, %v1321
      %1323 = vmatprep.mubr.bf16.mxu0 %v377
      %1324 = vmatmul.mubr.bf16.gmra.mrb[0].mxu0 %v376
      %v1325 = vpop.f32.mrb[0].mxu0
      %v1326 = vadd.f32 %v1213, %v1325
      %v1327 = vpop.f32.mrb[0].mxu0
      %v1328 = vadd.f32 %v1215, %v1327
      %v1329 = vpop.f32.mrb[0].mxu0
      %v1330 = vadd.f32 %v1217, %v1329
      %v1331 = vpop.f32.mrb[0].mxu0
      %v1332 = vadd.f32 %v1219, %v1331
      %1333 = vmatprep.mubr.bf16.mxu0 %v384
      %1334 = vmatmul.mubr.bf16.gmra.mrb[0].mxu0 %v383
      %v1335 = vpop.f32.mrb[0].mxu0
      %v1336 = vadd.f32 %v1223, %v1335
      %v1337 = vpop.f32.mrb[0].mxu0
      %v1338 = vadd.f32 %v1225, %v1337
      %v1339 = vpop.f32.mrb[0].mxu0
      %v1340 = vadd.f32 %v1227, %v1339
      %v1341 = vpop.f32.mrb[0].mxu0
      %v1342 = vadd.f32 %v1229, %v1341
      %1343 = vmatprep.mubr.bf16.mxu0 %v391
      %1344 = vmatmul.mubr.bf16.gmra.mrb[0].mxu0 %v390
      %v1345 = vpop.f32.mrb[0].mxu0
      %v1346 = vadd.f32 %v1233, %v1345
      %v1347 = vpop.f32.mrb[0].mxu0
      %v1348 = vadd.f32 %v1235, %v1347
      %v1349 = vpop.f32.mrb[0].mxu0
      %v1350 = vadd.f32 %v1237, %v1349
      %v1351 = vpop.f32.mrb[0].mxu0
      %v1352 = vadd.f32 %v1239, %v1351
      %1353 = vmatprep.mubr.bf16.mxu0 %v398
      %1354 = vmatmul.mubr.bf16.gmra.mrb[0].mxu0 %v397
      %v1355 = vpop.f32.mrb[0].mxu0
      %v1356 = vadd.f32 %v1243, %v1355
      %v1357 = vpop.f32.mrb[0].mxu0
      %v1358 = vadd.f32 %v1245, %v1357
      %v1359 = vpop.f32.mrb[0].mxu0
      %v1360 = vadd.f32 %v1247, %v1359
      %v1361 = vpop.f32.mrb[0].mxu0
      %v1362 = vadd.f32 %v1249, %v1361
      %1363 = vdwg.mxu0
      %1364 = vmatprep.subr.bf16.mxu0 %v901
      %1365 = vmatpush1.bf16.msra.mxu0 %v900
      %1366 = vmatprep.subr.bf16.mxu0 0
      %1367 = vmatpush1.bf16.msra.mxu0 0
      %1368 = vmatprep.subr.bf16.mxu0 0
      %1369 = vmatpush1.bf16.msra.mxu0 0
      %1370 = vmatprep.subr.bf16.mxu0 0
      %1371 = vmatpush1.bf16.msra.mxu0 0
      %1372 = vmatprep.subr.bf16.mxu0 0
      %1373 = vmatpush1.bf16.msra.mxu0 0
      %1374 = vmatprep.subr.bf16.mxu0 0
      %1375 = vmatpush1.bf16.msra.mxu0 0
      %1376 = vmatprep.subr.bf16.mxu0 0
      %1377 = vmatpush1.bf16.msra.mxu0 0
      %1378 = vmatprep.subr.bf16.mxu0 0
      %1379 = vmatpush1.bf16.msra.mxu0 0
      %1380 = vmatprep.subr.bf16.mxu0 0
      %1381 = vmatpush1.bf16.msra.mxu0 0
      %1382 = vmatprep.subr.bf16.mxu0 0
      %1383 = vmatpush1.bf16.msra.mxu0 0
      %1384 = vmatprep.subr.bf16.mxu0 0
      %1385 = vmatpush1.bf16.msra.mxu0 0
      %1386 = vmatprep.subr.bf16.mxu0 0
      %1387 = vmatpush1.bf16.msra.mxu0 0
      %1388 = vmatprep.subr.bf16.mxu0 0
      %1389 = vmatpush1.bf16.msra.mxu0 0
      %1390 = vmatprep.subr.bf16.mxu0 0
      %1391 = vmatpush1.bf16.msra.mxu0 0
      %1392 = vmatprep.subr.bf16.mxu0 0
      %1393 = vmatpush1.bf16.msra.mxu0 0
      %1394 = vmatprep.subr.bf16.mxu0 0
      %1395 = vmatpush1.bf16.msra.mxu0 0
      %1396 = vmatprep.mubr.bf16.mxu0 0
      %1397 = vmatmul.mubr.bf16.gmra.mrb[0].mxu0 %v1002
      %v1398 = vpop.f32.mrb[0].mxu0
      %v1399 = vadd.f32 %v1286, %v1398
      %v1400 = vpop.f32.mrb[0].mxu0
      %v1401 = vadd.f32 %v1288, %v1400
      %v1402 = vpop.f32.mrb[0].mxu0
      %v1403 = vadd.f32 %v1290, %v1402
      %v1404 = vpop.f32.mrb[0].mxu0
      %v1405 = vadd.f32 %v1292, %v1404
      %1406 = vmatprep.mubr.bf16.mxu0 0
      %1407 = vmatmul.mubr.bf16.gmra.mrb[0].mxu0 %v1005
      %v1408 = vpop.f32.mrb[0].mxu0
      %v1409 = vadd.f32 %v1296, %v1408
      %v1410 = vpop.f32.mrb[0].mxu0
      %v1411 = vadd.f32 %v1298, %v1410
      %v1412 = vpop.f32.mrb[0].mxu0
      %v1413 = vadd.f32 %v1300, %v1412
      %v1414 = vpop.f32.mrb[0].mxu0
      %v1415 = vadd.f32 %v1302, %v1414
      %1416 = vmatprep.mubr.bf16.mxu0 0
      %1417 = vmatmul.mubr.bf16.gmra.mrb[0].mxu0 %v1008
      %v1418 = vpop.f32.mrb[0].mxu0
      %v1419 = vadd.f32 %v1306, %v1418
      %v1420 = vpop.f32.mrb[0].mxu0
      %v1421 = vadd.f32 %v1308, %v1420
      %v1422 = vpop.f32.mrb[0].mxu0
      %v1423 = vadd.f32 %v1310, %v1422
      %v1424 = vpop.f32.mrb[0].mxu0
      %v1425 = vadd.f32 %v1312, %v1424
      %1426 = vmatprep.mubr.bf16.mxu0 0
      %1427 = vmatmul.mubr.bf16.gmra.mrb[0].mxu0 %v1011
      %v1428 = vpop.f32.mrb[0].mxu0
      %v1429 = vadd.f32 %v1316, %v1428
      %v1430 = vpop.f32.mrb[0].mxu0
      %v1431 = vadd.f32 %v1318, %v1430
      %v1432 = vpop.f32.mrb[0].mxu0
      %v1433 = vadd.f32 %v1320, %v1432
      %v1434 = vpop.f32.mrb[0].mxu0
      %v1435 = vadd.f32 %v1322, %v1434
      %1436 = vmatprep.mubr.bf16.mxu0 0
      %1437 = vmatmul.mubr.bf16.gmra.mrb[0].mxu0 %v1014
      %v1438 = vpop.f32.mrb[0].mxu0
      %v1439 = vadd.f32 %v1326, %v1438
      %v1440 = vpop.f32.mrb[0].mxu0
      %v1441 = vadd.f32 %v1328, %v1440
      %v1442 = vpop.f32.mrb[0].mxu0
      %v1443 = vadd.f32 %v1330, %v1442
      %v1444 = vpop.f32.mrb[0].mxu0
      %v1445 = vadd.f32 %v1332, %v1444
      %1446 = vmatprep.mubr.bf16.mxu0 0
      %1447 = vmatmul.mubr.bf16.gmra.mrb[0].mxu0 %v1017
      %v1448 = vpop.f32.mrb[0].mxu0
      %v1449 = vadd.f32 %v1336, %v1448
      %v1450 = vpop.f32.mrb[0].mxu0
      %v1451 = vadd.f32 %v1338, %v1450
      %v1452 = vpop.f32.mrb[0].mxu0
      %v1453 = vadd.f32 %v1340, %v1452
      %v1454 = vpop.f32.mrb[0].mxu0
      %v1455 = vadd.f32 %v1342, %v1454
      %1456 = vmatprep.mubr.bf16.mxu0 0
      %1457 = vmatmul.mubr.bf16.gmra.mrb[0].mxu0 %v1020
      %v1458 = vpop.f32.mrb[0].mxu0
      %v1459 = vadd.f32 %v1346, %v1458
      %v1460 = vpop.f32.mrb[0].mxu0
      %v1461 = vadd.f32 %v1348, %v1460
      %v1462 = vpop.f32.mrb[0].mxu0
      %v1463 = vadd.f32 %v1350, %v1462
      %v1464 = vpop.f32.mrb[0].mxu0
      %v1465 = vadd.f32 %v1352, %v1464
      %1466 = vmatprep.mubr.bf16.mxu0 0
      %1467 = vmatmul.mubr.bf16.gmra.mrb[0].mxu0 %v1023
      %v1468 = vpop.f32.mrb[0].mxu0
      %v1469 = vadd.f32 %v1356, %v1468
      %v1470 = vpop.f32.mrb[0].mxu0
      %v1471 = vadd.f32 %v1358, %v1470
      %v1472 = vpop.f32.mrb[0].mxu0
      %v1473 = vadd.f32 %v1360, %v1472
      %v1474 = vpop.f32.mrb[0].mxu0
      %v1475 = vadd.f32 %v1362, %v1474
      %1476 = vdwg.mxu0
      %v1477 = vtanh.pop %v1399
      %v1478 = vtanh.pop %v1401
      %v1479 = vtanh.pop %v1403
      %v1480 = vtanh.pop %v1405
      %v1481 = vtanh.pop %v1409
      %v1482 = vtanh.pop %v1411
      %v1483 = vtanh.pop %v1413
      %v1484 = vtanh.pop %v1415
      %v1485 = vtanh.pop %v1419
      %v1486 = vtanh.pop %v1421
      %v1487 = vtanh.pop %v1423
      %v1488 = vtanh.pop %v1425
      %v1489 = vtanh.pop %v1429
      %v1490 = vtanh.pop %v1431
      %v1491 = vtanh.pop %v1433
      %v1492 = vtanh.pop %v1435
      %v1493 = vtanh.pop %v1439
      %v1494 = vtanh.pop %v1441
      %v1495 = vtanh.pop %v1443
      %v1496 = vtanh.pop %v1445
      %v1497 = vtanh.pop %v1449
      %v1498 = vtanh.pop %v1451
      %v1499 = vtanh.pop %v1453
      %v1500 = vtanh.pop %v1455
      %v1501 = vtanh.pop %v1459
      %v1502 = vtanh.pop %v1461
      %v1503 = vtanh.pop %v1463
      %v1504 = vtanh.pop %v1465
      %v1505 = vtanh.pop %v1469
      %v1506 = vtanh.pop %v1471
      %v1507 = vtanh.pop %v1473
      %v1508 = vtanh.pop %v1475
      %v1509 = vpack.c.bf16 %v1479, %v1477
      %v1510 = vpack.c.bf16 %v1480, %v1478
      %v1511 = vpack.c.bf16 %v1483, %v1481
      %v1512 = vpack.c.bf16 %v1484, %v1482
      %v1513 = vpack.c.bf16 %v1487, %v1485
      %v1514 = vpack.c.bf16 %v1488, %v1486
      %v1515 = vpack.c.bf16 %v1491, %v1489
      %v1516 = vpack.c.bf16 %v1492, %v1490
      %v1517 = vpack.c.bf16 %v1495, %v1493
      %v1518 = vpack.c.bf16 %v1496, %v1494
      %v1519 = vpack.c.bf16 %v1499, %v1497
      %v1520 = vpack.c.bf16 %v1500, %v1498
      %v1521 = vpack.c.bf16 %v1503, %v1501
      %v1522 = vpack.c.bf16 %v1504, %v1502
      %v1523 = vpack.c.bf16 %v1507, %v1505
      %v1524 = vpack.c.bf16 %v1508, %v1506
      %v1525 = vld [vmem:[%s3] sm:$0xf]
      %v1526 = vld [vmem:[%s3 + $0x4] sm:$0xf]
      %v1527 = vld [vmem:[%s3 + $0x8] sm:$0xf]
      %v1528 = vld [vmem:[%s3 + $0xc] sm:$0xf]
      %v1529 = vld [vmem:[%s3 + $0x10] sm:$0xf]
      %v1530 = vld [vmem:[%s3 + $0x14] sm:$0xf]
      %v1531 = vld [vmem:[%s3 + $0x18] sm:$0xf]
      %v1532 = vld [vmem:[%s3 + $0x1c] sm:$0xf]
      %v1533 = vld [vmem:[%s3 + $0x20] sm:$0xf]
      %v1534 = vld [vmem:[%s3 + $0x24] sm:$0xf]
      %v1535 = vld [vmem:[%s3 + $0x28] sm:$0xf]
      %v1536 = vld [vmem:[%s3 + $0x2c] sm:$0xf]
      %v1537 = vld [vmem:[%s3 + $0x30] sm:$0xf]
      %v1538 = vld [vmem:[%s3 + $0x34] sm:$0xf]
      %v1539 = vld [vmem:[%s3 + $0x38] sm:$0xf]
      %v1540 = vld [vmem:[%s3 + $0x3c] sm:$0xf]
      %v1541 = vld [vmem:[%s3 + $0x40] sm:$0xf]
      %v1542 = vld [vmem:[%s3 + $0x44] sm:$0xf]
      %v1543 = vld [vmem:[%s3 + $0x48] sm:$0xf]
      %v1544 = vld [vmem:[%s3 + $0x4c] sm:$0xf]
      %v1545 = vld [vmem:[%s3 + $0x50] sm:$0xf]
      %v1546 = vld [vmem:[%s3 + $0x54] sm:$0xf]
      %v1547 = vld [vmem:[%s3 + $0x58] sm:$0xf]
      %v1548 = vld [vmem:[%s3 + $0x5c] sm:$0xf]
      %v1549 = vld [vmem:[%s3 + $0x60] sm:$0xf]
      %v1550 = vld [vmem:[%s3 + $0x64] sm:$0xf]
      %v1551 = vld [vmem:[%s3 + $0x68] sm:$0xf]
      %v1552 = vld [vmem:[%s3 + $0x6c] sm:$0xf]
      %v1553 = vld [vmem:[%s3 + $0x70] sm:$0xf]
      %v1554 = vld [vmem:[%s3 + $0x74] sm:$0xf]
      %v1555 = vld [vmem:[%s3 + $0x78] sm:$0xf]
      %v1556 = vld [vmem:[%s3 + $0x7c] sm:$0xf]
      %v1557 = vld [vmem:[%s4] sm:$0x1]
      %v1559 = vlaneseq
      %v1560 = vshrl.u32 %v1559, 7
      %v1561 = vsub.s32 0, %v1560
      %v1562 = vrot.slane %v1557, %v1561
      %v1596 = vunpack.c.l.b16 %v1525
      %v1597 = vunpack.c.l.b16 %v1526
      %v1598 = vunpack.c.l.b16 %v1527
      %v1599 = vunpack.c.l.b16 %v1528
      %v1600 = vunpack.c.l.b16 %v1529
      %v1601 = vunpack.c.l.b16 %v1530
      %v1602 = vunpack.c.l.b16 %v1531
      %v1603 = vunpack.c.l.b16 %v1532
      %v1604 = vunpack.c.l.b16 %v1533
      %v1605 = vunpack.c.l.b16 %v1534
      %v1606 = vunpack.c.l.b16 %v1535
      %v1607 = vunpack.c.l.b16 %v1536
      %v1608 = vunpack.c.l.b16 %v1537
      %v1609 = vunpack.c.l.b16 %v1538
      %v1610 = vunpack.c.l.b16 %v1539
      %v1611 = vunpack.c.l.b16 %v1540
      %v1612 = vunpack.c.l.b16 %v1541
      %v1613 = vunpack.c.l.b16 %v1542
      %v1614 = vunpack.c.l.b16 %v1543
      %v1615 = vunpack.c.l.b16 %v1544
      %v1616 = vunpack.c.l.b16 %v1545
      %v1617 = vunpack.c.l.b16 %v1546
      %v1618 = vunpack.c.l.b16 %v1547
      %v1619 = vunpack.c.l.b16 %v1548
      %v1620 = vunpack.c.l.b16 %v1549
      %v1621 = vunpack.c.l.b16 %v1550
      %v1622 = vunpack.c.l.b16 %v1551
      %v1623 = vunpack.c.l.b16 %v1552
      %v1624 = vunpack.c.l.b16 %v1553
      %v1625 = vunpack.c.l.b16 %v1554
      %v1626 = vunpack.c.l.b16 %v1555
      %v1627 = vunpack.c.l.b16 %v1556
      %v1628 = vpack.c.b16 %v1597, %v1596
      %v1629 = vpack.c.b16 %v1599, %v1598
      %v1630 = vpack.c.b16 %v1601, %v1600
      %v1631 = vpack.c.b16 %v1603, %v1602
      %v1632 = vpack.c.b16 %v1605, %v1604
      %v1633 = vpack.c.b16 %v1607, %v1606
      %v1634 = vpack.c.b16 %v1609, %v1608
      %v1635 = vpack.c.b16 %v1611, %v1610
      %v1636 = vpack.c.b16 %v1613, %v1612
      %v1637 = vpack.c.b16 %v1615, %v1614
      %v1638 = vpack.c.b16 %v1617, %v1616
      %v1639 = vpack.c.b16 %v1619, %v1618
      %v1640 = vpack.c.b16 %v1621, %v1620
      %v1641 = vpack.c.b16 %v1623, %v1622
      %v1642 = vpack.c.b16 %v1625, %v1624
      %v1643 = vpack.c.b16 %v1627, %v1626
      %1660 = vmatprep.subr.bf16.mxu0 0
      %1661 = vmatpush1.bf16.msra.mxu0 %v1628
      %1662 = vmatprep.subr.bf16.mxu0 0
      %1663 = vmatpush1.bf16.msra.mxu0 %v1629
      %1664 = vmatprep.subr.bf16.mxu0 0
      %1665 = vmatpush1.bf16.msra.mxu0 %v1630
      %1666 = vmatprep.subr.bf16.mxu0 0
      %1667 = vmatpush1.bf16.msra.mxu0 %v1631
      %1668 = vmatprep.subr.bf16.mxu0 0
      %1669 = vmatpush1.bf16.msra.mxu0 %v1632
      %1670 = vmatprep.subr.bf16.mxu0 0
      %1671 = vmatpush1.bf16.msra.mxu0 %v1633
      %1672 = vmatprep.subr.bf16.mxu0 0
      %1673 = vmatpush1.bf16.msra.mxu0 %v1634
      %1674 = vmatprep.subr.bf16.mxu0 0
      %1675 = vmatpush1.bf16.msra.mxu0 %v1635
      %1676 = vmatprep.subr.bf16.mxu0 0
      %1677 = vmatpush1.bf16.msra.mxu0 %v1636
      %1678 = vmatprep.subr.bf16.mxu0 0
      %1679 = vmatpush1.bf16.msra.mxu0 %v1637
      %1680 = vmatprep.subr.bf16.mxu0 0
      %1681 = vmatpush1.bf16.msra.mxu0 %v1638
      %1682 = vmatprep.subr.bf16.mxu0 0
      %1683 = vmatpush1.bf16.msra.mxu0 %v1639
      %1684 = vmatprep.subr.bf16.mxu0 0
      %1685 = vmatpush1.bf16.msra.mxu0 %v1640
      %1686 = vmatprep.subr.bf16.mxu0 0
      %1687 = vmatpush1.bf16.msra.mxu0 %v1641
      %1688 = vmatprep.subr.bf16.mxu0 0
      %1689 = vmatpush1.bf16.msra.mxu0 %v1642
      %1690 = vmatprep.subr.bf16.mxu0 0
      %1691 = vmatpush1.bf16.msra.mxu0 %v1643
      %1692 = vmatprep.mubr.bf16.mxu0 %v1510
      %1693 = vmatmul.mubr.bf16.gmra.mrb[0].mxu0 %v1509
      %v1694 = vpop.f32.mrb[0].mxu0
      %v1695 = vadd.f32 %v1562, %v1694
      %v1696 = vpop.f32.mrb[0].mxu0
      %v1697 = vpop.f32.mrb[0].mxu0
      %v1698 = vadd.f32 %v1562, %v1697
      %v1699 = vpop.f32.mrb[0].mxu0
      %1700 = vmatprep.mubr.bf16.mxu0 %v1512
      %1701 = vmatmul.mubr.bf16.gmra.mrb[0].mxu0 %v1511
      %v1702 = vpop.f32.mrb[0].mxu0
      %v1703 = vadd.f32 %v1562, %v1702
      %v1704 = vpop.f32.mrb[0].mxu0
      %v1705 = vpop.f32.mrb[0].mxu0
      %v1706 = vadd.f32 %v1562, %v1705
      %v1707 = vpop.f32.mrb[0].mxu0
      %1708 = vmatprep.mubr.bf16.mxu0 %v1514
      %1709 = vmatmul.mubr.bf16.gmra.mrb[0].mxu0 %v1513
      %v1710 = vpop.f32.mrb[0].mxu0
      %v1711 = vadd.f32 %v1562, %v1710
      %v1712 = vpop.f32.mrb[0].mxu0
      %v1713 = vpop.f32.mrb[0].mxu0
      %v1714 = vadd.f32 %v1562, %v1713
      %v1715 = vpop.f32.mrb[0].mxu0
      %1716 = vmatprep.mubr.bf16.mxu0 %v1516
      %1717 = vmatmul.mubr.bf16.gmra.mrb[0].mxu0 %v1515
      %v1718 = vpop.f32.mrb[0].mxu0
      %v1719 = vadd.f32 %v1562, %v1718
      %v1720 = vpop.f32.mrb[0].mxu0
      %v1721 = vpop.f32.mrb[0].mxu0
      %v1722 = vadd.f32 %v1562, %v1721
      %v1723 = vpop.f32.mrb[0].mxu0
      %1724 = vmatprep.mubr.bf16.mxu0 %v1518
      %1725 = vmatmul.mubr.bf16.gmra.mrb[0].mxu0 %v1517
      %v1726 = vpop.f32.mrb[0].mxu0
      %v1727 = vadd.f32 %v1562, %v1726
      %v1728 = vpop.f32.mrb[0].mxu0
      %v1729 = vpop.f32.mrb[0].mxu0
      %v1730 = vadd.f32 %v1562, %v1729
      %v1731 = vpop.f32.mrb[0].mxu0
      %1732 = vmatprep.mubr.bf16.mxu0 %v1520
      %1733 = vmatmul.mubr.bf16.gmra.mrb[0].mxu0 %v1519
      %v1734 = vpop.f32.mrb[0].mxu0
      %v1735 = vadd.f32 %v1562, %v1734
      %v1736 = vpop.f32.mrb[0].mxu0
      %v1737 = vpop.f32.mrb[0].mxu0
      %v1738 = vadd.f32 %v1562, %v1737
      %v1739 = vpop.f32.mrb[0].mxu0
      %1740 = vmatprep.mubr.bf16.mxu0 %v1522
      %1741 = vmatmul.mubr.bf16.gmra.mrb[0].mxu0 %v1521
      %v1742 = vpop.f32.mrb[0].mxu0
      %v1743 = vadd.f32 %v1562, %v1742
      %v1744 = vpop.f32.mrb[0].mxu0
      %v1745 = vpop.f32.mrb[0].mxu0
      %v1746 = vadd.f32 %v1562, %v1745
      %v1747 = vpop.f32.mrb[0].mxu0
      %1748 = vmatprep.mubr.bf16.mxu0 %v1524
      %1749 = vmatmul.mubr.bf16.gmra.mrb[0].mxu0 %v1523
      %v1750 = vpop.f32.mrb[0].mxu0
      %v1751 = vadd.f32 %v1562, %v1750
      %v1752 = vpop.f32.mrb[0].mxu0
      %v1753 = vpop.f32.mrb[0].mxu0
      %v1754 = vadd.f32 %v1562, %v1753
      %v1755 = vpop.f32.mrb[0].mxu0
      %1756 = vdwg.mxu0
      %1757 = vst [vmem:[%s229] sm:$0xff] %v1695
      %1758 = vst [vmem:[%s229 + $0x8] sm:$0xff] %v1698
      %1759 = vst [vmem:[%s229 + $0x10] sm:$0xff] %v1703
      %1760 = vst [vmem:[%s229 + $0x18] sm:$0xff] %v1706
      %1761 = vst [vmem:[%s229 + $0x20] sm:$0xff] %v1711
      %1762 = vst [vmem:[%s229 + $0x28] sm:$0xff] %v1714
      %1763 = vst [vmem:[%s229 + $0x30] sm:$0xff] %v1719
      %1764 = vst [vmem:[%s229 + $0x38] sm:$0xff] %v1722
      %1765 = vst [vmem:[%s229 + $0x40] sm:$0xff] %v1727
      %1766 = vst [vmem:[%s229 + $0x48] sm:$0xff] %v1730
      %1767 = vst [vmem:[%s229 + $0x50] sm:$0xff] %v1735
      %1768 = vst [vmem:[%s229 + $0x58] sm:$0xff] %v1738
      %1769 = vst [vmem:[%s229 + $0x60] sm:$0xff] %v1743
      %1770 = vst [vmem:[%s229 + $0x68] sm:$0xff] %v1746
      %1771 = vst [vmem:[%s229 + $0x70] sm:$0xff] %v1751
      %1772 = vst [vmem:[%s229 + $0x78] sm:$0xff] %v1754
      %s1773 = smul.u32 16, %s16
      %p1774 = scmp.lt.s32.totalorder %s1773, 31
      %s1775 = scalar_select %p1774, %s1773, 31
      %s1776 = smul.addr %s1775, 8
      %s1777 = scalar_lea.vmem %s5, %s1776
      // Predicated region
      $region41: #{mnist_model_forward.1} parent=39 // pred_check
        %p1778 = pneg %p144
      $region42: #{mnist_model_forward.1} parent=39 // pred_check_branch
        %1780 = sbr.rel (%p1778) target = $region44
      $region43: #{mnist_model_forward.1} parent=39 // pred_region
        %s1781 = smul.u32 16, %s16
      $region44: #{mnist_model_forward.1} parent=39 // pred_fallthru
        _
    $region40: #{mnist_model_forward.1} parent=5 // pred_fallthru
      _
    %p1782 = scmp.le.s32.totalorder 2, %s11
    // Predicated region
    $region45: #{mnist_model_forward.1} parent=5 // pred_check
      %p1783 = pneg %p1782
    $region46: #{mnist_model_forward.1} parent=5 // pred_check_branch
      %1785 = sbr.rel (%p1783) target = $region48
    $region47: #{mnist_model_forward.1} parent=5 // pred_region
      %s1786 = ssub.s32 %s11, 2
      // Predicated region
      $region49: #{mnist_model_forward.1} parent=47 // pred_check
        %p1787 = pneg %p150
      $region50: #{mnist_model_forward.1} parent=47 // pred_check_branch
        %1789 = sbr.rel (%p1787) target = $region52
      $region51: #{mnist_model_forward.1} parent=47 // pred_region
        %s1790 = smul.u32 16, %s17
        %p1791 = scmp.lt.s32.totalorder %s1790, 31
        %s1792 = scalar_select %p1791, %s1790, 31
        %s1793 = smul.addr %s1792, 8
        %s1794 = scalar_lea.vmem %s5, %s1793
      $region52: #{mnist_model_forward.1} parent=47 // pred_fallthru
        _
    $region48: #{mnist_model_forward.1} parent=5 // pred_fallthru
      _
  $region6: #{mnist_model_forward.1} parent=0 // loop_footer
    %s15 = sadd.s32 1, %s11
  $region7: #{mnist_model_forward.1} parent=0 // loop_footer_branch
    %10 = sbr.rel target = $region3
  $region8: #{mnist_model_forward.1} parent=0 // loop_exit
    _

</llo_original>
